<compile_context>
chip_gen: v7x
topology: tpu7x:2x2x1
jax: 0.10.0
libtpu: 0.0.40
codegen_flags: <defaults>
</compile_context>

<pallas_src>
import functools

import numpy as np
import jax
import jax.numpy as jnp
from jax.experimental import pallas as pl
from jax.experimental.pallas import tpu as pltpu


def _tap_masks(H, W, KH=3, KW=3):
    """(KH*KW, H*W) validity masks for a stride-1 'same' 3x3 conv (f32 0/1)."""
    yy, xx = np.meshgrid(np.arange(H), np.arange(W), indexing="ij")
    masks = []
    for ky in range(KH):
        for kx in range(KW):
            valid = ((yy + ky - 1 >= 0) & (yy + ky - 1 < H) &
                     (xx + kx - 1 >= 0) & (xx + kx - 1 < W))
            masks.append(valid.reshape(H * W).astype(np.float32))
    return jnp.asarray(np.stack(masks, axis=0))


def _device_kind():
    try:
        return jax.devices()[0].device_kind.lower()
    except Exception:
        return ""


def _fused_kernel(x_ref, m_ref, w1_ref, b1_ref, w3_ref, b3_ref, o_ref, *, W):
    """Fused (conv1∘conv2) -> sigmoid -> conv3 -> sigmoid, one lane-slab/step.

    x_ref : (Cin,  LANE)     LANE = IMG * H * W, images concatenated on lanes
    m_ref : (9,    LANE)     per-tap zero-padding masks (compute dtype)
    w1_ref: (9, Cmid, Cin)   per-tap fused conv1+conv2 weights
    b1_ref: (Cmid, LANE)     fused bias, pre-broadcast (f32)
    w3_ref: (9, Cout, Cmid)  per-tap conv3 weights
    b3_ref: (Cout, LANE)     conv3 bias, pre-broadcast (f32)
    o_ref : (Cout, LANE)     output slab (f32)
    """
    LANE = x_ref.shape[-1]
    masks = m_ref[...]                                    # (9, LANE)

    def sigmoid_eup(z):
        # 1 / (1 + exp(-z)) : exp and reciprocal both run on the EUP slot.
        return pl.reciprocal(1.0 + jnp.exp(-z), approx=True)

    def conv3x3_same(a, w_ref):
        # a: (C, LANE) compute dtype, w_ref: (9, Co, C) -> (Co, LANE) f32 acc.
        acc = None
        for ky in range(3):
            for kx in range(3):
                t = ky * 3 + kx
                d = (ky - 1) * W + (kx - 1)               # flat shift of tap t
                if d == 0:
                    s = a                                 # center tap: exact
                else:
                    # s[p] = a[p + d], zeroed where the source leaves the image
                    s = pltpu.roll(a, (-d) % LANE, axis=1) * masks[t:t + 1, :]
                part = jnp.dot(w_ref[t], s,
                               preferred_element_type=jnp.float32)
                acc = part if acc is None else acc + part
        return acc

    x = x_ref[...]                                        # (Cin, LANE)
    h = sigmoid_eup(conv3x3_same(x, w1_ref) + b1_ref[...])   # (Cmid, LANE) f32
    h = h.astype(w3_ref.dtype)                            # one cast per layer
    y = sigmoid_eup(conv3x3_same(h, w3_ref) + b3_ref[...])   # (Cout, LANE) f32
    o_ref[...] = y.astype(o_ref.dtype)


def fused_forward_pallas(x_flat, masks, w1t, b1_b, w3t, b3_b, *, W, lane):
    Cin, total = x_flat.shape
    Cmid = w1t.shape[1]
    Cout = w3t.shape[1]
    n_steps = total // lane
    kernel = functools.partial(_fused_kernel, W=W)
    return pl.pallas_call(
        kernel,
        out_shape=jax.ShapeDtypeStruct((Cout, total), jnp.float32),
        grid=(n_steps,),
        in_specs=[
            pl.BlockSpec((Cin, lane), lambda b: (0, b)),
            pl.BlockSpec((9, lane), lambda b: (0, 0)),
            pl.BlockSpec((9, Cmid, Cin), lambda b: (0, 0, 0)),
            pl.BlockSpec((Cmid, lane), lambda b: (0, 0)),
            pl.BlockSpec((9, Cout, Cmid), lambda b: (0, 0, 0)),
            pl.BlockSpec((Cout, lane), lambda b: (0, 0)),
        ],
        out_specs=pl.BlockSpec((Cout, lane), lambda b: (0, b)),
        compiler_params=pltpu.CompilerParams(
            dimension_semantics=("parallel",)),
    )(x_flat, masks, w1t, b1_b, w3t, b3_b)


def model_forward(x_nchw, params):
    B, Cin, H, W = x_nchw.shape
    HW = H * W
    w1, b1 = params["w1"], params["b1"]          # (3,3,24,48), (48,)
    w2, b2 = params["w2"], params["b2"]          # (1,1,48,48), (48,)
    w3, b3 = params["w3"], params["b3"]          # (3,3,48,8),  (8,)

    # Fold the 1x1 conv2 into conv1 (both linear, no nonlinearity between).
    w2m = w2[0, 0]                                         # (48, 48)
    w_f = jnp.einsum("hwik,ko->hwio", w1, w2m)             # (3,3,24,48)
    b_f = b1 @ w2m + b2                                    # (48,)

    Cmid, Cout = w_f.shape[-1], w3.shape[-1]

    kind = _device_kind()
    # bf16-native MXU/VPU on v6e / v7x; keep f32 elsewhere (v5e has no bf16 VPU).
    cdt = jnp.bfloat16 if ("v6" in kind or "v7" in kind) else jnp.float32
    # Single-TC chips: one fat grid step; dual-TC / megacore: keep >= 2 steps.
    single_tc = any(s in kind for s in ("v5e", "v5 lite", "v6e", "v6 lite", "lite"))
    min_steps = 1 if single_tc else 2
    img = max(1, B // min_steps)
    while B % img:
        img -= 1
    lane = img * HW

    # Per-tap weights in (tap, Cout, Cin) layout: kernel indexes the leading
    # (untiled) axis with a static tap id -> no lane-axis weight slicing.
    w1t = jnp.transpose(w_f, (0, 1, 3, 2)).reshape(9, Cmid, Cin).astype(cdt)
    w3t = jnp.transpose(w3, (0, 1, 3, 2)).reshape(9, Cout, Cmid).astype(cdt)

    # Lane-dense pre-broadcast biases (f32, added to the f32 accumulator).
    b1_b = jnp.broadcast_to(b_f.astype(jnp.float32)[:, None], (Cmid, lane))
    b3_b = jnp.broadcast_to(b3.astype(jnp.float32)[:, None], (Cout, lane))

    # Per-tap boundary masks, tiled across the IMG images of one grid step
    # (they also zero any cross-image contamination from the flat rolls).
    masks = jnp.tile(_tap_masks(H, W), (1, img)).astype(cdt)   # (9, lane)

    # Channels-major, images concatenated along the lane axis.
    x_flat = x_nchw.reshape(B, Cin, HW).transpose(1, 0, 2).reshape(Cin, B * HW)
    x_flat = x_flat.astype(cdt)

    y = fused_forward_pallas(x_flat, masks, w1t, b1_b, w3t, b3_b,
                             W=W, lane=lane)               # (Cout, B*HW) f32
    return y.reshape(Cout, B, HW).transpose(1, 0, 2).reshape(B, Cout, H, W)


def ref_forward(x_nchw, params):
    """Pure-JAX reference (lax conv, f32) for correctness checking."""
    def conv(x, w_hwio, b, pad):
        y = jax.lax.conv_general_dilated(
            x, jnp.transpose(w_hwio, (3, 2, 0, 1)),        # HWIO -> OIHW
            window_strides=(1, 1), padding=[(pad, pad), (pad, pad)],
            dimension_numbers=("NCHW", "OIHW", "NCHW"))
        return y + b.reshape(1, -1, 1, 1)

    v1 = conv(x_nchw, params["w1"], params["b1"], 1)
    v2 = conv(v1, params["w2"], params["b2"], 0)
    v3 = jax.nn.sigmoid(v2)
    v5 = jax.nn.sigmoid(conv(v3, params["w3"], params["b3"], 1))
    return v5


if __name__ == "__main__":
    key = jax.random.PRNGKey(0)
    ks = jax.random.split(key, 7)

    # Channel counts fixed by the module (24 -> 48 -> 48 -> 8); small spatial/batch.
    B, Cin, H, W = 2, 24, 16, 16
    x = jax.random.normal(ks[0], (B, Cin, H, W), jnp.float32)

    params = {
        "w1": jax.random.normal(ks[1], (3, 3, 24, 48), jnp.float32) * 0.05,
        "b1": jax.random.normal(ks[2], (48,), jnp.float32) * 0.05,
        "w2": jax.random.normal(ks[3], (1, 1, 48, 48), jnp.float32) * 0.05,
        "b2": jax.random.normal(ks[4], (48,), jnp.float32) * 0.05,
        "w3": jax.random.normal(ks[5], (3, 3, 48, 8), jnp.float32) * 0.05,
        "b3": jax.random.normal(ks[6], (8,), jnp.float32) * 0.05,
    }

    out = jax.jit(model_forward)(x, params)
    out = jax.block_until_ready(out)

    assert out.shape == (B, 8, H, W), out.shape
    ref = ref_forward(x, params)
    # bf16 matmul operands (v6e/v7x) + approx-reciprocal sigmoid -> loosened tol.
    assert jnp.allclose(out, ref, atol=2e-2, rtol=2e-2), (
        float(jnp.max(jnp.abs(out - ref))))

    print("KERNEL_OK")
</pallas_src>

<mosaic_0001>
module attributes {stable_mosaic.version = 11 : i64} {
  func.func @_fused_kernel(%arg0: i32, %arg1: memref<24x256xf32, #tpu.memory_space<vmem>>, %arg2: memref<9x256xf32, #tpu.memory_space<vmem>>, %arg3: memref<9x48x24xf32, #tpu.memory_space<vmem>>, %arg4: memref<48x256xf32, #tpu.memory_space<vmem>>, %arg5: memref<9x8x48xf32, #tpu.memory_space<vmem>>, %arg6: memref<8x256xf32, #tpu.memory_space<vmem>>, %arg7: memref<8x256xf32, #tpu.memory_space<vmem>>) attributes {dimension_semantics = [#tpu.dimension_semantics<parallel>], iteration_bounds = array<i64: 2>, scalar_prefetch = 0 : i64, scratch_operands = 0 : i64, tpu.core_type = #tpu.core_type<tc>, window_params = [{transform_indices = @transform_0, window_bounds = array<i64: 24, 256>}, {pipeline_mode = #tpu.pipeline_mode<synchronous>, transform_indices = @transform_1, window_bounds = array<i64: 9, 256>}, {pipeline_mode = #tpu.pipeline_mode<synchronous>, transform_indices = @transform_2, window_bounds = array<i64: 9, 48, 24>}, {pipeline_mode = #tpu.pipeline_mode<synchronous>, transform_indices = @transform_3, window_bounds = array<i64: 48, 256>}, {pipeline_mode = #tpu.pipeline_mode<synchronous>, transform_indices = @transform_4, window_bounds = array<i64: 9, 8, 48>}, {pipeline_mode = #tpu.pipeline_mode<synchronous>, transform_indices = @transform_5, window_bounds = array<i64: 8, 256>}, {transform_indices = @transform_6, window_bounds = array<i64: 8, 256>}]} {
    %c0 = arith.constant 0 : index
    %c0_0 = arith.constant 0 : index
    %0 = vector.load %arg2[%c0, %c0_0] : memref<9x256xf32, #tpu.memory_space<vmem>>, vector<9x256xf32>
    %c0_1 = arith.constant 0 : index
    %c0_2 = arith.constant 0 : index
    %1 = vector.load %arg1[%c0_1, %c0_2] : memref<24x256xf32, #tpu.memory_space<vmem>>, vector<24x256xf32>
    %c17_i32 = arith.constant 17 : i32
    %2 = tpu.dynamic_rotate %1 by %c17_i32 dim 1 : vector<24x256xf32>, i32 -> vector<24x256xf32>
    %3 = vector.extract_strided_slice %0 {offsets = [0, 0], sizes = [1, 256], strides = [1, 1]} : vector<9x256xf32> to vector<1x256xf32>
    %4 = vector.broadcast %3 : vector<1x256xf32> to vector<24x256xf32>
    %5 = arith.mulf %2, %4 : vector<24x256xf32>
    %c0_3 = arith.constant 0 : index
    %c0_4 = arith.constant 0 : index
    %c0_5 = arith.constant 0 : index
    %6 = vector.load %arg3[%c0_3, %c0_4, %c0_5] : memref<9x48x24xf32, #tpu.memory_space<vmem>>, vector<1x48x24xf32>
    %7 = vector.shape_cast %6 : vector<1x48x24xf32> to vector<48x24xf32>
    %cst = arith.constant dense<0.000000e+00> : vector<48x256xf32>
    %8 = tpu.matmul %7, %5, %cst {dimension_numbers = #tpu.dot_dimension_numbers<[1], [0], [0], [1], [0, 0, 1, 1], [], []>} : vector<48x24xf32>, vector<24x256xf32>, vector<48x256xf32> -> vector<48x256xf32>
    %c16_i32 = arith.constant 16 : i32
    %9 = tpu.dynamic_rotate %1 by %c16_i32 dim 1 : vector<24x256xf32>, i32 -> vector<24x256xf32>
    %10 = vector.extract_strided_slice %0 {offsets = [1, 0], sizes = [1, 256], strides = [1, 1]} : vector<9x256xf32> to vector<1x256xf32>
    %11 = vector.broadcast %10 : vector<1x256xf32> to vector<24x256xf32>
    %12 = arith.mulf %9, %11 : vector<24x256xf32>
    %c1 = arith.constant 1 : index
    %c0_6 = arith.constant 0 : index
    %c0_7 = arith.constant 0 : index
    %13 = vector.load %arg3[%c1, %c0_6, %c0_7] : memref<9x48x24xf32, #tpu.memory_space<vmem>>, vector<1x48x24xf32>
    %14 = vector.shape_cast %13 : vector<1x48x24xf32> to vector<48x24xf32>
    %cst_8 = arith.constant dense<0.000000e+00> : vector<48x256xf32>
    %15 = tpu.matmul %14, %12, %cst_8 {dimension_numbers = #tpu.dot_dimension_numbers<[1], [0], [0], [1], [0, 0, 1, 1], [], []>} : vector<48x24xf32>, vector<24x256xf32>, vector<48x256xf32> -> vector<48x256xf32>
    %16 = arith.addf %8, %15 : vector<48x256xf32>
    %c15_i32 = arith.constant 15 : i32
    %17 = tpu.dynamic_rotate %1 by %c15_i32 dim 1 : vector<24x256xf32>, i32 -> vector<24x256xf32>
    %18 = vector.extract_strided_slice %0 {offsets = [2, 0], sizes = [1, 256], strides = [1, 1]} : vector<9x256xf32> to vector<1x256xf32>
    %19 = vector.broadcast %18 : vector<1x256xf32> to vector<24x256xf32>
    %20 = arith.mulf %17, %19 : vector<24x256xf32>
    %c2 = arith.constant 2 : index
    %c0_9 = arith.constant 0 : index
    %c0_10 = arith.constant 0 : index
    %21 = vector.load %arg3[%c2, %c0_9, %c0_10] : memref<9x48x24xf32, #tpu.memory_space<vmem>>, vector<1x48x24xf32>
    %22 = vector.shape_cast %21 : vector<1x48x24xf32> to vector<48x24xf32>
    %cst_11 = arith.constant dense<0.000000e+00> : vector<48x256xf32>
    %23 = tpu.matmul %22, %20, %cst_11 {dimension_numbers = #tpu.dot_dimension_numbers<[1], [0], [0], [1], [0, 0, 1, 1], [], []>} : vector<48x24xf32>, vector<24x256xf32>, vector<48x256xf32> -> vector<48x256xf32>
    %24 = arith.addf %16, %23 : vector<48x256xf32>
    %c1_i32 = arith.constant 1 : i32
    %25 = tpu.dynamic_rotate %1 by %c1_i32 dim 1 : vector<24x256xf32>, i32 -> vector<24x256xf32>
    %26 = vector.extract_strided_slice %0 {offsets = [3, 0], sizes = [1, 256], strides = [1, 1]} : vector<9x256xf32> to vector<1x256xf32>
    %27 = vector.broadcast %26 : vector<1x256xf32> to vector<24x256xf32>
    %28 = arith.mulf %25, %27 : vector<24x256xf32>
    %c3 = arith.constant 3 : index
    %c0_12 = arith.constant 0 : index
    %c0_13 = arith.constant 0 : index
    %29 = vector.load %arg3[%c3, %c0_12, %c0_13] : memref<9x48x24xf32, #tpu.memory_space<vmem>>, vector<1x48x24xf32>
    %30 = vector.shape_cast %29 : vector<1x48x24xf32> to vector<48x24xf32>
    %cst_14 = arith.constant dense<0.000000e+00> : vector<48x256xf32>
    %31 = tpu.matmul %30, %28, %cst_14 {dimension_numbers = #tpu.dot_dimension_numbers<[1], [0], [0], [1], [0, 0, 1, 1], [], []>} : vector<48x24xf32>, vector<24x256xf32>, vector<48x256xf32> -> vector<48x256xf32>
    %32 = arith.addf %24, %31 : vector<48x256xf32>
    %c4 = arith.constant 4 : index
    %c0_15 = arith.constant 0 : index
    %c0_16 = arith.constant 0 : index
    %33 = vector.load %arg3[%c4, %c0_15, %c0_16] : memref<9x48x24xf32, #tpu.memory_space<vmem>>, vector<1x48x24xf32>
    %34 = vector.shape_cast %33 : vector<1x48x24xf32> to vector<48x24xf32>
    %cst_17 = arith.constant dense<0.000000e+00> : vector<48x256xf32>
    %35 = tpu.matmul %34, %1, %cst_17 {dimension_numbers = #tpu.dot_dimension_numbers<[1], [0], [0], [1], [0, 0, 1, 1], [], []>} : vector<48x24xf32>, vector<24x256xf32>, vector<48x256xf32> -> vector<48x256xf32>
    %36 = arith.addf %32, %35 : vector<48x256xf32>
    %c255_i32 = arith.constant 255 : i32
    %37 = tpu.dynamic_rotate %1 by %c255_i32 dim 1 : vector<24x256xf32>, i32 -> vector<24x256xf32>
    %38 = vector.extract_strided_slice %0 {offsets = [5, 0], sizes = [1, 256], strides = [1, 1]} : vector<9x256xf32> to vector<1x256xf32>
    %39 = vector.broadcast %38 : vector<1x256xf32> to vector<24x256xf32>
    %40 = arith.mulf %37, %39 : vector<24x256xf32>
    %c5 = arith.constant 5 : index
    %c0_18 = arith.constant 0 : index
    %c0_19 = arith.constant 0 : index
    %41 = vector.load %arg3[%c5, %c0_18, %c0_19] : memref<9x48x24xf32, #tpu.memory_space<vmem>>, vector<1x48x24xf32>
    %42 = vector.shape_cast %41 : vector<1x48x24xf32> to vector<48x24xf32>
    %cst_20 = arith.constant dense<0.000000e+00> : vector<48x256xf32>
    %43 = tpu.matmul %42, %40, %cst_20 {dimension_numbers = #tpu.dot_dimension_numbers<[1], [0], [0], [1], [0, 0, 1, 1], [], []>} : vector<48x24xf32>, vector<24x256xf32>, vector<48x256xf32> -> vector<48x256xf32>
    %44 = arith.addf %36, %43 : vector<48x256xf32>
    %c241_i32 = arith.constant 241 : i32
    %45 = tpu.dynamic_rotate %1 by %c241_i32 dim 1 : vector<24x256xf32>, i32 -> vector<24x256xf32>
    %46 = vector.extract_strided_slice %0 {offsets = [6, 0], sizes = [1, 256], strides = [1, 1]} : vector<9x256xf32> to vector<1x256xf32>
    %47 = vector.broadcast %46 : vector<1x256xf32> to vector<24x256xf32>
    %48 = arith.mulf %45, %47 : vector<24x256xf32>
    %c6 = arith.constant 6 : index
    %c0_21 = arith.constant 0 : index
    %c0_22 = arith.constant 0 : index
    %49 = vector.load %arg3[%c6, %c0_21, %c0_22] : memref<9x48x24xf32, #tpu.memory_space<vmem>>, vector<1x48x24xf32>
    %50 = vector.shape_cast %49 : vector<1x48x24xf32> to vector<48x24xf32>
    %cst_23 = arith.constant dense<0.000000e+00> : vector<48x256xf32>
    %51 = tpu.matmul %50, %48, %cst_23 {dimension_numbers = #tpu.dot_dimension_numbers<[1], [0], [0], [1], [0, 0, 1, 1], [], []>} : vector<48x24xf32>, vector<24x256xf32>, vector<48x256xf32> -> vector<48x256xf32>
    %52 = arith.addf %44, %51 : vector<48x256xf32>
    %c240_i32 = arith.constant 240 : i32
    %53 = tpu.dynamic_rotate %1 by %c240_i32 dim 1 : vector<24x256xf32>, i32 -> vector<24x256xf32>
    %54 = vector.extract_strided_slice %0 {offsets = [7, 0], sizes = [1, 256], strides = [1, 1]} : vector<9x256xf32> to vector<1x256xf32>
    %55 = vector.broadcast %54 : vector<1x256xf32> to vector<24x256xf32>
    %56 = arith.mulf %53, %55 : vector<24x256xf32>
    %c7 = arith.constant 7 : index
    %c0_24 = arith.constant 0 : index
    %c0_25 = arith.constant 0 : index
    %57 = vector.load %arg3[%c7, %c0_24, %c0_25] : memref<9x48x24xf32, #tpu.memory_space<vmem>>, vector<1x48x24xf32>
    %58 = vector.shape_cast %57 : vector<1x48x24xf32> to vector<48x24xf32>
    %cst_26 = arith.constant dense<0.000000e+00> : vector<48x256xf32>
    %59 = tpu.matmul %58, %56, %cst_26 {dimension_numbers = #tpu.dot_dimension_numbers<[1], [0], [0], [1], [0, 0, 1, 1], [], []>} : vector<48x24xf32>, vector<24x256xf32>, vector<48x256xf32> -> vector<48x256xf32>
    %60 = arith.addf %52, %59 : vector<48x256xf32>
    %c239_i32 = arith.constant 239 : i32
    %61 = tpu.dynamic_rotate %1 by %c239_i32 dim 1 : vector<24x256xf32>, i32 -> vector<24x256xf32>
    %62 = vector.extract_strided_slice %0 {offsets = [8, 0], sizes = [1, 256], strides = [1, 1]} : vector<9x256xf32> to vector<1x256xf32>
    %63 = vector.broadcast %62 : vector<1x256xf32> to vector<24x256xf32>
    %64 = arith.mulf %61, %63 : vector<24x256xf32>
    %c8 = arith.constant 8 : index
    %c0_27 = arith.constant 0 : index
    %c0_28 = arith.constant 0 : index
    %65 = vector.load %arg3[%c8, %c0_27, %c0_28] : memref<9x48x24xf32, #tpu.memory_space<vmem>>, vector<1x48x24xf32>
    %66 = vector.shape_cast %65 : vector<1x48x24xf32> to vector<48x24xf32>
    %cst_29 = arith.constant dense<0.000000e+00> : vector<48x256xf32>
    %67 = tpu.matmul %66, %64, %cst_29 {dimension_numbers = #tpu.dot_dimension_numbers<[1], [0], [0], [1], [0, 0, 1, 1], [], []>} : vector<48x24xf32>, vector<24x256xf32>, vector<48x256xf32> -> vector<48x256xf32>
    %68 = arith.addf %60, %67 : vector<48x256xf32>
    %c0_30 = arith.constant 0 : index
    %c0_31 = arith.constant 0 : index
    %69 = vector.load %arg4[%c0_30, %c0_31] : memref<48x256xf32, #tpu.memory_space<vmem>>, vector<48x256xf32>
    %70 = arith.addf %68, %69 : vector<48x256xf32>
    %cst_32 = arith.constant 0.000000e+00 : f32
    %71 = vector.broadcast %cst_32 : f32 to vector<48x256xf32>
    %72 = arith.subf %71, %70 : vector<48x256xf32>
    %73 = math.exp %72 : vector<48x256xf32>
    %cst_33 = arith.constant 1.000000e+00 : f32
    %74 = vector.broadcast %cst_33 : f32 to vector<48x256xf32>
    %75 = arith.addf %74, %73 : vector<48x256xf32>
    %76 = tpu.reciprocal %75 {approx = true} : vector<48x256xf32> -> vector<48x256xf32>
    %c17_i32_34 = arith.constant 17 : i32
    %77 = tpu.dynamic_rotate %76 by %c17_i32_34 dim 1 : vector<48x256xf32>, i32 -> vector<48x256xf32>
    %78 = vector.extract_strided_slice %0 {offsets = [0, 0], sizes = [1, 256], strides = [1, 1]} : vector<9x256xf32> to vector<1x256xf32>
    %79 = vector.broadcast %78 : vector<1x256xf32> to vector<48x256xf32>
    %80 = arith.mulf %77, %79 : vector<48x256xf32>
    %c0_35 = arith.constant 0 : index
    %c0_36 = arith.constant 0 : index
    %c0_37 = arith.constant 0 : index
    %81 = vector.load %arg5[%c0_35, %c0_36, %c0_37] : memref<9x8x48xf32, #tpu.memory_space<vmem>>, vector<1x8x48xf32>
    %82 = vector.shape_cast %81 : vector<1x8x48xf32> to vector<8x48xf32>
    %cst_38 = arith.constant dense<0.000000e+00> : vector<8x256xf32>
    %83 = tpu.matmul %82, %80, %cst_38 {dimension_numbers = #tpu.dot_dimension_numbers<[1], [0], [0], [1], [0, 0, 1, 1], [], []>} : vector<8x48xf32>, vector<48x256xf32>, vector<8x256xf32> -> vector<8x256xf32>
    %c16_i32_39 = arith.constant 16 : i32
    %84 = tpu.dynamic_rotate %76 by %c16_i32_39 dim 1 : vector<48x256xf32>, i32 -> vector<48x256xf32>
    %85 = vector.extract_strided_slice %0 {offsets = [1, 0], sizes = [1, 256], strides = [1, 1]} : vector<9x256xf32> to vector<1x256xf32>
    %86 = vector.broadcast %85 : vector<1x256xf32> to vector<48x256xf32>
    %87 = arith.mulf %84, %86 : vector<48x256xf32>
    %c1_40 = arith.constant 1 : index
    %c0_41 = arith.constant 0 : index
    %c0_42 = arith.constant 0 : index
    %88 = vector.load %arg5[%c1_40, %c0_41, %c0_42] : memref<9x8x48xf32, #tpu.memory_space<vmem>>, vector<1x8x48xf32>
    %89 = vector.shape_cast %88 : vector<1x8x48xf32> to vector<8x48xf32>
    %cst_43 = arith.constant dense<0.000000e+00> : vector<8x256xf32>
    %90 = tpu.matmul %89, %87, %cst_43 {dimension_numbers = #tpu.dot_dimension_numbers<[1], [0], [0], [1], [0, 0, 1, 1], [], []>} : vector<8x48xf32>, vector<48x256xf32>, vector<8x256xf32> -> vector<8x256xf32>
    %91 = arith.addf %83, %90 : vector<8x256xf32>
    %c15_i32_44 = arith.constant 15 : i32
    %92 = tpu.dynamic_rotate %76 by %c15_i32_44 dim 1 : vector<48x256xf32>, i32 -> vector<48x256xf32>
    %93 = vector.extract_strided_slice %0 {offsets = [2, 0], sizes = [1, 256], strides = [1, 1]} : vector<9x256xf32> to vector<1x256xf32>
    %94 = vector.broadcast %93 : vector<1x256xf32> to vector<48x256xf32>
    %95 = arith.mulf %92, %94 : vector<48x256xf32>
    %c2_45 = arith.constant 2 : index
    %c0_46 = arith.constant 0 : index
    %c0_47 = arith.constant 0 : index
    %96 = vector.load %arg5[%c2_45, %c0_46, %c0_47] : memref<9x8x48xf32, #tpu.memory_space<vmem>>, vector<1x8x48xf32>
    %97 = vector.shape_cast %96 : vector<1x8x48xf32> to vector<8x48xf32>
    %cst_48 = arith.constant dense<0.000000e+00> : vector<8x256xf32>
    %98 = tpu.matmul %97, %95, %cst_48 {dimension_numbers = #tpu.dot_dimension_numbers<[1], [0], [0], [1], [0, 0, 1, 1], [], []>} : vector<8x48xf32>, vector<48x256xf32>, vector<8x256xf32> -> vector<8x256xf32>
    %99 = arith.addf %91, %98 : vector<8x256xf32>
    %c1_i32_49 = arith.constant 1 : i32
    %100 = tpu.dynamic_rotate %76 by %c1_i32_49 dim 1 : vector<48x256xf32>, i32 -> vector<48x256xf32>
    %101 = vector.extract_strided_slice %0 {offsets = [3, 0], sizes = [1, 256], strides = [1, 1]} : vector<9x256xf32> to vector<1x256xf32>
    %102 = vector.broadcast %101 : vector<1x256xf32> to vector<48x256xf32>
    %103 = arith.mulf %100, %102 : vector<48x256xf32>
    %c3_50 = arith.constant 3 : index
    %c0_51 = arith.constant 0 : index
    %c0_52 = arith.constant 0 : index
    %104 = vector.load %arg5[%c3_50, %c0_51, %c0_52] : memref<9x8x48xf32, #tpu.memory_space<vmem>>, vector<1x8x48xf32>
    %105 = vector.shape_cast %104 : vector<1x8x48xf32> to vector<8x48xf32>
    %cst_53 = arith.constant dense<0.000000e+00> : vector<8x256xf32>
    %106 = tpu.matmul %105, %103, %cst_53 {dimension_numbers = #tpu.dot_dimension_numbers<[1], [0], [0], [1], [0, 0, 1, 1], [], []>} : vector<8x48xf32>, vector<48x256xf32>, vector<8x256xf32> -> vector<8x256xf32>
    %107 = arith.addf %99, %106 : vector<8x256xf32>
    %c4_54 = arith.constant 4 : index
    %c0_55 = arith.constant 0 : index
    %c0_56 = arith.constant 0 : index
    %108 = vector.load %arg5[%c4_54, %c0_55, %c0_56] : memref<9x8x48xf32, #tpu.memory_space<vmem>>, vector<1x8x48xf32>
    %109 = vector.shape_cast %108 : vector<1x8x48xf32> to vector<8x48xf32>
    %cst_57 = arith.constant dense<0.000000e+00> : vector<8x256xf32>
    %110 = tpu.matmul %109, %76, %cst_57 {dimension_numbers = #tpu.dot_dimension_numbers<[1], [0], [0], [1], [0, 0, 1, 1], [], []>} : vector<8x48xf32>, vector<48x256xf32>, vector<8x256xf32> -> vector<8x256xf32>
    %111 = arith.addf %107, %110 : vector<8x256xf32>
    %c255_i32_58 = arith.constant 255 : i32
    %112 = tpu.dynamic_rotate %76 by %c255_i32_58 dim 1 : vector<48x256xf32>, i32 -> vector<48x256xf32>
    %113 = vector.extract_strided_slice %0 {offsets = [5, 0], sizes = [1, 256], strides = [1, 1]} : vector<9x256xf32> to vector<1x256xf32>
    %114 = vector.broadcast %113 : vector<1x256xf32> to vector<48x256xf32>
    %115 = arith.mulf %112, %114 : vector<48x256xf32>
    %c5_59 = arith.constant 5 : index
    %c0_60 = arith.constant 0 : index
    %c0_61 = arith.constant 0 : index
    %116 = vector.load %arg5[%c5_59, %c0_60, %c0_61] : memref<9x8x48xf32, #tpu.memory_space<vmem>>, vector<1x8x48xf32>
    %117 = vector.shape_cast %116 : vector<1x8x48xf32> to vector<8x48xf32>
    %cst_62 = arith.constant dense<0.000000e+00> : vector<8x256xf32>
    %118 = tpu.matmul %117, %115, %cst_62 {dimension_numbers = #tpu.dot_dimension_numbers<[1], [0], [0], [1], [0, 0, 1, 1], [], []>} : vector<8x48xf32>, vector<48x256xf32>, vector<8x256xf32> -> vector<8x256xf32>
    %119 = arith.addf %111, %118 : vector<8x256xf32>
    %c241_i32_63 = arith.constant 241 : i32
    %120 = tpu.dynamic_rotate %76 by %c241_i32_63 dim 1 : vector<48x256xf32>, i32 -> vector<48x256xf32>
    %121 = vector.extract_strided_slice %0 {offsets = [6, 0], sizes = [1, 256], strides = [1, 1]} : vector<9x256xf32> to vector<1x256xf32>
    %122 = vector.broadcast %121 : vector<1x256xf32> to vector<48x256xf32>
    %123 = arith.mulf %120, %122 : vector<48x256xf32>
    %c6_64 = arith.constant 6 : index
    %c0_65 = arith.constant 0 : index
    %c0_66 = arith.constant 0 : index
    %124 = vector.load %arg5[%c6_64, %c0_65, %c0_66] : memref<9x8x48xf32, #tpu.memory_space<vmem>>, vector<1x8x48xf32>
    %125 = vector.shape_cast %124 : vector<1x8x48xf32> to vector<8x48xf32>
    %cst_67 = arith.constant dense<0.000000e+00> : vector<8x256xf32>
    %126 = tpu.matmul %125, %123, %cst_67 {dimension_numbers = #tpu.dot_dimension_numbers<[1], [0], [0], [1], [0, 0, 1, 1], [], []>} : vector<8x48xf32>, vector<48x256xf32>, vector<8x256xf32> -> vector<8x256xf32>
    %127 = arith.addf %119, %126 : vector<8x256xf32>
    %c240_i32_68 = arith.constant 240 : i32
    %128 = tpu.dynamic_rotate %76 by %c240_i32_68 dim 1 : vector<48x256xf32>, i32 -> vector<48x256xf32>
    %129 = vector.extract_strided_slice %0 {offsets = [7, 0], sizes = [1, 256], strides = [1, 1]} : vector<9x256xf32> to vector<1x256xf32>
    %130 = vector.broadcast %129 : vector<1x256xf32> to vector<48x256xf32>
    %131 = arith.mulf %128, %130 : vector<48x256xf32>
    %c7_69 = arith.constant 7 : index
    %c0_70 = arith.constant 0 : index
    %c0_71 = arith.constant 0 : index
    %132 = vector.load %arg5[%c7_69, %c0_70, %c0_71] : memref<9x8x48xf32, #tpu.memory_space<vmem>>, vector<1x8x48xf32>
    %133 = vector.shape_cast %132 : vector<1x8x48xf32> to vector<8x48xf32>
    %cst_72 = arith.constant dense<0.000000e+00> : vector<8x256xf32>
    %134 = tpu.matmul %133, %131, %cst_72 {dimension_numbers = #tpu.dot_dimension_numbers<[1], [0], [0], [1], [0, 0, 1, 1], [], []>} : vector<8x48xf32>, vector<48x256xf32>, vector<8x256xf32> -> vector<8x256xf32>
    %135 = arith.addf %127, %134 : vector<8x256xf32>
    %c239_i32_73 = arith.constant 239 : i32
    %136 = tpu.dynamic_rotate %76 by %c239_i32_73 dim 1 : vector<48x256xf32>, i32 -> vector<48x256xf32>
    %137 = vector.extract_strided_slice %0 {offsets = [8, 0], sizes = [1, 256], strides = [1, 1]} : vector<9x256xf32> to vector<1x256xf32>
    %138 = vector.broadcast %137 : vector<1x256xf32> to vector<48x256xf32>
    %139 = arith.mulf %136, %138 : vector<48x256xf32>
    %c8_74 = arith.constant 8 : index
    %c0_75 = arith.constant 0 : index
    %c0_76 = arith.constant 0 : index
    %140 = vector.load %arg5[%c8_74, %c0_75, %c0_76] : memref<9x8x48xf32, #tpu.memory_space<vmem>>, vector<1x8x48xf32>
    %141 = vector.shape_cast %140 : vector<1x8x48xf32> to vector<8x48xf32>
    %cst_77 = arith.constant dense<0.000000e+00> : vector<8x256xf32>
    %142 = tpu.matmul %141, %139, %cst_77 {dimension_numbers = #tpu.dot_dimension_numbers<[1], [0], [0], [1], [0, 0, 1, 1], [], []>} : vector<8x48xf32>, vector<48x256xf32>, vector<8x256xf32> -> vector<8x256xf32>
    %143 = arith.addf %135, %142 : vector<8x256xf32>
    %c0_78 = arith.constant 0 : index
    %c0_79 = arith.constant 0 : index
    %144 = vector.load %arg6[%c0_78, %c0_79] : memref<8x256xf32, #tpu.memory_space<vmem>>, vector<8x256xf32>
    %145 = arith.addf %143, %144 : vector<8x256xf32>
    %cst_80 = arith.constant 0.000000e+00 : f32
    %146 = vector.broadcast %cst_80 : f32 to vector<8x256xf32>
    %147 = arith.subf %146, %145 : vector<8x256xf32>
    %148 = math.exp %147 : vector<8x256xf32>
    %cst_81 = arith.constant 1.000000e+00 : f32
    %149 = vector.broadcast %cst_81 : f32 to vector<8x256xf32>
    %150 = arith.addf %149, %148 : vector<8x256xf32>
    %151 = tpu.reciprocal %150 {approx = true} : vector<8x256xf32> -> vector<8x256xf32>
    %c0_82 = arith.constant 0 : index
    %c0_83 = arith.constant 0 : index
    %152 = vector.load %arg7[%c0_82, %c0_83] : memref<8x256xf32, #tpu.memory_space<vmem>>, vector<8x256xf32>
    tpu.vector_store %arg7[%c0_82, %c0_83], %151 {strides = array<i32>} : memref<8x256xf32, #tpu.memory_space<vmem>>, vector<8x256xf32>,
    return
  }
  func.func @transform_0(%arg0: i32) -> (i32, i32) {
    %c0_i32 = arith.constant 0 : i32
    %c0_i32_0 = arith.constant 0 : i32
    return %c0_i32, %arg0 : i32, i32
  }
  func.func @transform_1(%arg0: i32) -> (i32, i32) {
    %c0_i32 = arith.constant 0 : i32
    %c0_i32_0 = arith.constant 0 : i32
    %c0_i32_1 = arith.constant 0 : i32
    return %c0_i32, %c0_i32_0 : i32, i32
  }
  func.func @transform_2(%arg0: i32) -> (i32, i32, i32) {
    %c0_i32 = arith.constant 0 : i32
    %c0_i32_0 = arith.constant 0 : i32
    %c0_i32_1 = arith.constant 0 : i32
    %c0_i32_2 = arith.constant 0 : i32
    return %c0_i32, %c0_i32_0, %c0_i32_1 : i32, i32, i32
  }
  func.func @transform_3(%arg0: i32) -> (i32, i32) {
    %c0_i32 = arith.constant 0 : i32
    %c0_i32_0 = arith.constant 0 : i32
    %c0_i32_1 = arith.constant 0 : i32
    return %c0_i32, %c0_i32_0 : i32, i32
  }
  func.func @transform_4(%arg0: i32) -> (i32, i32, i32) {
    %c0_i32 = arith.constant 0 : i32
    %c0_i32_0 = arith.constant 0 : i32
    %c0_i32_1 = arith.constant 0 : i32
    %c0_i32_2 = arith.constant 0 : i32
    return %c0_i32, %c0_i32_0, %c0_i32_1 : i32, i32, i32
  }
  func.func @transform_5(%arg0: i32) -> (i32, i32) {
    %c0_i32 = arith.constant 0 : i32
    %c0_i32_0 = arith.constant 0 : i32
    %c0_i32_1 = arith.constant 0 : i32
    return %c0_i32, %c0_i32_0 : i32, i32
  }
  func.func @transform_6(%arg0: i32) -> (i32, i32) {
    %c0_i32 = arith.constant 0 : i32
    %c0_i32_0 = arith.constant 0 : i32
    return %c0_i32, %arg0 : i32, i32
  }
}

</mosaic_0001>

<llo_original>
// kernel: model_forward.1
$region0: #{model_forward.1}
  #allocation0 [shape = 'u32[]', space=smem, size = 0x4, offset = 0x4, fixed_abs, tag = 'smem constant byte address 0x4 - core index']
  #allocation1 [shape = 'u32[144,128]{1,0:T(1,128)}', space=vmem, size = 0x12000, scoped, tag = 'internal scratch']
  %s0 = inlined_call_operand.vmem [shape: f32[24,512], index: 0, kind: input, shape index: {}]
  %s1 = inlined_call_operand.vmem [shape: f32[9,256], index: 1, kind: input, shape index: {}]
  %s2 = inlined_call_operand.vmem [shape: f32[9,48,24], index: 2, kind: input, shape index: {}]
  %s3 = inlined_call_operand.vmem [shape: f32[48,256], index: 3, kind: input, shape index: {}]
  %s4 = inlined_call_operand.vmem [shape: f32[9,8,48], index: 4, kind: input, shape index: {}]
  %s5 = inlined_call_operand.vmem [shape: f32[8,256], index: 5, kind: input, shape index: {}]
  %s6 = inlined_call_operand.vmem [shape: f32[8,512], index: 6, kind: output, shape index: {}]
  %s7 = sld [smem:[#allocation0]]
  $region80: #{model_forward.1} parent=0
    _
  %s9 = ssub.s32 1, %s7
  %s10 = scalar_select 0, %s9, %s7
  $region1: #{model_forward.1} parent=0
    #allocation2 [shape = 'u8[49152]{0}', space=vmem, size = 0xc000, scoped, tag = 'input window, operand 0']
    loop: start=0, step=1, limit=4
    $region2: #{model_forward.1} parent=1 // loop_pre_header
      _
    $region3: #{model_forward.1} parent=1 // loop_header
      %s12 = sphi 0, %s16
      %p13 = scmp.ge.s32.totalorder %s12, 4
      %s22 = sphi 0, %s24
      %s25 = sphi 0, %s22
      %s26 = sphi 0, %s25
      %s42 = sphi 0, %s26
      %s46 = sphi 0, %s46
      %s48 = sphi 0, %s46
      %s49 = sphi 0, %s48
      %s63 = sphi 0, %s49
      %s67 = sphi 0, %s67
      %s69 = sphi 0, %s67
      %s70 = sphi 0, %s69
      %s84 = sphi 0, %s70
      %s88 = sphi 0, %s88
      %s90 = sphi 0, %s88
      %s91 = sphi 0, %s90
      %s105 = sphi 0, %s91
      %s109 = sphi 0, %s109
      %s111 = sphi 0, %s109
      %s112 = sphi 0, %s111
      %s126 = sphi 0, %s112
      %s130 = sphi 0, %s130
      %s132 = sphi 0, %s130
      %s133 = sphi 0, %s132
      %s147 = sphi 0, %s133
      %s153 = sphi 0, %s155
      %s156 = sphi 0, %s153
      %s157 = sphi 0, %s156
      %s173 = sphi 0, %s157
    $region4: #{model_forward.1} parent=1 // loop_header_branch
      %15 = sbr.rel (%p13) target = $region8
    $region5: #{model_forward.1} parent=1 // loop_body
      %s17 = ssub.s32 %s12, 1
      %s18 = ssub.s32 %s12, 2
      %s19 = sadd.s32 %s12, 1
      %s20 = ssub.s32 %s12, %s19
      %p21 = scmp.eq.s32.totalorder %s20, 0
      %s23 = sadd.s32 %s22, 1
      %s24 = scalar_select %p21, %s22, %s23
      %p27 = pneg %p21
      %p28 = scmp.eq.s32.totalorder %s12, 1
      %p29 = por %p27, %p28
      %p30 = scmp.ne.s32.totalorder %s22, %s25
      %p31 = scmp.eq.s32.totalorder %s12, 0
      %p32 = por %p30, %p31
      %p33 = scmp.ne.s32.totalorder %s22, %s25
      %p34 = scmp.eq.s32.totalorder %s17, 1
      %p35 = por %p33, %p34
      %p36 = scmp.ne.s32.totalorder %s25, %s26
      %p37 = scmp.eq.s32.totalorder %s17, 0
      %p38 = por %p36, %p37
      %p39 = scmp.ne.s32.totalorder %s25, %s26
      %p40 = scmp.eq.s32.totalorder %s18, 1
      %p41 = por %p39, %p40
      %p43 = scmp.ne.s32.totalorder %s26, %s42
      %p44 = scmp.eq.s32.totalorder %s18, 0
      %p45 = por %p43, %p44
      %s47 = sadd.s32 %s46, 1
      %p50 = scmp.eq.s32.totalorder %s12, 1
      %p51 = scmp.ne.s32.totalorder %s46, %s48
      %p52 = scmp.eq.s32.totalorder %s12, 0
      %p53 = por %p51, %p52
      %p54 = scmp.ne.s32.totalorder %s46, %s48
      %p55 = scmp.eq.s32.totalorder %s17, 1
      %p56 = por %p54, %p55
      %p57 = scmp.ne.s32.totalorder %s48, %s49
      %p58 = scmp.eq.s32.totalorder %s17, 0
      %p59 = por %p57, %p58
      %p60 = scmp.ne.s32.totalorder %s48, %s49
      %p61 = scmp.eq.s32.totalorder %s18, 1
      %p62 = por %p60, %p61
      %p64 = scmp.ne.s32.totalorder %s49, %s63
      %p65 = scmp.eq.s32.totalorder %s18, 0
      %p66 = por %p64, %p65
      %s68 = sadd.s32 %s67, 1
      %p71 = scmp.eq.s32.totalorder %s12, 1
      %p72 = scmp.ne.s32.totalorder %s67, %s69
      %p73 = scmp.eq.s32.totalorder %s12, 0
      %p74 = por %p72, %p73
      %p75 = scmp.ne.s32.totalorder %s67, %s69
      %p76 = scmp.eq.s32.totalorder %s17, 1
      %p77 = por %p75, %p76
      %p78 = scmp.ne.s32.totalorder %s69, %s70
      %p79 = scmp.eq.s32.totalorder %s17, 0
      %p80 = por %p78, %p79
      %p81 = scmp.ne.s32.totalorder %s69, %s70
      %p82 = scmp.eq.s32.totalorder %s18, 1
      %p83 = por %p81, %p82
      %p85 = scmp.ne.s32.totalorder %s70, %s84
      %p86 = scmp.eq.s32.totalorder %s18, 0
      %p87 = por %p85, %p86
      %s89 = sadd.s32 %s88, 1
      %p92 = scmp.eq.s32.totalorder %s12, 1
      %p93 = scmp.ne.s32.totalorder %s88, %s90
      %p94 = scmp.eq.s32.totalorder %s12, 0
      %p95 = por %p93, %p94
      %p96 = scmp.ne.s32.totalorder %s88, %s90
      %p97 = scmp.eq.s32.totalorder %s17, 1
      %p98 = por %p96, %p97
      %p99 = scmp.ne.s32.totalorder %s90, %s91
      %p100 = scmp.eq.s32.totalorder %s17, 0
      %p101 = por %p99, %p100
      %p102 = scmp.ne.s32.totalorder %s90, %s91
      %p103 = scmp.eq.s32.totalorder %s18, 1
      %p104 = por %p102, %p103
      %p106 = scmp.ne.s32.totalorder %s91, %s105
      %p107 = scmp.eq.s32.totalorder %s18, 0
      %p108 = por %p106, %p107
      %s110 = sadd.s32 %s109, 1
      %p113 = scmp.eq.s32.totalorder %s12, 1
      %p114 = scmp.ne.s32.totalorder %s109, %s111
      %p115 = scmp.eq.s32.totalorder %s12, 0
      %p116 = por %p114, %p115
      %p117 = scmp.ne.s32.totalorder %s109, %s111
      %p118 = scmp.eq.s32.totalorder %s17, 1
      %p119 = por %p117, %p118
      %p120 = scmp.ne.s32.totalorder %s111, %s112
      %p121 = scmp.eq.s32.totalorder %s17, 0
      %p122 = por %p120, %p121
      %p123 = scmp.ne.s32.totalorder %s111, %s112
      %p124 = scmp.eq.s32.totalorder %s18, 1
      %p125 = por %p123, %p124
      %p127 = scmp.ne.s32.totalorder %s112, %s126
      %p128 = scmp.eq.s32.totalorder %s18, 0
      %p129 = por %p127, %p128
      %s131 = sadd.s32 %s130, 1
      %p134 = scmp.eq.s32.totalorder %s12, 1
      %p135 = scmp.ne.s32.totalorder %s130, %s132
      %p136 = scmp.eq.s32.totalorder %s12, 0
      %p137 = por %p135, %p136
      %p138 = scmp.ne.s32.totalorder %s130, %s132
      %p139 = scmp.eq.s32.totalorder %s17, 1
      %p140 = por %p138, %p139
      %p141 = scmp.ne.s32.totalorder %s132, %s133
      %p142 = scmp.eq.s32.totalorder %s17, 0
      %p143 = por %p141, %p142
      %p144 = scmp.ne.s32.totalorder %s132, %s133
      %p145 = scmp.eq.s32.totalorder %s18, 1
      %p146 = por %p144, %p145
      %p148 = scmp.ne.s32.totalorder %s133, %s147
      %p149 = scmp.eq.s32.totalorder %s18, 0
      %p150 = por %p148, %p149
      %s151 = ssub.s32 %s12, %s19
      %p152 = scmp.eq.s32.totalorder %s151, 0
      %s154 = sadd.s32 %s153, 1
      %s155 = scalar_select %p152, %s153, %s154
      %p158 = pneg %p152
      %p159 = scmp.eq.s32.totalorder %s12, 1
      %p160 = por %p158, %p159
      %p161 = scmp.ne.s32.totalorder %s153, %s156
      %p162 = scmp.eq.s32.totalorder %s12, 0
      %p163 = por %p161, %p162
      %p164 = scmp.ne.s32.totalorder %s153, %s156
      %p165 = scmp.eq.s32.totalorder %s17, 1
      %p166 = por %p164, %p165
      %p167 = scmp.ne.s32.totalorder %s156, %s157
      %p168 = scmp.eq.s32.totalorder %s17, 0
      %p169 = por %p167, %p168
      %p170 = scmp.ne.s32.totalorder %s156, %s157
      %p171 = scmp.eq.s32.totalorder %s18, 1
      %p172 = por %p170, %p171
      %p174 = scmp.ne.s32.totalorder %s157, %s173
      %p175 = scmp.eq.s32.totalorder %s18, 0
      %p176 = por %p174, %p175
      %p177 = scmp.le.s32.totalorder 1, %s12
      %p178 = scmp.lt.s32.totalorder %s12, 3
      %p179 = pnand %p177, %p178
      %p180 = pneg %p179
      // Predicated region
      $region9: #{model_forward.1} parent=5 // pred_check
        _
      $region10: #{model_forward.1} parent=5 // pred_check_branch
        %182 = sbr.rel (%p179) target = $region12
      $region11: #{model_forward.1} parent=5 // pred_region
        %s183 = ssub.s32 %s12, 1
        // Predicated region
        $region13: #{model_forward.1} parent=11 // pred_check
          %p184 = pneg %p59
        $region14: #{model_forward.1} parent=11 // pred_check_branch
          %186 = sbr.rel (%p184) target = $region16
        $region15: #{model_forward.1} parent=11 // pred_region
          _
        $region16: #{model_forward.1} parent=11 // pred_fallthru
          _
        // Predicated region
        $region17: #{model_forward.1} parent=11 // pred_check
          %p187 = pneg %p80
        $region18: #{model_forward.1} parent=11 // pred_check_branch
          %189 = sbr.rel (%p187) target = $region20
        $region19: #{model_forward.1} parent=11 // pred_region
          _
        $region20: #{model_forward.1} parent=11 // pred_fallthru
          _
        // Predicated region
        $region21: #{model_forward.1} parent=11 // pred_check
          %p190 = pneg %p101
        $region22: #{model_forward.1} parent=11 // pred_check_branch
          %192 = sbr.rel (%p190) target = $region24
        $region23: #{model_forward.1} parent=11 // pred_region
          _
        $region24: #{model_forward.1} parent=11 // pred_fallthru
          _
        // Predicated region
        $region25: #{model_forward.1} parent=11 // pred_check
          %p193 = pneg %p122
        $region26: #{model_forward.1} parent=11 // pred_check_branch
          %195 = sbr.rel (%p193) target = $region28
        $region27: #{model_forward.1} parent=11 // pred_region
          _
        $region28: #{model_forward.1} parent=11 // pred_fallthru
          _
        // Predicated region
        $region29: #{model_forward.1} parent=11 // pred_check
          %p196 = pneg %p143
        $region30: #{model_forward.1} parent=11 // pred_check_branch
          %198 = sbr.rel (%p196) target = $region32
        $region31: #{model_forward.1} parent=11 // pred_region
          _
        $region32: #{model_forward.1} parent=11 // pred_fallthru
          _
      $region12: #{model_forward.1} parent=5 // pred_fallthru
        _
      %p199 = scmp.lt.s32.totalorder %s12, 2
      // Predicated region
      $region33: #{model_forward.1} parent=5 // pred_check
        %p200 = pneg %p199
      $region34: #{model_forward.1} parent=5 // pred_check_branch
        %202 = sbr.rel (%p200) target = $region36
      $region35: #{model_forward.1} parent=5 // pred_region
        // Predicated region
        $region37: #{model_forward.1} parent=35 // pred_check
          %p203 = pneg %p32
        $region38: #{model_forward.1} parent=35 // pred_check_branch
          %205 = sbr.rel (%p203) target = $region40
        $region39: #{model_forward.1} parent=35 // pred_region
          %s206 = sand.u32 %s22, 1
          %s207 = sand.u32 %s22, 1
          %s208 = smul.addr %s207, 48
          %s209 = scalar_lea.vmem [#allocation2], %s208
          %s210 = smul.u32 2, %s12
          %s211 = smul.addr %s210, 8
          %s212 = scalar_lea.vmem %s0, %s211
          // Predicated region
          $region41: #{model_forward.1} parent=39 // pred_check
            _
          $region42: #{model_forward.1} parent=39 // pred_check_branch
            %214 = sbr.rel (0) target = $region44
          $region43: #{model_forward.1} parent=39 // pred_region
            // Predicated region
            $region45: #{model_forward.1} parent=43 // pred_check
              _
            $region46: #{model_forward.1} parent=43 // pred_check_branch
              %216 = sbr.rel (0) target = $region48
            $region47: #{model_forward.1} parent=43 // pred_region
              loop: start=0, step=1, limit=1
              $region49: #{model_forward.1} parent=47 // loop_pre_header
                _
              $region50: #{model_forward.1} parent=47 // loop_header
                %s218 = sphi 0, %s222
                %p219 = scmp.ge.s32.totalorder %s218, 1
                %s223 = sphi %s212, %s212
                %s224 = sphi %s209, %s209
              $region51: #{model_forward.1} parent=47 // loop_header_branch
                %221 = sbr.rel (%p219) target = $region55
              $region52: #{model_forward.1} parent=47 // loop_body
                %v225 = vld [vmem:[%s223] sm:$0xff]
                %226 = vst [vmem:[%s224] sm:$0xff] %v225
                %v227 = vld [vmem:[%s223 + $0x8] sm:$0xff]
                %228 = vst [vmem:[%s224 + $0x8] sm:$0xff] %v227
                %v229 = vld [vmem:[%s223 + $0x20] sm:$0xff]
                %230 = vst [vmem:[%s224 + $0x10] sm:$0xff] %v229
                %v231 = vld [vmem:[%s223 + $0x28] sm:$0xff]
                %232 = vst [vmem:[%s224 + $0x18] sm:$0xff] %v231
                %v233 = vld [vmem:[%s223 + $0x40] sm:$0xff]
                %234 = vst [vmem:[%s224 + $0x20] sm:$0xff] %v233
                %v235 = vld [vmem:[%s223 + $0x48] sm:$0xff]
                %236 = vst [vmem:[%s224 + $0x28] sm:$0xff] %v235
              $region53: #{model_forward.1} parent=47 // loop_footer
                %s222 = sadd.s32 1, %s218
              $region54: #{model_forward.1} parent=47 // loop_footer_branch
                %217 = sbr.rel target = $region50
              $region55: #{model_forward.1} parent=47 // loop_exit
                _
            $region48: #{model_forward.1} parent=43 // pred_fallthru
              _
            // Predicated region
            $region56: #{model_forward.1} parent=43 // pred_check
              _
            $region57: #{model_forward.1} parent=43 // pred_check_branch
              %238 = sbr.rel target = $region59
            $region58: #{model_forward.1} parent=43 // pred_region
              _
            $region59: #{model_forward.1} parent=43 // pred_fallthru
              _
          $region44: #{model_forward.1} parent=39 // pred_fallthru
            _
          %239 = vnop
        $region40: #{model_forward.1} parent=35 // pred_fallthru
          _
      $region36: #{model_forward.1} parent=5 // pred_fallthru
        _
      %p240 = scmp.le.s32.totalorder 1, %s12
      %p241 = scmp.lt.s32.totalorder %s12, 3
      %p242 = pnand %p240, %p241
      %p243 = pneg %p242
      // Predicated region
      $region60: #{model_forward.1} parent=5 // pred_check
        _
      $region61: #{model_forward.1} parent=5 // pred_check_branch
        %245 = sbr.rel (%p242) target = $region63
      $region62: #{model_forward.1} parent=5 // pred_region
        %s246 = ssub.s32 %s12, 1
        %s247 = sand.u32 %s25, 1
        %s248 = sand.u32 %s25, 1
        %s249 = smul.addr %s248, 48
        %s250 = scalar_lea.vmem [#allocation2], %s249
        // Predicated region
        $region64: #{model_forward.1} parent=62 // pred_check
          %p251 = pneg %p38
        $region65: #{model_forward.1} parent=62 // pred_check_branch
          %253 = sbr.rel (%p251) target = $region67
        $region66: #{model_forward.1} parent=62 // pred_region
          _
        $region67: #{model_forward.1} parent=62 // pred_fallthru
          _
        %s254 = sand.u32 %s25, 1
        %s255 = sand.u32 %s25, 1
        %s256 = smul.addr %s255, 48
        %s257 = scalar_lea.vmem [#allocation2], %s256
        %p258 = pneg %p38
        %p259 = pneg %p35
        %p260 = pneg %p59
        %p261 = pneg %p56
        %p262 = pneg %p80
        %p263 = pneg %p77
        %p264 = pneg %p101
        %p265 = pneg %p98
        %p266 = pneg %p122
        %p267 = pneg %p119
        %p268 = pneg %p143
        %p269 = pneg %p140
        %p270 = pneg %p169
        %p271 = pneg %p166
        %s272 = smul.u32 2, %s17
        %p273 = scmp.lt.s32.totalorder %s272, 3
        %s274 = scalar_select %p273, %s272, 3
        %s275 = smul.addr %s274, 8
        %s276 = scalar_lea.vmem %s6, %s275
        %s277 = smul.u32 2, %s17
        %s278 = smul.u32 2, %s17
        %p279 = scmp.lt.s32.totalorder %s278, 3
        %s280 = scalar_select %p279, %s278, 3
        %s281 = smul.addr %s280, 8
        %s282 = scalar_lea.vmem %s6, %s281
        %s283 = smul.u32 2, %s17
        %v284 = vld [vmem:[%s1] sm:$0xff]
        %v285 = vld [vmem:[%s1 + $0x8] sm:$0xff]
        %v286 = vld [vmem:[%s1 + $0x10] sm:$0x1]
        %v287 = vld [vmem:[%s1 + $0x18] sm:$0x1]
        %v288 = vld [vmem:[%s250] sm:$0xff]
        %v289 = vld [vmem:[%s250 + $0x8] sm:$0xff]
        %v290 = vld [vmem:[%s250 + $0x10] sm:$0xff]
        %v291 = vld [vmem:[%s250 + $0x18] sm:$0xff]
        %v292 = vld [vmem:[%s250 + $0x20] sm:$0xff]
        %v293 = vld [vmem:[%s250 + $0x28] sm:$0xff]
        %294 = vrot.lane.b32.xlu0 %v288, 17
        %v295 = vpop.permute.xlu0 %294
        %296 = vrot.lane.b32.xlu0 %v290, 17
        %v297 = vpop.permute.xlu0 %296
        %298 = vrot.lane.b32.xlu0 %v292, 17
        %v299 = vpop.permute.xlu0 %298
        %300 = vrot.lane.b32.xlu0 %v289, 17
        %v301 = vpop.permute.xlu0 %300
        %302 = vrot.lane.b32.xlu0 %v291, 17
        %v303 = vpop.permute.xlu0 %302
        %304 = vrot.lane.b32.xlu0 %v293, 17
        %v305 = vpop.permute.xlu0 %304
        %v306 = vlaneseq
        %v307 = vand.u32 %v306, 127
        %vm308 = vcmp.lt.s32.totalorder %v307, 17
        %v309 = vsel %vm308, %v295, %v301
        %v310 = vsel %vm308, %v297, %v303
        %v311 = vsel %vm308, %v299, %v305
        %v312 = vsel %vm308, %v301, %v295
        %v313 = vsel %vm308, %v303, %v297
        %v314 = vsel %vm308, %v305, %v299
        %v315 = vlaneseq
        %v316 = vshrl.u32 %v315, 7
        %v317 = vsub.s32 0, %v316
        %v318 = vrot.slane %v284, %v317
        %v319 = vlaneseq
        %v320 = vshrl.u32 %v319, 7
        %v321 = vsub.s32 0, %v320
        %v322 = vrot.slane %v285, %v321
        %v323 = vmul.f32 %v312, %v318
        %v324 = vmul.f32 %v309, %v322
        %v325 = vmul.f32 %v313, %v318
        %v326 = vmul.f32 %v310, %v322
        %v327 = vmul.f32 %v314, %v318
        %v328 = vmul.f32 %v311, %v322
        %v329 = vld [vmem:[%s2] sm:$0xff]
        %v330 = vld [vmem:[%s2 + $0x8] sm:$0xff]
        %v331 = vld [vmem:[%s2 + $0x10] sm:$0xff]
        %v332 = vld [vmem:[%s2 + $0x18] sm:$0xff]
        %v333 = vld [vmem:[%s2 + $0x20] sm:$0xff]
        %v334 = vld [vmem:[%s2 + $0x28] sm:$0xff]
        %335 = vrot.lane.b32.xlu0 %v288, 16
        %v336 = vpop.permute.xlu0 %335
        %337 = vrot.lane.b32.xlu0 %v290, 16
        %v338 = vpop.permute.xlu0 %337
        %339 = vrot.lane.b32.xlu0 %v292, 16
        %v340 = vpop.permute.xlu0 %339
        %341 = vrot.lane.b32.xlu0 %v289, 16
        %v342 = vpop.permute.xlu0 %341
        %343 = vrot.lane.b32.xlu0 %v291, 16
        %v344 = vpop.permute.xlu0 %343
        %345 = vrot.lane.b32.xlu0 %v293, 16
        %v346 = vpop.permute.xlu0 %345
        %vm347 = vcmp.lt.s32.totalorder %v307, 16
        %v348 = vsel %vm347, %v336, %v342
        %v349 = vsel %vm347, %v338, %v344
        %v350 = vsel %vm347, %v340, %v346
        %v351 = vsel %vm347, %v342, %v336
        %v352 = vsel %vm347, %v344, %v338
        %v353 = vsel %vm347, %v346, %v340
        %v354 = vlaneseq
        %v355 = vshrl.u32 %v354, 7
        %v356 = vsub.s32 1, %v355
        %v357 = vrot.slane %v284, %v356
        %v358 = vlaneseq
        %v359 = vshrl.u32 %v358, 7
        %v360 = vsub.s32 1, %v359
        %v361 = vrot.slane %v285, %v360
        %v362 = vmul.f32 %v351, %v357
        %v363 = vmul.f32 %v348, %v361
        %v364 = vmul.f32 %v352, %v357
        %v365 = vmul.f32 %v349, %v361
        %v366 = vmul.f32 %v353, %v357
        %v367 = vmul.f32 %v350, %v361
        %s368 = scalar_lea.vmem %s2, 48
        %v369 = vld [vmem:[%s368] sm:$0xff]
        %v370 = vld [vmem:[%s368 + $0x8] sm:$0xff]
        %v371 = vld [vmem:[%s368 + $0x10] sm:$0xff]
        %v372 = vld [vmem:[%s368 + $0x18] sm:$0xff]
        %v373 = vld [vmem:[%s368 + $0x20] sm:$0xff]
        %v374 = vld [vmem:[%s368 + $0x28] sm:$0xff]
        %vm375 = vcmask 195584
        %v377 = vsel %vm375, %v369, 0
        %v380 = vsel %vm375, %v370, 0
        %v383 = vsel %vm375, %v371, 0
        %v386 = vsel %vm375, %v372, 0
        %v389 = vsel %vm375, %v373, 0
        %v392 = vsel %vm375, %v374, 0
        %394 = vmatprep.subr.mxu0 %v363
        %395 = vmatpush1.msra.mxu0 %v362
        %396 = vmatprep.subr.mxu0 %v365
        %397 = vmatpush1.msra.mxu0 %v364
        %398 = vmatprep.subr.mxu0 %v367
        %399 = vmatpush1.msra.mxu0 %v366
        %400 = vmatprep.subr.mxu0 0.0
        %401 = vmatpush1.msra.mxu0 0.0
        %402 = vmatprep.subr.mxu0 0.0
        %403 = vmatpush1.msra.mxu0 0.0
        %404 = vmatprep.subr.mxu0 0.0
        %405 = vmatpush1.msra.mxu0 0.0
        %406 = vmatprep.subr.mxu0 0.0
        %407 = vmatpush1.msra.mxu0 0.0
        %408 = vmatprep.subr.mxu0 0.0
        %409 = vmatpush1.msra.mxu0 0.0
        %410 = vmatprep.subr.mxu0 0.0
        %411 = vmatpush1.msra.mxu0 0.0
        %412 = vmatprep.subr.mxu0 0.0
        %413 = vmatpush1.msra.mxu0 0.0
        %414 = vmatprep.subr.mxu0 0.0
        %415 = vmatpush1.msra.mxu0 0.0
        %416 = vmatprep.subr.mxu0 0.0
        %417 = vmatpush1.msra.mxu0 0.0
        %418 = vmatprep.subr.mxu0 0.0
        %419 = vmatpush1.msra.mxu0 0.0
        %420 = vmatprep.subr.mxu0 0.0
        %421 = vmatpush1.msra.mxu0 0.0
        %422 = vmatprep.subr.mxu0 0.0
        %423 = vmatpush1.msra.mxu0 0.0
        %424 = vmatprep.subr.mxu0 0.0
        %425 = vmatpush1.msra.mxu0 0.0
        %426 = vmatprep.subr.mxu0 0.0
        %427 = vmatpush1.msra.mxu0 0.0
        %428 = vmatprep.subr.mxu0 0.0
        %429 = vmatpush1.msra.mxu0 0.0
        %430 = vmatprep.subr.mxu0 0.0
        %431 = vmatpush1.msra.mxu0 0.0
        %432 = vmatprep.subr.mxu0 0.0
        %433 = vmatpush1.msra.mxu0 0.0
        %434 = vmatprep.subr.mxu0 0.0
        %435 = vmatpush1.msra.mxu0 0.0
        %436 = vmatprep.subr.mxu0 0.0
        %437 = vmatpush1.msra.mxu0 0.0
        %438 = vmatprep.subr.mxu0 0.0
        %439 = vmatpush1.msra.mxu0 0.0
        %440 = vmatprep.subr.mxu0 0.0
        %441 = vmatpush1.msra.mxu0 0.0
        %442 = vmatprep.subr.mxu0 0.0
        %443 = vmatpush1.msra.mxu0 0.0
        %444 = vmatprep.subr.mxu0 0.0
        %445 = vmatpush1.msra.mxu0 0.0
        %446 = vmatprep.subr.mxu0 0.0
        %447 = vmatpush1.msra.mxu0 0.0
        %448 = vmatprep.subr.mxu0 0.0
        %449 = vmatpush1.msra.mxu0 0.0
        %450 = vmatprep.subr.mxu0 0.0
        %451 = vmatpush1.msra.mxu0 0.0
        %452 = vmatprep.subr.mxu0 0.0
        %453 = vmatpush1.msra.mxu0 0.0
        %454 = vmatprep.subr.mxu0 0.0
        %455 = vmatpush1.msra.mxu0 0.0
        %456 = vmatprep.subr.mxu0 0.0
        %457 = vmatpush1.msra.mxu0 0.0
        %458 = vmatprep.mubr.f32.mxu0 0.0
        %459 = vmatmul.mubr.f32.gmra.mrb[0].mxu0 %v377
        %v460 = vpop.f32.mrb[0].mxu0
        %v461 = vadd.f32 0.0, %v460
        %v462 = vpop.f32.mrb[0].mxu0
        %v463 = vadd.f32 0.0, %v462
        %464 = vmatprep.mubr.f32.mxu0 0.0
        %465 = vmatmul.mubr.f32.gmra.mrb[0].mxu0 %v380
        %v466 = vpop.f32.mrb[0].mxu0
        %v467 = vadd.f32 0.0, %v466
        %v468 = vpop.f32.mrb[0].mxu0
        %v469 = vadd.f32 0.0, %v468
        %470 = vmatprep.mubr.f32.mxu0 0.0
        %471 = vmatmul.mubr.f32.gmra.mrb[0].mxu0 %v383
        %v472 = vpop.f32.mrb[0].mxu0
        %v473 = vadd.f32 0.0, %v472
        %v474 = vpop.f32.mrb[0].mxu0
        %v475 = vadd.f32 0.0, %v474
        %476 = vmatprep.mubr.f32.mxu0 0.0
        %477 = vmatmul.mubr.f32.gmra.mrb[0].mxu0 %v386
        %v478 = vpop.f32.mrb[0].mxu0
        %v479 = vadd.f32 0.0, %v478
        %v480 = vpop.f32.mrb[0].mxu0
        %v481 = vadd.f32 0.0, %v480
        %482 = vmatprep.mubr.f32.mxu0 0.0
        %483 = vmatmul.mubr.f32.gmra.mrb[0].mxu0 %v389
        %v484 = vpop.f32.mrb[0].mxu0
        %v485 = vadd.f32 0.0, %v484
        %v486 = vpop.f32.mrb[0].mxu0
        %v487 = vadd.f32 0.0, %v486
        %488 = vmatprep.mubr.f32.mxu0 0.0
        %489 = vmatmul.mubr.f32.gmra.mrb[0].mxu0 %v392
        %v490 = vpop.f32.mrb[0].mxu0
        %v491 = vadd.f32 0.0, %v490
        %v492 = vpop.f32.mrb[0].mxu0
        %v493 = vadd.f32 0.0, %v492
        %494 = vdwg.mxu0
        %v496 = vsel %vm375, %v329, 0
        %v499 = vsel %vm375, %v330, 0
        %v502 = vsel %vm375, %v331, 0
        %v505 = vsel %vm375, %v332, 0
        %v508 = vsel %vm375, %v333, 0
        %v511 = vsel %vm375, %v334, 0
        %513 = vmatprep.subr.mxu0 %v324
        %514 = vmatpush1.msra.mxu0 %v323
        %515 = vmatprep.subr.mxu0 %v326
        %516 = vmatpush1.msra.mxu0 %v325
        %517 = vmatprep.subr.mxu0 %v328
        %518 = vmatpush1.msra.mxu0 %v327
        %519 = vmatprep.subr.mxu0 0.0
        %520 = vmatpush1.msra.mxu0 0.0
        %521 = vmatprep.subr.mxu0 0.0
        %522 = vmatpush1.msra.mxu0 0.0
        %523 = vmatprep.subr.mxu0 0.0
        %524 = vmatpush1.msra.mxu0 0.0
        %525 = vmatprep.subr.mxu0 0.0
        %526 = vmatpush1.msra.mxu0 0.0
        %527 = vmatprep.subr.mxu0 0.0
        %528 = vmatpush1.msra.mxu0 0.0
        %529 = vmatprep.subr.mxu0 0.0
        %530 = vmatpush1.msra.mxu0 0.0
        %531 = vmatprep.subr.mxu0 0.0
        %532 = vmatpush1.msra.mxu0 0.0
        %533 = vmatprep.subr.mxu0 0.0
        %534 = vmatpush1.msra.mxu0 0.0
        %535 = vmatprep.subr.mxu0 0.0
        %536 = vmatpush1.msra.mxu0 0.0
        %537 = vmatprep.subr.mxu0 0.0
        %538 = vmatpush1.msra.mxu0 0.0
        %539 = vmatprep.subr.mxu0 0.0
        %540 = vmatpush1.msra.mxu0 0.0
        %541 = vmatprep.subr.mxu0 0.0
        %542 = vmatpush1.msra.mxu0 0.0
        %543 = vmatprep.subr.mxu0 0.0
        %544 = vmatpush1.msra.mxu0 0.0
        %545 = vmatprep.subr.mxu0 0.0
        %546 = vmatpush1.msra.mxu0 0.0
        %547 = vmatprep.subr.mxu0 0.0
        %548 = vmatpush1.msra.mxu0 0.0
        %549 = vmatprep.subr.mxu0 0.0
        %550 = vmatpush1.msra.mxu0 0.0
        %551 = vmatprep.subr.mxu0 0.0
        %552 = vmatpush1.msra.mxu0 0.0
        %553 = vmatprep.subr.mxu0 0.0
        %554 = vmatpush1.msra.mxu0 0.0
        %555 = vmatprep.subr.mxu0 0.0
        %556 = vmatpush1.msra.mxu0 0.0
        %557 = vmatprep.subr.mxu0 0.0
        %558 = vmatpush1.msra.mxu0 0.0
        %559 = vmatprep.subr.mxu0 0.0
        %560 = vmatpush1.msra.mxu0 0.0
        %561 = vmatprep.subr.mxu0 0.0
        %562 = vmatpush1.msra.mxu0 0.0
        %563 = vmatprep.subr.mxu0 0.0
        %564 = vmatpush1.msra.mxu0 0.0
        %565 = vmatprep.subr.mxu0 0.0
        %566 = vmatpush1.msra.mxu0 0.0
        %567 = vmatprep.subr.mxu0 0.0
        %568 = vmatpush1.msra.mxu0 0.0
        %569 = vmatprep.subr.mxu0 0.0
        %570 = vmatpush1.msra.mxu0 0.0
        %571 = vmatprep.subr.mxu0 0.0
        %572 = vmatpush1.msra.mxu0 0.0
        %573 = vmatprep.subr.mxu0 0.0
        %574 = vmatpush1.msra.mxu0 0.0
        %575 = vmatprep.subr.mxu0 0.0
        %576 = vmatpush1.msra.mxu0 0.0
        %577 = vmatprep.mubr.f32.mxu0 0.0
        %578 = vmatmul.mubr.f32.gmra.mrb[0].mxu0 %v496
        %v579 = vpop.f32.mrb[0].mxu0
        %v580 = vadd.f32 %v461, %v579
        %v581 = vpop.f32.mrb[0].mxu0
        %v582 = vadd.f32 %v463, %v581
        %583 = vmatprep.mubr.f32.mxu0 0.0
        %584 = vmatmul.mubr.f32.gmra.mrb[0].mxu0 %v499
        %v585 = vpop.f32.mrb[0].mxu0
        %v586 = vadd.f32 %v467, %v585
        %v587 = vpop.f32.mrb[0].mxu0
        %v588 = vadd.f32 %v469, %v587
        %589 = vmatprep.mubr.f32.mxu0 0.0
        %590 = vmatmul.mubr.f32.gmra.mrb[0].mxu0 %v502
        %v591 = vpop.f32.mrb[0].mxu0
        %v592 = vadd.f32 %v473, %v591
        %v593 = vpop.f32.mrb[0].mxu0
        %v594 = vadd.f32 %v475, %v593
        %595 = vmatprep.mubr.f32.mxu0 0.0
        %596 = vmatmul.mubr.f32.gmra.mrb[0].mxu0 %v505
        %v597 = vpop.f32.mrb[0].mxu0
        %v598 = vadd.f32 %v479, %v597
        %v599 = vpop.f32.mrb[0].mxu0
        %v600 = vadd.f32 %v481, %v599
        %601 = vmatprep.mubr.f32.mxu0 0.0
        %602 = vmatmul.mubr.f32.gmra.mrb[0].mxu0 %v508
        %v603 = vpop.f32.mrb[0].mxu0
        %v604 = vadd.f32 %v485, %v603
        %v605 = vpop.f32.mrb[0].mxu0
        %v606 = vadd.f32 %v487, %v605
        %607 = vmatprep.mubr.f32.mxu0 0.0
        %608 = vmatmul.mubr.f32.gmra.mrb[0].mxu0 %v511
        %v609 = vpop.f32.mrb[0].mxu0
        %v610 = vadd.f32 %v491, %v609
        %v611 = vpop.f32.mrb[0].mxu0
        %v612 = vadd.f32 %v493, %v611
        %613 = vdwg.mxu0
        %614 = vrot.lane.b32.xlu0 %v288, 15
        %v615 = vpop.permute.xlu0 %614
        %616 = vrot.lane.b32.xlu0 %v290, 15
        %v617 = vpop.permute.xlu0 %616
        %618 = vrot.lane.b32.xlu0 %v292, 15
        %v619 = vpop.permute.xlu0 %618
        %620 = vrot.lane.b32.xlu0 %v289, 15
        %v621 = vpop.permute.xlu0 %620
        %622 = vrot.lane.b32.xlu0 %v291, 15
        %v623 = vpop.permute.xlu0 %622
        %624 = vrot.lane.b32.xlu0 %v293, 15
        %v625 = vpop.permute.xlu0 %624
        %vm626 = vcmp.lt.s32.totalorder %v307, 15
        %v627 = vsel %vm626, %v615, %v621
        %v628 = vsel %vm626, %v617, %v623
        %v629 = vsel %vm626, %v619, %v625
        %v630 = vsel %vm626, %v621, %v615
        %v631 = vsel %vm626, %v623, %v617
        %v632 = vsel %vm626, %v625, %v619
        %v633 = vlaneseq
        %v634 = vshrl.u32 %v633, 7
        %v635 = vsub.s32 2, %v634
        %v636 = vrot.slane %v284, %v635
        %v637 = vlaneseq
        %v638 = vshrl.u32 %v637, 7
        %v639 = vsub.s32 2, %v638
        %v640 = vrot.slane %v285, %v639
        %v641 = vmul.f32 %v630, %v636
        %v642 = vmul.f32 %v627, %v640
        %v643 = vmul.f32 %v631, %v636
        %v644 = vmul.f32 %v628, %v640
        %v645 = vmul.f32 %v632, %v636
        %v646 = vmul.f32 %v629, %v640
        %s647 = scalar_lea.vmem %s2, 96
        %v648 = vld [vmem:[%s647] sm:$0xff]
        %v649 = vld [vmem:[%s647 + $0x8] sm:$0xff]
        %v650 = vld [vmem:[%s647 + $0x10] sm:$0xff]
        %v651 = vld [vmem:[%s647 + $0x18] sm:$0xff]
        %v652 = vld [vmem:[%s647 + $0x20] sm:$0xff]
        %v653 = vld [vmem:[%s647 + $0x28] sm:$0xff]
        %v655 = vsel %vm375, %v648, 0
        %v658 = vsel %vm375, %v649, 0
        %v661 = vsel %vm375, %v650, 0
        %v664 = vsel %vm375, %v651, 0
        %v667 = vsel %vm375, %v652, 0
        %v670 = vsel %vm375, %v653, 0
        %672 = vmatprep.subr.mxu0 %v642
        %673 = vmatpush1.msra.mxu0 %v641
        %674 = vmatprep.subr.mxu0 %v644
        %675 = vmatpush1.msra.mxu0 %v643
        %676 = vmatprep.subr.mxu0 %v646
        %677 = vmatpush1.msra.mxu0 %v645
        %678 = vmatprep.subr.mxu0 0.0
        %679 = vmatpush1.msra.mxu0 0.0
        %680 = vmatprep.subr.mxu0 0.0
        %681 = vmatpush1.msra.mxu0 0.0
        %682 = vmatprep.subr.mxu0 0.0
        %683 = vmatpush1.msra.mxu0 0.0
        %684 = vmatprep.subr.mxu0 0.0
        %685 = vmatpush1.msra.mxu0 0.0
        %686 = vmatprep.subr.mxu0 0.0
        %687 = vmatpush1.msra.mxu0 0.0
        %688 = vmatprep.subr.mxu0 0.0
        %689 = vmatpush1.msra.mxu0 0.0
        %690 = vmatprep.subr.mxu0 0.0
        %691 = vmatpush1.msra.mxu0 0.0
        %692 = vmatprep.subr.mxu0 0.0
        %693 = vmatpush1.msra.mxu0 0.0
        %694 = vmatprep.subr.mxu0 0.0
        %695 = vmatpush1.msra.mxu0 0.0
        %696 = vmatprep.subr.mxu0 0.0
        %697 = vmatpush1.msra.mxu0 0.0
        %698 = vmatprep.subr.mxu0 0.0
        %699 = vmatpush1.msra.mxu0 0.0
        %700 = vmatprep.subr.mxu0 0.0
        %701 = vmatpush1.msra.mxu0 0.0
        %702 = vmatprep.subr.mxu0 0.0
        %703 = vmatpush1.msra.mxu0 0.0
        %704 = vmatprep.subr.mxu0 0.0
        %705 = vmatpush1.msra.mxu0 0.0
        %706 = vmatprep.subr.mxu0 0.0
        %707 = vmatpush1.msra.mxu0 0.0
        %708 = vmatprep.subr.mxu0 0.0
        %709 = vmatpush1.msra.mxu0 0.0
        %710 = vmatprep.subr.mxu0 0.0
        %711 = vmatpush1.msra.mxu0 0.0
        %712 = vmatprep.subr.mxu0 0.0
        %713 = vmatpush1.msra.mxu0 0.0
        %714 = vmatprep.subr.mxu0 0.0
        %715 = vmatpush1.msra.mxu0 0.0
        %716 = vmatprep.subr.mxu0 0.0
        %717 = vmatpush1.msra.mxu0 0.0
        %718 = vmatprep.subr.mxu0 0.0
        %719 = vmatpush1.msra.mxu0 0.0
        %720 = vmatprep.subr.mxu0 0.0
        %721 = vmatpush1.msra.mxu0 0.0
        %722 = vmatprep.subr.mxu0 0.0
        %723 = vmatpush1.msra.mxu0 0.0
        %724 = vmatprep.subr.mxu0 0.0
        %725 = vmatpush1.msra.mxu0 0.0
        %726 = vmatprep.subr.mxu0 0.0
        %727 = vmatpush1.msra.mxu0 0.0
        %728 = vmatprep.subr.mxu0 0.0
        %729 = vmatpush1.msra.mxu0 0.0
        %730 = vmatprep.subr.mxu0 0.0
        %731 = vmatpush1.msra.mxu0 0.0
        %732 = vmatprep.subr.mxu0 0.0
        %733 = vmatpush1.msra.mxu0 0.0
        %734 = vmatprep.subr.mxu0 0.0
        %735 = vmatpush1.msra.mxu0 0.0
        %736 = vmatprep.mubr.f32.mxu0 0.0
        %737 = vmatmul.mubr.f32.gmra.mrb[0].mxu0 %v655
        %v738 = vpop.f32.mrb[0].mxu0
        %v739 = vadd.f32 0.0, %v738
        %v740 = vpop.f32.mrb[0].mxu0
        %v741 = vadd.f32 0.0, %v740
        %742 = vmatprep.mubr.f32.mxu0 0.0
        %743 = vmatmul.mubr.f32.gmra.mrb[0].mxu0 %v658
        %v744 = vpop.f32.mrb[0].mxu0
        %v745 = vadd.f32 0.0, %v744
        %v746 = vpop.f32.mrb[0].mxu0
        %v747 = vadd.f32 0.0, %v746
        %748 = vmatprep.mubr.f32.mxu0 0.0
        %749 = vmatmul.mubr.f32.gmra.mrb[0].mxu0 %v661
        %v750 = vpop.f32.mrb[0].mxu0
        %v751 = vadd.f32 0.0, %v750
        %v752 = vpop.f32.mrb[0].mxu0
        %v753 = vadd.f32 0.0, %v752
        %754 = vmatprep.mubr.f32.mxu0 0.0
        %755 = vmatmul.mubr.f32.gmra.mrb[0].mxu0 %v664
        %v756 = vpop.f32.mrb[0].mxu0
        %v757 = vadd.f32 0.0, %v756
        %v758 = vpop.f32.mrb[0].mxu0
        %v759 = vadd.f32 0.0, %v758
        %760 = vmatprep.mubr.f32.mxu0 0.0
        %761 = vmatmul.mubr.f32.gmra.mrb[0].mxu0 %v667
        %v762 = vpop.f32.mrb[0].mxu0
        %v763 = vadd.f32 0.0, %v762
        %v764 = vpop.f32.mrb[0].mxu0
        %v765 = vadd.f32 0.0, %v764
        %766 = vmatprep.mubr.f32.mxu0 0.0
        %767 = vmatmul.mubr.f32.gmra.mrb[0].mxu0 %v670
        %v768 = vpop.f32.mrb[0].mxu0
        %v769 = vadd.f32 0.0, %v768
        %v770 = vpop.f32.mrb[0].mxu0
        %v771 = vadd.f32 0.0, %v770
        %772 = vdwg.mxu0
        %v773 = vadd.f32 %v580, %v739
        %v774 = vadd.f32 %v582, %v741
        %v775 = vadd.f32 %v586, %v745
        %v776 = vadd.f32 %v588, %v747
        %v777 = vadd.f32 %v592, %v751
        %v778 = vadd.f32 %v594, %v753
        %v779 = vadd.f32 %v598, %v757
        %v780 = vadd.f32 %v600, %v759
        %v781 = vadd.f32 %v604, %v763
        %v782 = vadd.f32 %v606, %v765
        %v783 = vadd.f32 %v610, %v769
        %v784 = vadd.f32 %v612, %v771
        %785 = vrot.lane.b32.xlu0 %v288, 1
        %v786 = vpop.permute.xlu0 %785
        %787 = vrot.lane.b32.xlu0 %v290, 1
        %v788 = vpop.permute.xlu0 %787
        %789 = vrot.lane.b32.xlu0 %v292, 1
        %v790 = vpop.permute.xlu0 %789
        %791 = vrot.lane.b32.xlu0 %v289, 1
        %v792 = vpop.permute.xlu0 %791
        %793 = vrot.lane.b32.xlu0 %v291, 1
        %v794 = vpop.permute.xlu0 %793
        %795 = vrot.lane.b32.xlu0 %v293, 1
        %v796 = vpop.permute.xlu0 %795
        %vm797 = vcmp.lt.s32.totalorder %v307, 1
        %v798 = vsel %vm797, %v786, %v792
        %v799 = vsel %vm797, %v788, %v794
        %v800 = vsel %vm797, %v790, %v796
        %v801 = vsel %vm797, %v792, %v786
        %v802 = vsel %vm797, %v794, %v788
        %v803 = vsel %vm797, %v796, %v790
        %v804 = vlaneseq
        %v805 = vshrl.u32 %v804, 7
        %v806 = vsub.s32 3, %v805
        %v807 = vrot.slane %v284, %v806
        %v808 = vlaneseq
        %v809 = vshrl.u32 %v808, 7
        %v810 = vsub.s32 3, %v809
        %v811 = vrot.slane %v285, %v810
        %v812 = vmul.f32 %v801, %v807
        %v813 = vmul.f32 %v798, %v811
        %v814 = vmul.f32 %v802, %v807
        %v815 = vmul.f32 %v799, %v811
        %v816 = vmul.f32 %v803, %v807
        %v817 = vmul.f32 %v800, %v811
        %s818 = scalar_lea.vmem %s2, 144
        %v819 = vld [vmem:[%s818] sm:$0xff]
        %v820 = vld [vmem:[%s818 + $0x8] sm:$0xff]
        %v821 = vld [vmem:[%s818 + $0x10] sm:$0xff]
        %v822 = vld [vmem:[%s818 + $0x18] sm:$0xff]
        %v823 = vld [vmem:[%s818 + $0x20] sm:$0xff]
        %v824 = vld [vmem:[%s818 + $0x28] sm:$0xff]
        %v826 = vsel %vm375, %v819, 0
        %v829 = vsel %vm375, %v820, 0
        %v832 = vsel %vm375, %v821, 0
        %v835 = vsel %vm375, %v822, 0
        %v838 = vsel %vm375, %v823, 0
        %v841 = vsel %vm375, %v824, 0
        %843 = vmatprep.subr.mxu0 %v813
        %844 = vmatpush1.msra.mxu0 %v812
        %845 = vmatprep.subr.mxu0 %v815
        %846 = vmatpush1.msra.mxu0 %v814
        %847 = vmatprep.subr.mxu0 %v817
        %848 = vmatpush1.msra.mxu0 %v816
        %849 = vmatprep.subr.mxu0 0.0
        %850 = vmatpush1.msra.mxu0 0.0
        %851 = vmatprep.subr.mxu0 0.0
        %852 = vmatpush1.msra.mxu0 0.0
        %853 = vmatprep.subr.mxu0 0.0
        %854 = vmatpush1.msra.mxu0 0.0
        %855 = vmatprep.subr.mxu0 0.0
        %856 = vmatpush1.msra.mxu0 0.0
        %857 = vmatprep.subr.mxu0 0.0
        %858 = vmatpush1.msra.mxu0 0.0
        %859 = vmatprep.subr.mxu0 0.0
        %860 = vmatpush1.msra.mxu0 0.0
        %861 = vmatprep.subr.mxu0 0.0
        %862 = vmatpush1.msra.mxu0 0.0
        %863 = vmatprep.subr.mxu0 0.0
        %864 = vmatpush1.msra.mxu0 0.0
        %865 = vmatprep.subr.mxu0 0.0
        %866 = vmatpush1.msra.mxu0 0.0
        %867 = vmatprep.subr.mxu0 0.0
        %868 = vmatpush1.msra.mxu0 0.0
        %869 = vmatprep.subr.mxu0 0.0
        %870 = vmatpush1.msra.mxu0 0.0
        %871 = vmatprep.subr.mxu0 0.0
        %872 = vmatpush1.msra.mxu0 0.0
        %873 = vmatprep.subr.mxu0 0.0
        %874 = vmatpush1.msra.mxu0 0.0
        %875 = vmatprep.subr.mxu0 0.0
        %876 = vmatpush1.msra.mxu0 0.0
        %877 = vmatprep.subr.mxu0 0.0
        %878 = vmatpush1.msra.mxu0 0.0
        %879 = vmatprep.subr.mxu0 0.0
        %880 = vmatpush1.msra.mxu0 0.0
        %881 = vmatprep.subr.mxu0 0.0
        %882 = vmatpush1.msra.mxu0 0.0
        %883 = vmatprep.subr.mxu0 0.0
        %884 = vmatpush1.msra.mxu0 0.0
        %885 = vmatprep.subr.mxu0 0.0
        %886 = vmatpush1.msra.mxu0 0.0
        %887 = vmatprep.subr.mxu0 0.0
        %888 = vmatpush1.msra.mxu0 0.0
        %889 = vmatprep.subr.mxu0 0.0
        %890 = vmatpush1.msra.mxu0 0.0
        %891 = vmatprep.subr.mxu0 0.0
        %892 = vmatpush1.msra.mxu0 0.0
        %893 = vmatprep.subr.mxu0 0.0
        %894 = vmatpush1.msra.mxu0 0.0
        %895 = vmatprep.subr.mxu0 0.0
        %896 = vmatpush1.msra.mxu0 0.0
        %897 = vmatprep.subr.mxu0 0.0
        %898 = vmatpush1.msra.mxu0 0.0
        %899 = vmatprep.subr.mxu0 0.0
        %900 = vmatpush1.msra.mxu0 0.0
        %901 = vmatprep.subr.mxu0 0.0
        %902 = vmatpush1.msra.mxu0 0.0
        %903 = vmatprep.subr.mxu0 0.0
        %904 = vmatpush1.msra.mxu0 0.0
        %905 = vmatprep.subr.mxu0 0.0
        %906 = vmatpush1.msra.mxu0 0.0
        %907 = vmatprep.mubr.f32.mxu0 0.0
        %908 = vmatmul.mubr.f32.gmra.mrb[0].mxu0 %v826
        %v909 = vpop.f32.mrb[0].mxu0
        %v910 = vadd.f32 0.0, %v909
        %v911 = vpop.f32.mrb[0].mxu0
        %v912 = vadd.f32 0.0, %v911
        %913 = vmatprep.mubr.f32.mxu0 0.0
        %914 = vmatmul.mubr.f32.gmra.mrb[0].mxu0 %v829
        %v915 = vpop.f32.mrb[0].mxu0
        %v916 = vadd.f32 0.0, %v915
        %v917 = vpop.f32.mrb[0].mxu0
        %v918 = vadd.f32 0.0, %v917
        %919 = vmatprep.mubr.f32.mxu0 0.0
        %920 = vmatmul.mubr.f32.gmra.mrb[0].mxu0 %v832
        %v921 = vpop.f32.mrb[0].mxu0
        %v922 = vadd.f32 0.0, %v921
        %v923 = vpop.f32.mrb[0].mxu0
        %v924 = vadd.f32 0.0, %v923
        %925 = vmatprep.mubr.f32.mxu0 0.0
        %926 = vmatmul.mubr.f32.gmra.mrb[0].mxu0 %v835
        %v927 = vpop.f32.mrb[0].mxu0
        %v928 = vadd.f32 0.0, %v927
        %v929 = vpop.f32.mrb[0].mxu0
        %v930 = vadd.f32 0.0, %v929
        %931 = vmatprep.mubr.f32.mxu0 0.0
        %932 = vmatmul.mubr.f32.gmra.mrb[0].mxu0 %v838
        %v933 = vpop.f32.mrb[0].mxu0
        %v934 = vadd.f32 0.0, %v933
        %v935 = vpop.f32.mrb[0].mxu0
        %v936 = vadd.f32 0.0, %v935
        %937 = vmatprep.mubr.f32.mxu0 0.0
        %938 = vmatmul.mubr.f32.gmra.mrb[0].mxu0 %v841
        %v939 = vpop.f32.mrb[0].mxu0
        %v940 = vadd.f32 0.0, %v939
        %v941 = vpop.f32.mrb[0].mxu0
        %v942 = vadd.f32 0.0, %v941
        %943 = vdwg.mxu0
        %v944 = vadd.f32 %v773, %v910
        %v945 = vadd.f32 %v774, %v912
        %v946 = vadd.f32 %v775, %v916
        %v947 = vadd.f32 %v776, %v918
        %v948 = vadd.f32 %v777, %v922
        %v949 = vadd.f32 %v778, %v924
        %v950 = vadd.f32 %v779, %v928
        %v951 = vadd.f32 %v780, %v930
        %v952 = vadd.f32 %v781, %v934
        %v953 = vadd.f32 %v782, %v936
        %v954 = vadd.f32 %v783, %v940
        %v955 = vadd.f32 %v784, %v942
        %s956 = scalar_lea.vmem %s2, 192
        %v957 = vld [vmem:[%s956] sm:$0xff]
        %v958 = vld [vmem:[%s956 + $0x8] sm:$0xff]
        %v959 = vld [vmem:[%s956 + $0x10] sm:$0xff]
        %v960 = vld [vmem:[%s956 + $0x18] sm:$0xff]
        %v961 = vld [vmem:[%s956 + $0x20] sm:$0xff]
        %v962 = vld [vmem:[%s956 + $0x28] sm:$0xff]
        %v964 = vsel %vm375, %v957, 0
        %v967 = vsel %vm375, %v958, 0
        %v970 = vsel %vm375, %v959, 0
        %v973 = vsel %vm375, %v960, 0
        %v976 = vsel %vm375, %v961, 0
        %v979 = vsel %vm375, %v962, 0
        %981 = vmatprep.subr.mxu0 %v289
        %982 = vmatpush1.msra.mxu0 %v288
        %983 = vmatprep.subr.mxu0 %v291
        %984 = vmatpush1.msra.mxu0 %v290
        %985 = vmatprep.subr.mxu0 %v293
        %986 = vmatpush1.msra.mxu0 %v292
        %987 = vmatprep.subr.mxu0 0.0
        %988 = vmatpush1.msra.mxu0 0.0
        %989 = vmatprep.subr.mxu0 0.0
        %990 = vmatpush1.msra.mxu0 0.0
        %991 = vmatprep.subr.mxu0 0.0
        %992 = vmatpush1.msra.mxu0 0.0
        %993 = vmatprep.subr.mxu0 0.0
        %994 = vmatpush1.msra.mxu0 0.0
        %995 = vmatprep.subr.mxu0 0.0
        %996 = vmatpush1.msra.mxu0 0.0
        %997 = vmatprep.subr.mxu0 0.0
        %998 = vmatpush1.msra.mxu0 0.0
        %999 = vmatprep.subr.mxu0 0.0
        %1000 = vmatpush1.msra.mxu0 0.0
        %1001 = vmatprep.subr.mxu0 0.0
        %1002 = vmatpush1.msra.mxu0 0.0
        %1003 = vmatprep.subr.mxu0 0.0
        %1004 = vmatpush1.msra.mxu0 0.0
        %1005 = vmatprep.subr.mxu0 0.0
        %1006 = vmatpush1.msra.mxu0 0.0
        %1007 = vmatprep.subr.mxu0 0.0
        %1008 = vmatpush1.msra.mxu0 0.0
        %1009 = vmatprep.subr.mxu0 0.0
        %1010 = vmatpush1.msra.mxu0 0.0
        %1011 = vmatprep.subr.mxu0 0.0
        %1012 = vmatpush1.msra.mxu0 0.0
        %1013 = vmatprep.subr.mxu0 0.0
        %1014 = vmatpush1.msra.mxu0 0.0
        %1015 = vmatprep.subr.mxu0 0.0
        %1016 = vmatpush1.msra.mxu0 0.0
        %1017 = vmatprep.subr.mxu0 0.0
        %1018 = vmatpush1.msra.mxu0 0.0
        %1019 = vmatprep.subr.mxu0 0.0
        %1020 = vmatpush1.msra.mxu0 0.0
        %1021 = vmatprep.subr.mxu0 0.0
        %1022 = vmatpush1.msra.mxu0 0.0
        %1023 = vmatprep.subr.mxu0 0.0
        %1024 = vmatpush1.msra.mxu0 0.0
        %1025 = vmatprep.subr.mxu0 0.0
        %1026 = vmatpush1.msra.mxu0 0.0
        %1027 = vmatprep.subr.mxu0 0.0
        %1028 = vmatpush1.msra.mxu0 0.0
        %1029 = vmatprep.subr.mxu0 0.0
        %1030 = vmatpush1.msra.mxu0 0.0
        %1031 = vmatprep.subr.mxu0 0.0
        %1032 = vmatpush1.msra.mxu0 0.0
        %1033 = vmatprep.subr.mxu0 0.0
        %1034 = vmatpush1.msra.mxu0 0.0
        %1035 = vmatprep.subr.mxu0 0.0
        %1036 = vmatpush1.msra.mxu0 0.0
        %1037 = vmatprep.subr.mxu0 0.0
        %1038 = vmatpush1.msra.mxu0 0.0
        %1039 = vmatprep.subr.mxu0 0.0
        %1040 = vmatpush1.msra.mxu0 0.0
        %1041 = vmatprep.subr.mxu0 0.0
        %1042 = vmatpush1.msra.mxu0 0.0
        %1043 = vmatprep.subr.mxu0 0.0
        %1044 = vmatpush1.msra.mxu0 0.0
        %1045 = vmatprep.mubr.f32.mxu0 0.0
        %1046 = vmatmul.mubr.f32.gmra.mrb[0].mxu0 %v964
        %v1047 = vpop.f32.mrb[0].mxu0
        %v1048 = vadd.f32 0.0, %v1047
        %v1049 = vpop.f32.mrb[0].mxu0
        %v1050 = vadd.f32 0.0, %v1049
        %1051 = vmatprep.mubr.f32.mxu0 0.0
        %1052 = vmatmul.mubr.f32.gmra.mrb[0].mxu0 %v967
        %v1053 = vpop.f32.mrb[0].mxu0
        %v1054 = vadd.f32 0.0, %v1053
        %v1055 = vpop.f32.mrb[0].mxu0
        %v1056 = vadd.f32 0.0, %v1055
        %1057 = vmatprep.mubr.f32.mxu0 0.0
        %1058 = vmatmul.mubr.f32.gmra.mrb[0].mxu0 %v970
        %v1059 = vpop.f32.mrb[0].mxu0
        %v1060 = vadd.f32 0.0, %v1059
        %v1061 = vpop.f32.mrb[0].mxu0
        %v1062 = vadd.f32 0.0, %v1061
        %1063 = vmatprep.mubr.f32.mxu0 0.0
        %1064 = vmatmul.mubr.f32.gmra.mrb[0].mxu0 %v973
        %v1065 = vpop.f32.mrb[0].mxu0
        %v1066 = vadd.f32 0.0, %v1065
        %v1067 = vpop.f32.mrb[0].mxu0
        %v1068 = vadd.f32 0.0, %v1067
        %1069 = vmatprep.mubr.f32.mxu0 0.0
        %1070 = vmatmul.mubr.f32.gmra.mrb[0].mxu0 %v976
        %v1071 = vpop.f32.mrb[0].mxu0
        %v1072 = vadd.f32 0.0, %v1071
        %v1073 = vpop.f32.mrb[0].mxu0
        %v1074 = vadd.f32 0.0, %v1073
        %1075 = vmatprep.mubr.f32.mxu0 0.0
        %1076 = vmatmul.mubr.f32.gmra.mrb[0].mxu0 %v979
        %v1077 = vpop.f32.mrb[0].mxu0
        %v1078 = vadd.f32 0.0, %v1077
        %v1079 = vpop.f32.mrb[0].mxu0
        %v1080 = vadd.f32 0.0, %v1079
        %1081 = vdwg.mxu0
        %v1082 = vadd.f32 %v944, %v1048
        %v1083 = vadd.f32 %v945, %v1050
        %v1084 = vadd.f32 %v946, %v1054
        %v1085 = vadd.f32 %v947, %v1056
        %v1086 = vadd.f32 %v948, %v1060
        %v1087 = vadd.f32 %v949, %v1062
        %v1088 = vadd.f32 %v950, %v1066
        %v1089 = vadd.f32 %v951, %v1068
        %v1090 = vadd.f32 %v952, %v1072
        %v1091 = vadd.f32 %v953, %v1074
        %v1092 = vadd.f32 %v954, %v1078
        %v1093 = vadd.f32 %v955, %v1080
        %1094 = vrot.lane.b32.xlu0 %v288, 127
        %v1095 = vpop.permute.xlu0 %1094
        %1096 = vrot.lane.b32.xlu0 %v290, 127
        %v1097 = vpop.permute.xlu0 %1096
        %1098 = vrot.lane.b32.xlu0 %v292, 127
        %v1099 = vpop.permute.xlu0 %1098
        %1100 = vrot.lane.b32.xlu0 %v289, 127
        %v1101 = vpop.permute.xlu0 %1100
        %1102 = vrot.lane.b32.xlu0 %v291, 127
        %v1103 = vpop.permute.xlu0 %1102
        %1104 = vrot.lane.b32.xlu0 %v293, 127
        %v1105 = vpop.permute.xlu0 %1104
        %vm1106 = vcmp.lt.s32.totalorder %v307, 127
        %v1107 = vsel %vm1106, %v1095, %v1101
        %v1108 = vsel %vm1106, %v1097, %v1103
        %v1109 = vsel %vm1106, %v1099, %v1105
        %v1110 = vsel %vm1106, %v1101, %v1095
        %v1111 = vsel %vm1106, %v1103, %v1097
        %v1112 = vsel %vm1106, %v1105, %v1099
        %v1113 = vlaneseq
        %v1114 = vshrl.u32 %v1113, 7
        %v1115 = vsub.s32 5, %v1114
        %v1116 = vrot.slane %v284, %v1115
        %v1117 = vlaneseq
        %v1118 = vshrl.u32 %v1117, 7
        %v1119 = vsub.s32 5, %v1118
        %v1120 = vrot.slane %v285, %v1119
        %v1121 = vmul.f32 %v1107, %v1116
        %v1122 = vmul.f32 %v1110, %v1120
        %v1123 = vmul.f32 %v1108, %v1116
        %v1124 = vmul.f32 %v1111, %v1120
        %v1125 = vmul.f32 %v1109, %v1116
        %v1126 = vmul.f32 %v1112, %v1120
        %s1127 = scalar_lea.vmem %s2, 240
        %v1128 = vld [vmem:[%s1127] sm:$0xff]
        %v1129 = vld [vmem:[%s1127 + $0x8] sm:$0xff]
        %v1130 = vld [vmem:[%s1127 + $0x10] sm:$0xff]
        %v1131 = vld [vmem:[%s1127 + $0x18] sm:$0xff]
        %v1132 = vld [vmem:[%s1127 + $0x20] sm:$0xff]
        %v1133 = vld [vmem:[%s1127 + $0x28] sm:$0xff]
        %v1135 = vsel %vm375, %v1128, 0
        %v1138 = vsel %vm375, %v1129, 0
        %v1141 = vsel %vm375, %v1130, 0
        %v1144 = vsel %vm375, %v1131, 0
        %v1147 = vsel %vm375, %v1132, 0
        %v1150 = vsel %vm375, %v1133, 0
        %1152 = vmatprep.subr.mxu0 %v1122
        %1153 = vmatpush1.msra.mxu0 %v1121
        %1154 = vmatprep.subr.mxu0 %v1124
        %1155 = vmatpush1.msra.mxu0 %v1123
        %1156 = vmatprep.subr.mxu0 %v1126
        %1157 = vmatpush1.msra.mxu0 %v1125
        %1158 = vmatprep.subr.mxu0 0.0
        %1159 = vmatpush1.msra.mxu0 0.0
        %1160 = vmatprep.subr.mxu0 0.0
        %1161 = vmatpush1.msra.mxu0 0.0
        %1162 = vmatprep.subr.mxu0 0.0
        %1163 = vmatpush1.msra.mxu0 0.0
        %1164 = vmatprep.subr.mxu0 0.0
        %1165 = vmatpush1.msra.mxu0 0.0
        %1166 = vmatprep.subr.mxu0 0.0
        %1167 = vmatpush1.msra.mxu0 0.0
        %1168 = vmatprep.subr.mxu0 0.0
        %1169 = vmatpush1.msra.mxu0 0.0
        %1170 = vmatprep.subr.mxu0 0.0
        %1171 = vmatpush1.msra.mxu0 0.0
        %1172 = vmatprep.subr.mxu0 0.0
        %1173 = vmatpush1.msra.mxu0 0.0
        %1174 = vmatprep.subr.mxu0 0.0
        %1175 = vmatpush1.msra.mxu0 0.0
        %1176 = vmatprep.subr.mxu0 0.0
        %1177 = vmatpush1.msra.mxu0 0.0
        %1178 = vmatprep.subr.mxu0 0.0
        %1179 = vmatpush1.msra.mxu0 0.0
        %1180 = vmatprep.subr.mxu0 0.0
        %1181 = vmatpush1.msra.mxu0 0.0
        %1182 = vmatprep.subr.mxu0 0.0
        %1183 = vmatpush1.msra.mxu0 0.0
        %1184 = vmatprep.subr.mxu0 0.0
        %1185 = vmatpush1.msra.mxu0 0.0
        %1186 = vmatprep.subr.mxu0 0.0
        %1187 = vmatpush1.msra.mxu0 0.0
        %1188 = vmatprep.subr.mxu0 0.0
        %1189 = vmatpush1.msra.mxu0 0.0
        %1190 = vmatprep.subr.mxu0 0.0
        %1191 = vmatpush1.msra.mxu0 0.0
        %1192 = vmatprep.subr.mxu0 0.0
        %1193 = vmatpush1.msra.mxu0 0.0
        %1194 = vmatprep.subr.mxu0 0.0
        %1195 = vmatpush1.msra.mxu0 0.0
        %1196 = vmatprep.subr.mxu0 0.0
        %1197 = vmatpush1.msra.mxu0 0.0
        %1198 = vmatprep.subr.mxu0 0.0
        %1199 = vmatpush1.msra.mxu0 0.0
        %1200 = vmatprep.subr.mxu0 0.0
        %1201 = vmatpush1.msra.mxu0 0.0
        %1202 = vmatprep.subr.mxu0 0.0
        %1203 = vmatpush1.msra.mxu0 0.0
        %1204 = vmatprep.subr.mxu0 0.0
        %1205 = vmatpush1.msra.mxu0 0.0
        %1206 = vmatprep.subr.mxu0 0.0
        %1207 = vmatpush1.msra.mxu0 0.0
        %1208 = vmatprep.subr.mxu0 0.0
        %1209 = vmatpush1.msra.mxu0 0.0
        %1210 = vmatprep.subr.mxu0 0.0
        %1211 = vmatpush1.msra.mxu0 0.0
        %1212 = vmatprep.subr.mxu0 0.0
        %1213 = vmatpush1.msra.mxu0 0.0
        %1214 = vmatprep.subr.mxu0 0.0
        %1215 = vmatpush1.msra.mxu0 0.0
        %1216 = vmatprep.mubr.f32.mxu0 0.0
        %1217 = vmatmul.mubr.f32.gmra.mrb[0].mxu0 %v1135
        %v1218 = vpop.f32.mrb[0].mxu0
        %v1219 = vadd.f32 0.0, %v1218
        %v1220 = vpop.f32.mrb[0].mxu0
        %v1221 = vadd.f32 0.0, %v1220
        %1222 = vmatprep.mubr.f32.mxu0 0.0
        %1223 = vmatmul.mubr.f32.gmra.mrb[0].mxu0 %v1138
        %v1224 = vpop.f32.mrb[0].mxu0
        %v1225 = vadd.f32 0.0, %v1224
        %v1226 = vpop.f32.mrb[0].mxu0
        %v1227 = vadd.f32 0.0, %v1226
        %1228 = vmatprep.mubr.f32.mxu0 0.0
        %1229 = vmatmul.mubr.f32.gmra.mrb[0].mxu0 %v1141
        %v1230 = vpop.f32.mrb[0].mxu0
        %v1231 = vadd.f32 0.0, %v1230
        %v1232 = vpop.f32.mrb[0].mxu0
        %v1233 = vadd.f32 0.0, %v1232
        %1234 = vmatprep.mubr.f32.mxu0 0.0
        %1235 = vmatmul.mubr.f32.gmra.mrb[0].mxu0 %v1144
        %v1236 = vpop.f32.mrb[0].mxu0
        %v1237 = vadd.f32 0.0, %v1236
        %v1238 = vpop.f32.mrb[0].mxu0
        %v1239 = vadd.f32 0.0, %v1238
        %1240 = vmatprep.mubr.f32.mxu0 0.0
        %1241 = vmatmul.mubr.f32.gmra.mrb[0].mxu0 %v1147
        %v1242 = vpop.f32.mrb[0].mxu0
        %v1243 = vadd.f32 0.0, %v1242
        %v1244 = vpop.f32.mrb[0].mxu0
        %v1245 = vadd.f32 0.0, %v1244
        %1246 = vmatprep.mubr.f32.mxu0 0.0
        %1247 = vmatmul.mubr.f32.gmra.mrb[0].mxu0 %v1150
        %v1248 = vpop.f32.mrb[0].mxu0
        %v1249 = vadd.f32 0.0, %v1248
        %v1250 = vpop.f32.mrb[0].mxu0
        %v1251 = vadd.f32 0.0, %v1250
        %1252 = vdwg.mxu0
        %v1253 = vadd.f32 %v1082, %v1219
        %v1254 = vadd.f32 %v1083, %v1221
        %v1255 = vadd.f32 %v1084, %v1225
        %v1256 = vadd.f32 %v1085, %v1227
        %v1257 = vadd.f32 %v1086, %v1231
        %v1258 = vadd.f32 %v1087, %v1233
        %v1259 = vadd.f32 %v1088, %v1237
        %v1260 = vadd.f32 %v1089, %v1239
        %v1261 = vadd.f32 %v1090, %v1243
        %v1262 = vadd.f32 %v1091, %v1245
        %v1263 = vadd.f32 %v1092, %v1249
        %v1264 = vadd.f32 %v1093, %v1251
        %1265 = vrot.lane.b32.xlu0 %v288, 113
        %v1266 = vpop.permute.xlu0 %1265
        %1267 = vrot.lane.b32.xlu0 %v290, 113
        %v1268 = vpop.permute.xlu0 %1267
        %1269 = vrot.lane.b32.xlu0 %v292, 113
        %v1270 = vpop.permute.xlu0 %1269
        %1271 = vrot.lane.b32.xlu0 %v289, 113
        %v1272 = vpop.permute.xlu0 %1271
        %1273 = vrot.lane.b32.xlu0 %v291, 113
        %v1274 = vpop.permute.xlu0 %1273
        %1275 = vrot.lane.b32.xlu0 %v293, 113
        %v1276 = vpop.permute.xlu0 %1275
        %vm1277 = vcmp.lt.s32.totalorder %v307, 113
        %v1278 = vsel %vm1277, %v1266, %v1272
        %v1279 = vsel %vm1277, %v1268, %v1274
        %v1280 = vsel %vm1277, %v1270, %v1276
        %v1281 = vsel %vm1277, %v1272, %v1266
        %v1282 = vsel %vm1277, %v1274, %v1268
        %v1283 = vsel %vm1277, %v1276, %v1270
        %v1284 = vlaneseq
        %v1285 = vshrl.u32 %v1284, 7
        %v1286 = vsub.s32 6, %v1285
        %v1287 = vrot.slane %v284, %v1286
        %v1288 = vlaneseq
        %v1289 = vshrl.u32 %v1288, 7
        %v1290 = vsub.s32 6, %v1289
        %v1291 = vrot.slane %v285, %v1290
        %v1292 = vmul.f32 %v1278, %v1287
        %v1293 = vmul.f32 %v1281, %v1291
        %v1294 = vmul.f32 %v1279, %v1287
        %v1295 = vmul.f32 %v1282, %v1291
        %v1296 = vmul.f32 %v1280, %v1287
        %v1297 = vmul.f32 %v1283, %v1291
        %s1298 = scalar_lea.vmem %s2, 288
        %v1299 = vld [vmem:[%s1298] sm:$0xff]
        %v1300 = vld [vmem:[%s1298 + $0x8] sm:$0xff]
        %v1301 = vld [vmem:[%s1298 + $0x10] sm:$0xff]
        %v1302 = vld [vmem:[%s1298 + $0x18] sm:$0xff]
        %v1303 = vld [vmem:[%s1298 + $0x20] sm:$0xff]
        %v1304 = vld [vmem:[%s1298 + $0x28] sm:$0xff]
        %v1306 = vsel %vm375, %v1299, 0
        %v1309 = vsel %vm375, %v1300, 0
        %v1312 = vsel %vm375, %v1301, 0
        %v1315 = vsel %vm375, %v1302, 0
        %v1318 = vsel %vm375, %v1303, 0
        %v1321 = vsel %vm375, %v1304, 0
        %1323 = vmatprep.subr.mxu0 %v1293
        %1324 = vmatpush1.msra.mxu0 %v1292
        %1325 = vmatprep.subr.mxu0 %v1295
        %1326 = vmatpush1.msra.mxu0 %v1294
        %1327 = vmatprep.subr.mxu0 %v1297
        %1328 = vmatpush1.msra.mxu0 %v1296
        %1329 = vmatprep.subr.mxu0 0.0
        %1330 = vmatpush1.msra.mxu0 0.0
        %1331 = vmatprep.subr.mxu0 0.0
        %1332 = vmatpush1.msra.mxu0 0.0
        %1333 = vmatprep.subr.mxu0 0.0
        %1334 = vmatpush1.msra.mxu0 0.0
        %1335 = vmatprep.subr.mxu0 0.0
        %1336 = vmatpush1.msra.mxu0 0.0
        %1337 = vmatprep.subr.mxu0 0.0
        %1338 = vmatpush1.msra.mxu0 0.0
        %1339 = vmatprep.subr.mxu0 0.0
        %1340 = vmatpush1.msra.mxu0 0.0
        %1341 = vmatprep.subr.mxu0 0.0
        %1342 = vmatpush1.msra.mxu0 0.0
        %1343 = vmatprep.subr.mxu0 0.0
        %1344 = vmatpush1.msra.mxu0 0.0
        %1345 = vmatprep.subr.mxu0 0.0
        %1346 = vmatpush1.msra.mxu0 0.0
        %1347 = vmatprep.subr.mxu0 0.0
        %1348 = vmatpush1.msra.mxu0 0.0
        %1349 = vmatprep.subr.mxu0 0.0
        %1350 = vmatpush1.msra.mxu0 0.0
        %1351 = vmatprep.subr.mxu0 0.0
        %1352 = vmatpush1.msra.mxu0 0.0
        %1353 = vmatprep.subr.mxu0 0.0
        %1354 = vmatpush1.msra.mxu0 0.0
        %1355 = vmatprep.subr.mxu0 0.0
        %1356 = vmatpush1.msra.mxu0 0.0
        %1357 = vmatprep.subr.mxu0 0.0
        %1358 = vmatpush1.msra.mxu0 0.0
        %1359 = vmatprep.subr.mxu0 0.0
        %1360 = vmatpush1.msra.mxu0 0.0
        %1361 = vmatprep.subr.mxu0 0.0
        %1362 = vmatpush1.msra.mxu0 0.0
        %1363 = vmatprep.subr.mxu0 0.0
        %1364 = vmatpush1.msra.mxu0 0.0
        %1365 = vmatprep.subr.mxu0 0.0
        %1366 = vmatpush1.msra.mxu0 0.0
        %1367 = vmatprep.subr.mxu0 0.0
        %1368 = vmatpush1.msra.mxu0 0.0
        %1369 = vmatprep.subr.mxu0 0.0
        %1370 = vmatpush1.msra.mxu0 0.0
        %1371 = vmatprep.subr.mxu0 0.0
        %1372 = vmatpush1.msra.mxu0 0.0
        %1373 = vmatprep.subr.mxu0 0.0
        %1374 = vmatpush1.msra.mxu0 0.0
        %1375 = vmatprep.subr.mxu0 0.0
        %1376 = vmatpush1.msra.mxu0 0.0
        %1377 = vmatprep.subr.mxu0 0.0
        %1378 = vmatpush1.msra.mxu0 0.0
        %1379 = vmatprep.subr.mxu0 0.0
        %1380 = vmatpush1.msra.mxu0 0.0
        %1381 = vmatprep.subr.mxu0 0.0
        %1382 = vmatpush1.msra.mxu0 0.0
        %1383 = vmatprep.subr.mxu0 0.0
        %1384 = vmatpush1.msra.mxu0 0.0
        %1385 = vmatprep.subr.mxu0 0.0
        %1386 = vmatpush1.msra.mxu0 0.0
        %1387 = vmatprep.mubr.f32.mxu0 0.0
        %1388 = vmatmul.mubr.f32.gmra.mrb[0].mxu0 %v1306
        %v1389 = vpop.f32.mrb[0].mxu0
        %v1390 = vadd.f32 0.0, %v1389
        %v1391 = vpop.f32.mrb[0].mxu0
        %v1392 = vadd.f32 0.0, %v1391
        %1393 = vmatprep.mubr.f32.mxu0 0.0
        %1394 = vmatmul.mubr.f32.gmra.mrb[0].mxu0 %v1309
        %v1395 = vpop.f32.mrb[0].mxu0
        %v1396 = vadd.f32 0.0, %v1395
        %v1397 = vpop.f32.mrb[0].mxu0
        %v1398 = vadd.f32 0.0, %v1397
        %1399 = vmatprep.mubr.f32.mxu0 0.0
        %1400 = vmatmul.mubr.f32.gmra.mrb[0].mxu0 %v1312
        %v1401 = vpop.f32.mrb[0].mxu0
        %v1402 = vadd.f32 0.0, %v1401
        %v1403 = vpop.f32.mrb[0].mxu0
        %v1404 = vadd.f32 0.0, %v1403
        %1405 = vmatprep.mubr.f32.mxu0 0.0
        %1406 = vmatmul.mubr.f32.gmra.mrb[0].mxu0 %v1315
        %v1407 = vpop.f32.mrb[0].mxu0
        %v1408 = vadd.f32 0.0, %v1407
        %v1409 = vpop.f32.mrb[0].mxu0
        %v1410 = vadd.f32 0.0, %v1409
        %1411 = vmatprep.mubr.f32.mxu0 0.0
        %1412 = vmatmul.mubr.f32.gmra.mrb[0].mxu0 %v1318
        %v1413 = vpop.f32.mrb[0].mxu0
        %v1414 = vadd.f32 0.0, %v1413
        %v1415 = vpop.f32.mrb[0].mxu0
        %v1416 = vadd.f32 0.0, %v1415
        %1417 = vmatprep.mubr.f32.mxu0 0.0
        %1418 = vmatmul.mubr.f32.gmra.mrb[0].mxu0 %v1321
        %v1419 = vpop.f32.mrb[0].mxu0
        %v1420 = vadd.f32 0.0, %v1419
        %v1421 = vpop.f32.mrb[0].mxu0
        %v1422 = vadd.f32 0.0, %v1421
        %1423 = vdwg.mxu0
        %v1424 = vadd.f32 %v1253, %v1390
        %v1425 = vadd.f32 %v1254, %v1392
        %v1426 = vadd.f32 %v1255, %v1396
        %v1427 = vadd.f32 %v1256, %v1398
        %v1428 = vadd.f32 %v1257, %v1402
        %v1429 = vadd.f32 %v1258, %v1404
        %v1430 = vadd.f32 %v1259, %v1408
        %v1431 = vadd.f32 %v1260, %v1410
        %v1432 = vadd.f32 %v1261, %v1414
        %v1433 = vadd.f32 %v1262, %v1416
        %v1434 = vadd.f32 %v1263, %v1420
        %v1435 = vadd.f32 %v1264, %v1422
        %1436 = vrot.lane.b32.xlu0 %v288, 112
        %v1437 = vpop.permute.xlu0 %1436
        %1438 = vrot.lane.b32.xlu0 %v290, 112
        %v1439 = vpop.permute.xlu0 %1438
        %1440 = vrot.lane.b32.xlu0 %v292, 112
        %v1441 = vpop.permute.xlu0 %1440
        %1442 = vrot.lane.b32.xlu0 %v289, 112
        %v1443 = vpop.permute.xlu0 %1442
        %1444 = vrot.lane.b32.xlu0 %v291, 112
        %v1445 = vpop.permute.xlu0 %1444
        %1446 = vrot.lane.b32.xlu0 %v293, 112
        %v1447 = vpop.permute.xlu0 %1446
        %vm1448 = vcmp.lt.s32.totalorder %v307, 112
        %v1449 = vsel %vm1448, %v1437, %v1443
        %v1450 = vsel %vm1448, %v1439, %v1445
        %v1451 = vsel %vm1448, %v1441, %v1447
        %v1452 = vsel %vm1448, %v1443, %v1437
        %v1453 = vsel %vm1448, %v1445, %v1439
        %v1454 = vsel %vm1448, %v1447, %v1441
        %v1455 = vlaneseq
        %v1456 = vshrl.u32 %v1455, 7
        %v1457 = vsub.s32 7, %v1456
        %v1458 = vrot.slane %v284, %v1457
        %v1459 = vlaneseq
        %v1460 = vshrl.u32 %v1459, 7
        %v1461 = vsub.s32 7, %v1460
        %v1462 = vrot.slane %v285, %v1461
        %v1463 = vmul.f32 %v1449, %v1458
        %v1464 = vmul.f32 %v1452, %v1462
        %v1465 = vmul.f32 %v1450, %v1458
        %v1466 = vmul.f32 %v1453, %v1462
        %v1467 = vmul.f32 %v1451, %v1458
        %v1468 = vmul.f32 %v1454, %v1462
        %s1469 = scalar_lea.vmem %s2, 336
        %v1470 = vld [vmem:[%s1469] sm:$0xff]
        %v1471 = vld [vmem:[%s1469 + $0x8] sm:$0xff]
        %v1472 = vld [vmem:[%s1469 + $0x10] sm:$0xff]
        %v1473 = vld [vmem:[%s1469 + $0x18] sm:$0xff]
        %v1474 = vld [vmem:[%s1469 + $0x20] sm:$0xff]
        %v1475 = vld [vmem:[%s1469 + $0x28] sm:$0xff]
        %v1477 = vsel %vm375, %v1470, 0
        %v1480 = vsel %vm375, %v1471, 0
        %v1483 = vsel %vm375, %v1472, 0
        %v1486 = vsel %vm375, %v1473, 0
        %v1489 = vsel %vm375, %v1474, 0
        %v1492 = vsel %vm375, %v1475, 0
        %1494 = vmatprep.subr.mxu0 %v1464
        %1495 = vmatpush1.msra.mxu0 %v1463
        %1496 = vmatprep.subr.mxu0 %v1466
        %1497 = vmatpush1.msra.mxu0 %v1465
        %1498 = vmatprep.subr.mxu0 %v1468
        %1499 = vmatpush1.msra.mxu0 %v1467
        %1500 = vmatprep.subr.mxu0 0.0
        %1501 = vmatpush1.msra.mxu0 0.0
        %1502 = vmatprep.subr.mxu0 0.0
        %1503 = vmatpush1.msra.mxu0 0.0
        %1504 = vmatprep.subr.mxu0 0.0
        %1505 = vmatpush1.msra.mxu0 0.0
        %1506 = vmatprep.subr.mxu0 0.0
        %1507 = vmatpush1.msra.mxu0 0.0
        %1508 = vmatprep.subr.mxu0 0.0
        %1509 = vmatpush1.msra.mxu0 0.0
        %1510 = vmatprep.subr.mxu0 0.0
        %1511 = vmatpush1.msra.mxu0 0.0
        %1512 = vmatprep.subr.mxu0 0.0
        %1513 = vmatpush1.msra.mxu0 0.0
        %1514 = vmatprep.subr.mxu0 0.0
        %1515 = vmatpush1.msra.mxu0 0.0
        %1516 = vmatprep.subr.mxu0 0.0
        %1517 = vmatpush1.msra.mxu0 0.0
        %1518 = vmatprep.subr.mxu0 0.0
        %1519 = vmatpush1.msra.mxu0 0.0
        %1520 = vmatprep.subr.mxu0 0.0
        %1521 = vmatpush1.msra.mxu0 0.0
        %1522 = vmatprep.subr.mxu0 0.0
        %1523 = vmatpush1.msra.mxu0 0.0
        %1524 = vmatprep.subr.mxu0 0.0
        %1525 = vmatpush1.msra.mxu0 0.0
        %1526 = vmatprep.subr.mxu0 0.0
        %1527 = vmatpush1.msra.mxu0 0.0
        %1528 = vmatprep.subr.mxu0 0.0
        %1529 = vmatpush1.msra.mxu0 0.0
        %1530 = vmatprep.subr.mxu0 0.0
        %1531 = vmatpush1.msra.mxu0 0.0
        %1532 = vmatprep.subr.mxu0 0.0
        %1533 = vmatpush1.msra.mxu0 0.0
        %1534 = vmatprep.subr.mxu0 0.0
        %1535 = vmatpush1.msra.mxu0 0.0
        %1536 = vmatprep.subr.mxu0 0.0
        %1537 = vmatpush1.msra.mxu0 0.0
        %1538 = vmatprep.subr.mxu0 0.0
        %1539 = vmatpush1.msra.mxu0 0.0
        %1540 = vmatprep.subr.mxu0 0.0
        %1541 = vmatpush1.msra.mxu0 0.0
        %1542 = vmatprep.subr.mxu0 0.0
        %1543 = vmatpush1.msra.mxu0 0.0
        %1544 = vmatprep.subr.mxu0 0.0
        %1545 = vmatpush1.msra.mxu0 0.0
        %1546 = vmatprep.subr.mxu0 0.0
        %1547 = vmatpush1.msra.mxu0 0.0
        %1548 = vmatprep.subr.mxu0 0.0
        %1549 = vmatpush1.msra.mxu0 0.0
        %1550 = vmatprep.subr.mxu0 0.0
        %1551 = vmatpush1.msra.mxu0 0.0
        %1552 = vmatprep.subr.mxu0 0.0
        %1553 = vmatpush1.msra.mxu0 0.0
        %1554 = vmatprep.subr.mxu0 0.0
        %1555 = vmatpush1.msra.mxu0 0.0
        %1556 = vmatprep.subr.mxu0 0.0
        %1557 = vmatpush1.msra.mxu0 0.0
        %1558 = vmatprep.mubr.f32.mxu0 0.0
        %1559 = vmatmul.mubr.f32.gmra.mrb[0].mxu0 %v1477
        %v1560 = vpop.f32.mrb[0].mxu0
        %v1561 = vadd.f32 0.0, %v1560
        %v1562 = vpop.f32.mrb[0].mxu0
        %v1563 = vadd.f32 0.0, %v1562
        %1564 = vmatprep.mubr.f32.mxu0 0.0
        %1565 = vmatmul.mubr.f32.gmra.mrb[0].mxu0 %v1480
        %v1566 = vpop.f32.mrb[0].mxu0
        %v1567 = vadd.f32 0.0, %v1566
        %v1568 = vpop.f32.mrb[0].mxu0
        %v1569 = vadd.f32 0.0, %v1568
        %1570 = vmatprep.mubr.f32.mxu0 0.0
        %1571 = vmatmul.mubr.f32.gmra.mrb[0].mxu0 %v1483
        %v1572 = vpop.f32.mrb[0].mxu0
        %v1573 = vadd.f32 0.0, %v1572
        %v1574 = vpop.f32.mrb[0].mxu0
        %v1575 = vadd.f32 0.0, %v1574
        %1576 = vmatprep.mubr.f32.mxu0 0.0
        %1577 = vmatmul.mubr.f32.gmra.mrb[0].mxu0 %v1486
        %v1578 = vpop.f32.mrb[0].mxu0
        %v1579 = vadd.f32 0.0, %v1578
        %v1580 = vpop.f32.mrb[0].mxu0
        %v1581 = vadd.f32 0.0, %v1580
        %1582 = vmatprep.mubr.f32.mxu0 0.0
        %1583 = vmatmul.mubr.f32.gmra.mrb[0].mxu0 %v1489
        %v1584 = vpop.f32.mrb[0].mxu0
        %v1585 = vadd.f32 0.0, %v1584
        %v1586 = vpop.f32.mrb[0].mxu0
        %v1587 = vadd.f32 0.0, %v1586
        %1588 = vmatprep.mubr.f32.mxu0 0.0
        %1589 = vmatmul.mubr.f32.gmra.mrb[0].mxu0 %v1492
        %v1590 = vpop.f32.mrb[0].mxu0
        %v1591 = vadd.f32 0.0, %v1590
        %v1592 = vpop.f32.mrb[0].mxu0
        %v1593 = vadd.f32 0.0, %v1592
        %1594 = vdwg.mxu0
        %v1595 = vadd.f32 %v1424, %v1561
        %v1596 = vadd.f32 %v1425, %v1563
        %v1597 = vadd.f32 %v1426, %v1567
        %v1598 = vadd.f32 %v1427, %v1569
        %v1599 = vadd.f32 %v1428, %v1573
        %v1600 = vadd.f32 %v1429, %v1575
        %v1601 = vadd.f32 %v1430, %v1579
        %v1602 = vadd.f32 %v1431, %v1581
        %v1603 = vadd.f32 %v1432, %v1585
        %v1604 = vadd.f32 %v1433, %v1587
        %v1605 = vadd.f32 %v1434, %v1591
        %v1606 = vadd.f32 %v1435, %v1593
        %1607 = vrot.lane.b32.xlu0 %v288, 111
        %v1608 = vpop.permute.xlu0 %1607
        %1609 = vrot.lane.b32.xlu0 %v290, 111
        %v1610 = vpop.permute.xlu0 %1609
        %1611 = vrot.lane.b32.xlu0 %v292, 111
        %v1612 = vpop.permute.xlu0 %1611
        %1613 = vrot.lane.b32.xlu0 %v289, 111
        %v1614 = vpop.permute.xlu0 %1613
        %1615 = vrot.lane.b32.xlu0 %v291, 111
        %v1616 = vpop.permute.xlu0 %1615
        %1617 = vrot.lane.b32.xlu0 %v293, 111
        %v1618 = vpop.permute.xlu0 %1617
        %vm1619 = vcmp.lt.s32.totalorder %v307, 111
        %v1620 = vsel %vm1619, %v1608, %v1614
        %v1621 = vsel %vm1619, %v1610, %v1616
        %v1622 = vsel %vm1619, %v1612, %v1618
        %v1623 = vsel %vm1619, %v1614, %v1608
        %v1624 = vsel %vm1619, %v1616, %v1610
        %v1625 = vsel %vm1619, %v1618, %v1612
        %v1626 = vlaneseq
        %v1627 = vshrl.u32 %v1626, 7
        %v1628 = vsub.s32 0, %v1627
        %v1629 = vrot.slane %v286, %v1628
        %v1630 = vlaneseq
        %v1631 = vshrl.u32 %v1630, 7
        %v1632 = vsub.s32 0, %v1631
        %v1633 = vrot.slane %v287, %v1632
        %v1634 = vmul.f32 %v1620, %v1629
        %v1635 = vmul.f32 %v1623, %v1633
        %v1636 = vmul.f32 %v1621, %v1629
        %v1637 = vmul.f32 %v1624, %v1633
        %v1638 = vmul.f32 %v1622, %v1629
        %v1639 = vmul.f32 %v1625, %v1633
        %s1640 = scalar_lea.vmem %s2, 384
        %v1641 = vld [vmem:[%s1640] sm:$0xff]
        %v1642 = vld [vmem:[%s1640 + $0x8] sm:$0xff]
        %v1643 = vld [vmem:[%s1640 + $0x10] sm:$0xff]
        %v1644 = vld [vmem:[%s1640 + $0x18] sm:$0xff]
        %v1645 = vld [vmem:[%s1640 + $0x20] sm:$0xff]
        %v1646 = vld [vmem:[%s1640 + $0x28] sm:$0xff]
        %v1648 = vsel %vm375, %v1641, 0
        %v1651 = vsel %vm375, %v1642, 0
        %v1654 = vsel %vm375, %v1643, 0
        %v1657 = vsel %vm375, %v1644, 0
        %v1660 = vsel %vm375, %v1645, 0
        %v1663 = vsel %vm375, %v1646, 0
        %1665 = vmatprep.subr.mxu0 %v1635
        %1666 = vmatpush1.msra.mxu0 %v1634
        %1667 = vmatprep.subr.mxu0 %v1637
        %1668 = vmatpush1.msra.mxu0 %v1636
        %1669 = vmatprep.subr.mxu0 %v1639
        %1670 = vmatpush1.msra.mxu0 %v1638
        %1671 = vmatprep.subr.mxu0 0.0
        %1672 = vmatpush1.msra.mxu0 0.0
        %1673 = vmatprep.subr.mxu0 0.0
        %1674 = vmatpush1.msra.mxu0 0.0
        %1675 = vmatprep.subr.mxu0 0.0
        %1676 = vmatpush1.msra.mxu0 0.0
        %1677 = vmatprep.subr.mxu0 0.0
        %1678 = vmatpush1.msra.mxu0 0.0
        %1679 = vmatprep.subr.mxu0 0.0
        %1680 = vmatpush1.msra.mxu0 0.0
        %1681 = vmatprep.subr.mxu0 0.0
        %1682 = vmatpush1.msra.mxu0 0.0
        %1683 = vmatprep.subr.mxu0 0.0
        %1684 = vmatpush1.msra.mxu0 0.0
        %1685 = vmatprep.subr.mxu0 0.0
        %1686 = vmatpush1.msra.mxu0 0.0
        %1687 = vmatprep.subr.mxu0 0.0
        %1688 = vmatpush1.msra.mxu0 0.0
        %1689 = vmatprep.subr.mxu0 0.0
        %1690 = vmatpush1.msra.mxu0 0.0
        %1691 = vmatprep.subr.mxu0 0.0
        %1692 = vmatpush1.msra.mxu0 0.0
        %1693 = vmatprep.subr.mxu0 0.0
        %1694 = vmatpush1.msra.mxu0 0.0
        %1695 = vmatprep.subr.mxu0 0.0
        %1696 = vmatpush1.msra.mxu0 0.0
        %1697 = vmatprep.subr.mxu0 0.0
        %1698 = vmatpush1.msra.mxu0 0.0
        %1699 = vmatprep.subr.mxu0 0.0
        %1700 = vmatpush1.msra.mxu0 0.0
        %1701 = vmatprep.subr.mxu0 0.0
        %1702 = vmatpush1.msra.mxu0 0.0
        %1703 = vmatprep.subr.mxu0 0.0
        %1704 = vmatpush1.msra.mxu0 0.0
        %1705 = vmatprep.subr.mxu0 0.0
        %1706 = vmatpush1.msra.mxu0 0.0
        %1707 = vmatprep.subr.mxu0 0.0
        %1708 = vmatpush1.msra.mxu0 0.0
        %1709 = vmatprep.subr.mxu0 0.0
        %1710 = vmatpush1.msra.mxu0 0.0
        %1711 = vmatprep.subr.mxu0 0.0
        %1712 = vmatpush1.msra.mxu0 0.0
        %1713 = vmatprep.subr.mxu0 0.0
        %1714 = vmatpush1.msra.mxu0 0.0
        %1715 = vmatprep.subr.mxu0 0.0
        %1716 = vmatpush1.msra.mxu0 0.0
        %1717 = vmatprep.subr.mxu0 0.0
        %1718 = vmatpush1.msra.mxu0 0.0
        %1719 = vmatprep.subr.mxu0 0.0
        %1720 = vmatpush1.msra.mxu0 0.0
        %1721 = vmatprep.subr.mxu0 0.0
        %1722 = vmatpush1.msra.mxu0 0.0
        %1723 = vmatprep.subr.mxu0 0.0
        %1724 = vmatpush1.msra.mxu0 0.0
        %1725 = vmatprep.subr.mxu0 0.0
        %1726 = vmatpush1.msra.mxu0 0.0
        %1727 = vmatprep.subr.mxu0 0.0
        %1728 = vmatpush1.msra.mxu0 0.0
        %1729 = vmatprep.mubr.f32.mxu0 0.0
        %1730 = vmatmul.mubr.f32.gmra.mrb[0].mxu0 %v1648
        %v1731 = vpop.f32.mrb[0].mxu0
        %v1732 = vadd.f32 0.0, %v1731
        %v1733 = vpop.f32.mrb[0].mxu0
        %v1734 = vadd.f32 0.0, %v1733
        %1735 = vmatprep.mubr.f32.mxu0 0.0
        %1736 = vmatmul.mubr.f32.gmra.mrb[0].mxu0 %v1651
        %v1737 = vpop.f32.mrb[0].mxu0
        %v1738 = vadd.f32 0.0, %v1737
        %v1739 = vpop.f32.mrb[0].mxu0
        %v1740 = vadd.f32 0.0, %v1739
        %1741 = vmatprep.mubr.f32.mxu0 0.0
        %1742 = vmatmul.mubr.f32.gmra.mrb[0].mxu0 %v1654
        %v1743 = vpop.f32.mrb[0].mxu0
        %v1744 = vadd.f32 0.0, %v1743
        %v1745 = vpop.f32.mrb[0].mxu0
        %v1746 = vadd.f32 0.0, %v1745
        %1747 = vmatprep.mubr.f32.mxu0 0.0
        %1748 = vmatmul.mubr.f32.gmra.mrb[0].mxu0 %v1657
        %v1749 = vpop.f32.mrb[0].mxu0
        %v1750 = vadd.f32 0.0, %v1749
        %v1751 = vpop.f32.mrb[0].mxu0
        %v1752 = vadd.f32 0.0, %v1751
        %1753 = vmatprep.mubr.f32.mxu0 0.0
        %1754 = vmatmul.mubr.f32.gmra.mrb[0].mxu0 %v1660
        %v1755 = vpop.f32.mrb[0].mxu0
        %v1756 = vadd.f32 0.0, %v1755
        %v1757 = vpop.f32.mrb[0].mxu0
        %v1758 = vadd.f32 0.0, %v1757
        %1759 = vmatprep.mubr.f32.mxu0 0.0
        %1760 = vmatmul.mubr.f32.gmra.mrb[0].mxu0 %v1663
        %v1761 = vpop.f32.mrb[0].mxu0
        %v1762 = vadd.f32 0.0, %v1761
        %v1763 = vpop.f32.mrb[0].mxu0
        %v1764 = vadd.f32 0.0, %v1763
        %1765 = vdwg.mxu0
        %v1766 = vadd.f32 %v1595, %v1732
        %v1767 = vadd.f32 %v1596, %v1734
        %v1768 = vadd.f32 %v1597, %v1738
        %v1769 = vadd.f32 %v1598, %v1740
        %v1770 = vadd.f32 %v1599, %v1744
        %v1771 = vadd.f32 %v1600, %v1746
        %v1772 = vadd.f32 %v1601, %v1750
        %v1773 = vadd.f32 %v1602, %v1752
        %v1774 = vadd.f32 %v1603, %v1756
        %v1775 = vadd.f32 %v1604, %v1758
        %v1776 = vadd.f32 %v1605, %v1762
        %v1777 = vadd.f32 %v1606, %v1764
        %v1778 = vld [vmem:[%s3] sm:$0xff]
        %v1779 = vld [vmem:[%s3 + $0x8] sm:$0xff]
        %v1780 = vld [vmem:[%s3 + $0x10] sm:$0xff]
        %v1781 = vld [vmem:[%s3 + $0x18] sm:$0xff]
        %v1782 = vld [vmem:[%s3 + $0x20] sm:$0xff]
        %v1783 = vld [vmem:[%s3 + $0x28] sm:$0xff]
        %v1784 = vld [vmem:[%s3 + $0x30] sm:$0xff]
        %v1785 = vld [vmem:[%s3 + $0x38] sm:$0xff]
        %v1786 = vld [vmem:[%s3 + $0x40] sm:$0xff]
        %v1787 = vld [vmem:[%s3 + $0x48] sm:$0xff]
        %v1788 = vld [vmem:[%s3 + $0x50] sm:$0xff]
        %v1789 = vld [vmem:[%s3 + $0x58] sm:$0xff]
        %v1790 = vadd.f32 %v1766, %v1778
        %v1791 = vadd.f32 %v1767, %v1779
        %v1792 = vadd.f32 %v1768, %v1780
        %v1793 = vadd.f32 %v1769, %v1781
        %v1794 = vadd.f32 %v1770, %v1782
        %v1795 = vadd.f32 %v1771, %v1783
        %v1796 = vadd.f32 %v1772, %v1784
        %v1797 = vadd.f32 %v1773, %v1785
        %v1798 = vadd.f32 %v1774, %v1786
        %v1799 = vadd.f32 %v1775, %v1787
        %v1800 = vadd.f32 %v1776, %v1788
        %v1801 = vadd.f32 %v1777, %v1789
        %v1802 = vsub.f32 0.0, %v1790
        %v1803 = vsub.f32 0.0, %v1791
        %v1804 = vsub.f32 0.0, %v1792
        %v1805 = vsub.f32 0.0, %v1793
        %v1806 = vsub.f32 0.0, %v1794
        %v1807 = vsub.f32 0.0, %v1795
        %v1808 = vsub.f32 0.0, %v1796
        %v1809 = vsub.f32 0.0, %v1797
        %v1810 = vsub.f32 0.0, %v1798
        %v1811 = vsub.f32 0.0, %v1799
        %v1812 = vsub.f32 0.0, %v1800
        %v1813 = vsub.f32 0.0, %v1801
        %v1814 = vmul.f32 %v1802, 1.442695
        %v1815 = vpow.pop %v1814
        %v1816 = vmul.f32 %v1803, 1.442695
        %v1817 = vpow.pop %v1816
        %v1818 = vmul.f32 %v1804, 1.442695
        %v1819 = vpow.pop %v1818
        %v1820 = vmul.f32 %v1805, 1.442695
        %v1821 = vpow.pop %v1820
        %v1822 = vmul.f32 %v1806, 1.442695
        %v1823 = vpow.pop %v1822
        %v1824 = vmul.f32 %v1807, 1.442695
        %v1825 = vpow.pop %v1824
        %v1826 = vmul.f32 %v1808, 1.442695
        %v1827 = vpow.pop %v1826
        %v1828 = vmul.f32 %v1809, 1.442695
        %v1829 = vpow.pop %v1828
        %v1830 = vmul.f32 %v1810, 1.442695
        %v1831 = vpow.pop %v1830
        %v1832 = vmul.f32 %v1811, 1.442695
        %v1833 = vpow.pop %v1832
        %v1834 = vmul.f32 %v1812, 1.442695
        %v1835 = vpow.pop %v1834
        %v1836 = vmul.f32 %v1813, 1.442695
        %v1837 = vpow.pop %v1836
        %v1838 = vadd.f32 %v1815, 1.0
        %v1839 = vadd.f32 %v1817, 1.0
        %v1840 = vadd.f32 %v1819, 1.0
        %v1841 = vadd.f32 %v1821, 1.0
        %v1842 = vadd.f32 %v1823, 1.0
        %v1843 = vadd.f32 %v1825, 1.0
        %v1844 = vadd.f32 %v1827, 1.0
        %v1845 = vadd.f32 %v1829, 1.0
        %v1846 = vadd.f32 %v1831, 1.0
        %v1847 = vadd.f32 %v1833, 1.0
        %v1848 = vadd.f32 %v1835, 1.0
        %v1849 = vadd.f32 %v1837, 1.0
        %v1850 = vrcp.pop %v1838
        %v1851 = vrcp.pop %v1839
        %v1852 = vrcp.pop %v1840
        %v1853 = vrcp.pop %v1841
        %v1854 = vrcp.pop %v1842
        %v1855 = vrcp.pop %v1843
        %v1856 = vrcp.pop %v1844
        %v1857 = vrcp.pop %v1845
        %v1858 = vrcp.pop %v1846
        %v1859 = vrcp.pop %v1847
        %v1860 = vrcp.pop %v1848
        %v1861 = vrcp.pop %v1849
        %1862 = vrot.lane.b32.xlu0 %v1850, 17
        %v1863 = vpop.permute.xlu0 %1862
        %1864 = vrot.lane.b32.xlu0 %v1852, 17
        %v1865 = vpop.permute.xlu0 %1864
        %1866 = vrot.lane.b32.xlu0 %v1854, 17
        %v1867 = vpop.permute.xlu0 %1866
        %1868 = vrot.lane.b32.xlu0 %v1856, 17
        %v1869 = vpop.permute.xlu0 %1868
        %1870 = vrot.lane.b32.xlu0 %v1858, 17
        %v1871 = vpop.permute.xlu0 %1870
        %1872 = vrot.lane.b32.xlu0 %v1860, 17
        %v1873 = vpop.permute.xlu0 %1872
        %1874 = vrot.lane.b32.xlu0 %v1851, 17
        %v1875 = vpop.permute.xlu0 %1874
        %1876 = vrot.lane.b32.xlu0 %v1853, 17
        %v1877 = vpop.permute.xlu0 %1876
        %1878 = vrot.lane.b32.xlu0 %v1855, 17
        %v1879 = vpop.permute.xlu0 %1878
        %1880 = vrot.lane.b32.xlu0 %v1857, 17
        %v1881 = vpop.permute.xlu0 %1880
        %1882 = vrot.lane.b32.xlu0 %v1859, 17
        %v1883 = vpop.permute.xlu0 %1882
        %1884 = vrot.lane.b32.xlu0 %v1861, 17
        %v1885 = vpop.permute.xlu0 %1884
        %v1886 = vsel %vm308, %v1863, %v1875
        %v1887 = vsel %vm308, %v1865, %v1877
        %v1888 = vsel %vm308, %v1867, %v1879
        %v1889 = vsel %vm308, %v1869, %v1881
        %v1890 = vsel %vm308, %v1871, %v1883
        %v1891 = vsel %vm308, %v1873, %v1885
        %v1892 = vsel %vm308, %v1875, %v1863
        %v1893 = vsel %vm308, %v1877, %v1865
        %v1894 = vsel %vm308, %v1879, %v1867
        %v1895 = vsel %vm308, %v1881, %v1869
        %v1896 = vsel %vm308, %v1883, %v1871
        %v1897 = vsel %vm308, %v1885, %v1873
        %v1898 = vmul.f32 %v1892, %v318
        %v1899 = vmul.f32 %v1886, %v322
        %v1900 = vmul.f32 %v1893, %v318
        %v1901 = vmul.f32 %v1887, %v322
        %v1902 = vmul.f32 %v1894, %v318
        %v1903 = vmul.f32 %v1888, %v322
        %v1904 = vmul.f32 %v1895, %v318
        %v1905 = vmul.f32 %v1889, %v322
        %v1906 = vmul.f32 %v1896, %v318
        %v1907 = vmul.f32 %v1890, %v322
        %v1908 = vmul.f32 %v1897, %v318
        %v1909 = vmul.f32 %v1891, %v322
        %v1910 = vld [vmem:[%s4] sm:$0xff]
        %1911 = vrot.lane.b32.xlu0 %v1850, 16
        %v1912 = vpop.permute.xlu0 %1911
        %1913 = vrot.lane.b32.xlu0 %v1852, 16
        %v1914 = vpop.permute.xlu0 %1913
        %1915 = vrot.lane.b32.xlu0 %v1854, 16
        %v1916 = vpop.permute.xlu0 %1915
        %1917 = vrot.lane.b32.xlu0 %v1856, 16
        %v1918 = vpop.permute.xlu0 %1917
        %1919 = vrot.lane.b32.xlu0 %v1858, 16
        %v1920 = vpop.permute.xlu0 %1919
        %1921 = vrot.lane.b32.xlu0 %v1860, 16
        %v1922 = vpop.permute.xlu0 %1921
        %1923 = vrot.lane.b32.xlu0 %v1851, 16
        %v1924 = vpop.permute.xlu0 %1923
        %1925 = vrot.lane.b32.xlu0 %v1853, 16
        %v1926 = vpop.permute.xlu0 %1925
        %1927 = vrot.lane.b32.xlu0 %v1855, 16
        %v1928 = vpop.permute.xlu0 %1927
        %1929 = vrot.lane.b32.xlu0 %v1857, 16
        %v1930 = vpop.permute.xlu0 %1929
        %1931 = vrot.lane.b32.xlu0 %v1859, 16
        %v1932 = vpop.permute.xlu0 %1931
        %1933 = vrot.lane.b32.xlu0 %v1861, 16
        %v1934 = vpop.permute.xlu0 %1933
        %v1935 = vsel %vm347, %v1912, %v1924
        %v1936 = vsel %vm347, %v1914, %v1926
        %v1937 = vsel %vm347, %v1916, %v1928
        %v1938 = vsel %vm347, %v1918, %v1930
        %v1939 = vsel %vm347, %v1920, %v1932
        %v1940 = vsel %vm347, %v1922, %v1934
        %v1941 = vsel %vm347, %v1924, %v1912
        %v1942 = vsel %vm347, %v1926, %v1914
        %v1943 = vsel %vm347, %v1928, %v1916
        %v1944 = vsel %vm347, %v1930, %v1918
        %v1945 = vsel %vm347, %v1932, %v1920
        %v1946 = vsel %vm347, %v1934, %v1922
        %v1947 = vmul.f32 %v1941, %v357
        %v1948 = vmul.f32 %v1935, %v361
        %v1949 = vmul.f32 %v1942, %v357
        %v1950 = vmul.f32 %v1936, %v361
        %v1951 = vmul.f32 %v1943, %v357
        %v1952 = vmul.f32 %v1937, %v361
        %v1953 = vmul.f32 %v1944, %v357
        %v1954 = vmul.f32 %v1938, %v361
        %v1955 = vmul.f32 %v1945, %v357
        %v1956 = vmul.f32 %v1939, %v361
        %v1957 = vmul.f32 %v1946, %v357
        %v1958 = vmul.f32 %v1940, %v361
        %s1959 = scalar_lea.vmem %s4, 8
        %v1960 = vld [vmem:[%s1959] sm:$0xff]
        %vm1961 = vcmask 392192
        %v1963 = vsel %vm1961, %v1960, 0
        %1965 = vmatprep.subr.mxu0 %v1948
        %1966 = vmatpush1.msra.mxu0 %v1947
        %1967 = vmatprep.subr.mxu0 %v1950
        %1968 = vmatpush1.msra.mxu0 %v1949
        %1969 = vmatprep.subr.mxu0 %v1952
        %1970 = vmatpush1.msra.mxu0 %v1951
        %1971 = vmatprep.subr.mxu0 %v1954
        %1972 = vmatpush1.msra.mxu0 %v1953
        %1973 = vmatprep.subr.mxu0 %v1956
        %1974 = vmatpush1.msra.mxu0 %v1955
        %1975 = vmatprep.subr.mxu0 %v1958
        %1976 = vmatpush1.msra.mxu0 %v1957
        %1977 = vmatprep.subr.mxu0 0.0
        %1978 = vmatpush1.msra.mxu0 0.0
        %1979 = vmatprep.subr.mxu0 0.0
        %1980 = vmatpush1.msra.mxu0 0.0
        %1981 = vmatprep.subr.mxu0 0.0
        %1982 = vmatpush1.msra.mxu0 0.0
        %1983 = vmatprep.subr.mxu0 0.0
        %1984 = vmatpush1.msra.mxu0 0.0
        %1985 = vmatprep.subr.mxu0 0.0
        %1986 = vmatpush1.msra.mxu0 0.0
        %1987 = vmatprep.subr.mxu0 0.0
        %1988 = vmatpush1.msra.mxu0 0.0
        %1989 = vmatprep.subr.mxu0 0.0
        %1990 = vmatpush1.msra.mxu0 0.0
        %1991 = vmatprep.subr.mxu0 0.0
        %1992 = vmatpush1.msra.mxu0 0.0
        %1993 = vmatprep.subr.mxu0 0.0
        %1994 = vmatpush1.msra.mxu0 0.0
        %1995 = vmatprep.subr.mxu0 0.0
        %1996 = vmatpush1.msra.mxu0 0.0
        %1997 = vmatprep.subr.mxu0 0.0
        %1998 = vmatpush1.msra.mxu0 0.0
        %1999 = vmatprep.subr.mxu0 0.0
        %2000 = vmatpush1.msra.mxu0 0.0
        %2001 = vmatprep.subr.mxu0 0.0
        %2002 = vmatpush1.msra.mxu0 0.0
        %2003 = vmatprep.subr.mxu0 0.0
        %2004 = vmatpush1.msra.mxu0 0.0
        %2005 = vmatprep.subr.mxu0 0.0
        %2006 = vmatpush1.msra.mxu0 0.0
        %2007 = vmatprep.subr.mxu0 0.0
        %2008 = vmatpush1.msra.mxu0 0.0
        %2009 = vmatprep.subr.mxu0 0.0
        %2010 = vmatpush1.msra.mxu0 0.0
        %2011 = vmatprep.subr.mxu0 0.0
        %2012 = vmatpush1.msra.mxu0 0.0
        %2013 = vmatprep.subr.mxu0 0.0
        %2014 = vmatpush1.msra.mxu0 0.0
        %2015 = vmatprep.subr.mxu0 0.0
        %2016 = vmatpush1.msra.mxu0 0.0
        %2017 = vmatprep.subr.mxu0 0.0
        %2018 = vmatpush1.msra.mxu0 0.0
        %2019 = vmatprep.subr.mxu0 0.0
        %2020 = vmatpush1.msra.mxu0 0.0
        %2021 = vmatprep.subr.mxu0 0.0
        %2022 = vmatpush1.msra.mxu0 0.0
        %2023 = vmatprep.subr.mxu0 0.0
        %2024 = vmatpush1.msra.mxu0 0.0
        %2025 = vmatprep.subr.mxu0 0.0
        %2026 = vmatpush1.msra.mxu0 0.0
        %2027 = vmatprep.subr.mxu0 0.0
        %2028 = vmatpush1.msra.mxu0 0.0
        %2029 = vmatprep.mubr.f32.mxu0 0.0
        %2030 = vmatmul.mubr.f32.gmra.mrb[0].mxu0 %v1963
        %v2031 = vpop.f32.mrb[0].mxu0
        %v2032 = vadd.f32 0.0, %v2031
        %v2033 = vpop.f32.mrb[0].mxu0
        %v2034 = vadd.f32 0.0, %v2033
        %2035 = vdwg.mxu0
        %v2037 = vsel %vm1961, %v1910, 0
        %2039 = vmatprep.subr.mxu0 %v1899
        %2040 = vmatpush1.msra.mxu0 %v1898
        %2041 = vmatprep.subr.mxu0 %v1901
        %2042 = vmatpush1.msra.mxu0 %v1900
        %2043 = vmatprep.subr.mxu0 %v1903
        %2044 = vmatpush1.msra.mxu0 %v1902
        %2045 = vmatprep.subr.mxu0 %v1905
        %2046 = vmatpush1.msra.mxu0 %v1904
        %2047 = vmatprep.subr.mxu0 %v1907
        %2048 = vmatpush1.msra.mxu0 %v1906
        %2049 = vmatprep.subr.mxu0 %v1909
        %2050 = vmatpush1.msra.mxu0 %v1908
        %2051 = vmatprep.subr.mxu0 0.0
        %2052 = vmatpush1.msra.mxu0 0.0
        %2053 = vmatprep.subr.mxu0 0.0
        %2054 = vmatpush1.msra.mxu0 0.0
        %2055 = vmatprep.subr.mxu0 0.0
        %2056 = vmatpush1.msra.mxu0 0.0
        %2057 = vmatprep.subr.mxu0 0.0
        %2058 = vmatpush1.msra.mxu0 0.0
        %2059 = vmatprep.subr.mxu0 0.0
        %2060 = vmatpush1.msra.mxu0 0.0
        %2061 = vmatprep.subr.mxu0 0.0
        %2062 = vmatpush1.msra.mxu0 0.0
        %2063 = vmatprep.subr.mxu0 0.0
        %2064 = vmatpush1.msra.mxu0 0.0
        %2065 = vmatprep.subr.mxu0 0.0
        %2066 = vmatpush1.msra.mxu0 0.0
        %2067 = vmatprep.subr.mxu0 0.0
        %2068 = vmatpush1.msra.mxu0 0.0
        %2069 = vmatprep.subr.mxu0 0.0
        %2070 = vmatpush1.msra.mxu0 0.0
        %2071 = vmatprep.subr.mxu0 0.0
        %2072 = vmatpush1.msra.mxu0 0.0
        %2073 = vmatprep.subr.mxu0 0.0
        %2074 = vmatpush1.msra.mxu0 0.0
        %2075 = vmatprep.subr.mxu0 0.0
        %2076 = vmatpush1.msra.mxu0 0.0
        %2077 = vmatprep.subr.mxu0 0.0
        %2078 = vmatpush1.msra.mxu0 0.0
        %2079 = vmatprep.subr.mxu0 0.0
        %2080 = vmatpush1.msra.mxu0 0.0
        %2081 = vmatprep.subr.mxu0 0.0
        %2082 = vmatpush1.msra.mxu0 0.0
        %2083 = vmatprep.subr.mxu0 0.0
        %2084 = vmatpush1.msra.mxu0 0.0
        %2085 = vmatprep.subr.mxu0 0.0
        %2086 = vmatpush1.msra.mxu0 0.0
        %2087 = vmatprep.subr.mxu0 0.0
        %2088 = vmatpush1.msra.mxu0 0.0
        %2089 = vmatprep.subr.mxu0 0.0
        %2090 = vmatpush1.msra.mxu0 0.0
        %2091 = vmatprep.subr.mxu0 0.0
        %2092 = vmatpush1.msra.mxu0 0.0
        %2093 = vmatprep.subr.mxu0 0.0
        %2094 = vmatpush1.msra.mxu0 0.0
        %2095 = vmatprep.subr.mxu0 0.0
        %2096 = vmatpush1.msra.mxu0 0.0
        %2097 = vmatprep.subr.mxu0 0.0
        %2098 = vmatpush1.msra.mxu0 0.0
        %2099 = vmatprep.subr.mxu0 0.0
        %2100 = vmatpush1.msra.mxu0 0.0
        %2101 = vmatprep.subr.mxu0 0.0
        %2102 = vmatpush1.msra.mxu0 0.0
        %2103 = vmatprep.mubr.f32.mxu0 0.0
        %2104 = vmatmul.mubr.f32.gmra.mrb[0].mxu0 %v2037
        %v2105 = vpop.f32.mrb[0].mxu0
        %v2106 = vadd.f32 %v2032, %v2105
        %v2107 = vpop.f32.mrb[0].mxu0
        %v2108 = vadd.f32 %v2034, %v2107
        %2109 = vdwg.mxu0
        %2110 = vrot.lane.b32.xlu0 %v1850, 15
        %v2111 = vpop.permute.xlu0 %2110
        %2112 = vrot.lane.b32.xlu0 %v1852, 15
        %v2113 = vpop.permute.xlu0 %2112
        %2114 = vrot.lane.b32.xlu0 %v1854, 15
        %v2115 = vpop.permute.xlu0 %2114
        %2116 = vrot.lane.b32.xlu0 %v1856, 15
        %v2117 = vpop.permute.xlu0 %2116
        %2118 = vrot.lane.b32.xlu0 %v1858, 15
        %v2119 = vpop.permute.xlu0 %2118
        %2120 = vrot.lane.b32.xlu0 %v1860, 15
        %v2121 = vpop.permute.xlu0 %2120
        %2122 = vrot.lane.b32.xlu0 %v1851, 15
        %v2123 = vpop.permute.xlu0 %2122
        %2124 = vrot.lane.b32.xlu0 %v1853, 15
        %v2125 = vpop.permute.xlu0 %2124
        %2126 = vrot.lane.b32.xlu0 %v1855, 15
        %v2127 = vpop.permute.xlu0 %2126
        %2128 = vrot.lane.b32.xlu0 %v1857, 15
        %v2129 = vpop.permute.xlu0 %2128
        %2130 = vrot.lane.b32.xlu0 %v1859, 15
        %v2131 = vpop.permute.xlu0 %2130
        %2132 = vrot.lane.b32.xlu0 %v1861, 15
        %v2133 = vpop.permute.xlu0 %2132
        %v2134 = vsel %vm626, %v2111, %v2123
        %v2135 = vsel %vm626, %v2113, %v2125
        %v2136 = vsel %vm626, %v2115, %v2127
        %v2137 = vsel %vm626, %v2117, %v2129
        %v2138 = vsel %vm626, %v2119, %v2131
        %v2139 = vsel %vm626, %v2121, %v2133
        %v2140 = vsel %vm626, %v2123, %v2111
        %v2141 = vsel %vm626, %v2125, %v2113
        %v2142 = vsel %vm626, %v2127, %v2115
        %v2143 = vsel %vm626, %v2129, %v2117
        %v2144 = vsel %vm626, %v2131, %v2119
        %v2145 = vsel %vm626, %v2133, %v2121
        %v2146 = vmul.f32 %v2140, %v636
        %v2147 = vmul.f32 %v2134, %v640
        %v2148 = vmul.f32 %v2141, %v636
        %v2149 = vmul.f32 %v2135, %v640
        %v2150 = vmul.f32 %v2142, %v636
        %v2151 = vmul.f32 %v2136, %v640
        %v2152 = vmul.f32 %v2143, %v636
        %v2153 = vmul.f32 %v2137, %v640
        %v2154 = vmul.f32 %v2144, %v636
        %v2155 = vmul.f32 %v2138, %v640
        %v2156 = vmul.f32 %v2145, %v636
        %v2157 = vmul.f32 %v2139, %v640
        %s2158 = scalar_lea.vmem %s4, 16
        %v2159 = vld [vmem:[%s2158] sm:$0xff]
        %v2161 = vsel %vm1961, %v2159, 0
        %2163 = vmatprep.subr.mxu0 %v2147
        %2164 = vmatpush1.msra.mxu0 %v2146
        %2165 = vmatprep.subr.mxu0 %v2149
        %2166 = vmatpush1.msra.mxu0 %v2148
        %2167 = vmatprep.subr.mxu0 %v2151
        %2168 = vmatpush1.msra.mxu0 %v2150
        %2169 = vmatprep.subr.mxu0 %v2153
        %2170 = vmatpush1.msra.mxu0 %v2152
        %2171 = vmatprep.subr.mxu0 %v2155
        %2172 = vmatpush1.msra.mxu0 %v2154
        %2173 = vmatprep.subr.mxu0 %v2157
        %2174 = vmatpush1.msra.mxu0 %v2156
        %2175 = vmatprep.subr.mxu0 0.0
        %2176 = vmatpush1.msra.mxu0 0.0
        %2177 = vmatprep.subr.mxu0 0.0
        %2178 = vmatpush1.msra.mxu0 0.0
        %2179 = vmatprep.subr.mxu0 0.0
        %2180 = vmatpush1.msra.mxu0 0.0
        %2181 = vmatprep.subr.mxu0 0.0
        %2182 = vmatpush1.msra.mxu0 0.0
        %2183 = vmatprep.subr.mxu0 0.0
        %2184 = vmatpush1.msra.mxu0 0.0
        %2185 = vmatprep.subr.mxu0 0.0
        %2186 = vmatpush1.msra.mxu0 0.0
        %2187 = vmatprep.subr.mxu0 0.0
        %2188 = vmatpush1.msra.mxu0 0.0
        %2189 = vmatprep.subr.mxu0 0.0
        %2190 = vmatpush1.msra.mxu0 0.0
        %2191 = vmatprep.subr.mxu0 0.0
        %2192 = vmatpush1.msra.mxu0 0.0
        %2193 = vmatprep.subr.mxu0 0.0
        %2194 = vmatpush1.msra.mxu0 0.0
        %2195 = vmatprep.subr.mxu0 0.0
        %2196 = vmatpush1.msra.mxu0 0.0
        %2197 = vmatprep.subr.mxu0 0.0
        %2198 = vmatpush1.msra.mxu0 0.0
        %2199 = vmatprep.subr.mxu0 0.0
        %2200 = vmatpush1.msra.mxu0 0.0
        %2201 = vmatprep.subr.mxu0 0.0
        %2202 = vmatpush1.msra.mxu0 0.0
        %2203 = vmatprep.subr.mxu0 0.0
        %2204 = vmatpush1.msra.mxu0 0.0
        %2205 = vmatprep.subr.mxu0 0.0
        %2206 = vmatpush1.msra.mxu0 0.0
        %2207 = vmatprep.subr.mxu0 0.0
        %2208 = vmatpush1.msra.mxu0 0.0
        %2209 = vmatprep.subr.mxu0 0.0
        %2210 = vmatpush1.msra.mxu0 0.0
        %2211 = vmatprep.subr.mxu0 0.0
        %2212 = vmatpush1.msra.mxu0 0.0
        %2213 = vmatprep.subr.mxu0 0.0
        %2214 = vmatpush1.msra.mxu0 0.0
        %2215 = vmatprep.subr.mxu0 0.0
        %2216 = vmatpush1.msra.mxu0 0.0
        %2217 = vmatprep.subr.mxu0 0.0
        %2218 = vmatpush1.msra.mxu0 0.0
        %2219 = vmatprep.subr.mxu0 0.0
        %2220 = vmatpush1.msra.mxu0 0.0
        %2221 = vmatprep.subr.mxu0 0.0
        %2222 = vmatpush1.msra.mxu0 0.0
        %2223 = vmatprep.subr.mxu0 0.0
        %2224 = vmatpush1.msra.mxu0 0.0
        %2225 = vmatprep.subr.mxu0 0.0
        %2226 = vmatpush1.msra.mxu0 0.0
        %2227 = vmatprep.mubr.f32.mxu0 0.0
        %2228 = vmatmul.mubr.f32.gmra.mrb[0].mxu0 %v2161
        %v2229 = vpop.f32.mrb[0].mxu0
        %v2230 = vadd.f32 0.0, %v2229
        %v2231 = vpop.f32.mrb[0].mxu0
        %v2232 = vadd.f32 0.0, %v2231
        %2233 = vdwg.mxu0
        %v2234 = vadd.f32 %v2106, %v2230
        %v2235 = vadd.f32 %v2108, %v2232
        %2236 = vrot.lane.b32.xlu0 %v1850, 1
        %v2237 = vpop.permute.xlu0 %2236
        %2238 = vrot.lane.b32.xlu0 %v1852, 1
        %v2239 = vpop.permute.xlu0 %2238
        %2240 = vrot.lane.b32.xlu0 %v1854, 1
        %v2241 = vpop.permute.xlu0 %2240
        %2242 = vrot.lane.b32.xlu0 %v1856, 1
        %v2243 = vpop.permute.xlu0 %2242
        %2244 = vrot.lane.b32.xlu0 %v1858, 1
        %v2245 = vpop.permute.xlu0 %2244
        %2246 = vrot.lane.b32.xlu0 %v1860, 1
        %v2247 = vpop.permute.xlu0 %2246
        %2248 = vrot.lane.b32.xlu0 %v1851, 1
        %v2249 = vpop.permute.xlu0 %2248
        %2250 = vrot.lane.b32.xlu0 %v1853, 1
        %v2251 = vpop.permute.xlu0 %2250
        %2252 = vrot.lane.b32.xlu0 %v1855, 1
        %v2253 = vpop.permute.xlu0 %2252
        %2254 = vrot.lane.b32.xlu0 %v1857, 1
        %v2255 = vpop.permute.xlu0 %2254
        %2256 = vrot.lane.b32.xlu0 %v1859, 1
        %v2257 = vpop.permute.xlu0 %2256
        %2258 = vrot.lane.b32.xlu0 %v1861, 1
        %v2259 = vpop.permute.xlu0 %2258
        %v2260 = vsel %vm797, %v2237, %v2249
        %v2261 = vsel %vm797, %v2239, %v2251
        %v2262 = vsel %vm797, %v2241, %v2253
        %v2263 = vsel %vm797, %v2243, %v2255
        %v2264 = vsel %vm797, %v2245, %v2257
        %v2265 = vsel %vm797, %v2247, %v2259
        %v2266 = vsel %vm797, %v2249, %v2237
        %v2267 = vsel %vm797, %v2251, %v2239
        %v2268 = vsel %vm797, %v2253, %v2241
        %v2269 = vsel %vm797, %v2255, %v2243
        %v2270 = vsel %vm797, %v2257, %v2245
        %v2271 = vsel %vm797, %v2259, %v2247
        %v2272 = vmul.f32 %v2266, %v807
        %v2273 = vmul.f32 %v2260, %v811
        %v2274 = vmul.f32 %v2267, %v807
        %v2275 = vmul.f32 %v2261, %v811
        %v2276 = vmul.f32 %v2268, %v807
        %v2277 = vmul.f32 %v2262, %v811
        %v2278 = vmul.f32 %v2269, %v807
        %v2279 = vmul.f32 %v2263, %v811
        %v2280 = vmul.f32 %v2270, %v807
        %v2281 = vmul.f32 %v2264, %v811
        %v2282 = vmul.f32 %v2271, %v807
        %v2283 = vmul.f32 %v2265, %v811
        %s2284 = scalar_lea.vmem %s4, 24
        %v2285 = vld [vmem:[%s2284] sm:$0xff]
        %v2287 = vsel %vm1961, %v2285, 0
        %2289 = vmatprep.subr.mxu0 %v2273
        %2290 = vmatpush1.msra.mxu0 %v2272
        %2291 = vmatprep.subr.mxu0 %v2275
        %2292 = vmatpush1.msra.mxu0 %v2274
        %2293 = vmatprep.subr.mxu0 %v2277
        %2294 = vmatpush1.msra.mxu0 %v2276
        %2295 = vmatprep.subr.mxu0 %v2279
        %2296 = vmatpush1.msra.mxu0 %v2278
        %2297 = vmatprep.subr.mxu0 %v2281
        %2298 = vmatpush1.msra.mxu0 %v2280
        %2299 = vmatprep.subr.mxu0 %v2283
        %2300 = vmatpush1.msra.mxu0 %v2282
        %2301 = vmatprep.subr.mxu0 0.0
        %2302 = vmatpush1.msra.mxu0 0.0
        %2303 = vmatprep.subr.mxu0 0.0
        %2304 = vmatpush1.msra.mxu0 0.0
        %2305 = vmatprep.subr.mxu0 0.0
        %2306 = vmatpush1.msra.mxu0 0.0
        %2307 = vmatprep.subr.mxu0 0.0
        %2308 = vmatpush1.msra.mxu0 0.0
        %2309 = vmatprep.subr.mxu0 0.0
        %2310 = vmatpush1.msra.mxu0 0.0
        %2311 = vmatprep.subr.mxu0 0.0
        %2312 = vmatpush1.msra.mxu0 0.0
        %2313 = vmatprep.subr.mxu0 0.0
        %2314 = vmatpush1.msra.mxu0 0.0
        %2315 = vmatprep.subr.mxu0 0.0
        %2316 = vmatpush1.msra.mxu0 0.0
        %2317 = vmatprep.subr.mxu0 0.0
        %2318 = vmatpush1.msra.mxu0 0.0
        %2319 = vmatprep.subr.mxu0 0.0
        %2320 = vmatpush1.msra.mxu0 0.0
        %2321 = vmatprep.subr.mxu0 0.0
        %2322 = vmatpush1.msra.mxu0 0.0
        %2323 = vmatprep.subr.mxu0 0.0
        %2324 = vmatpush1.msra.mxu0 0.0
        %2325 = vmatprep.subr.mxu0 0.0
        %2326 = vmatpush1.msra.mxu0 0.0
        %2327 = vmatprep.subr.mxu0 0.0
        %2328 = vmatpush1.msra.mxu0 0.0
        %2329 = vmatprep.subr.mxu0 0.0
        %2330 = vmatpush1.msra.mxu0 0.0
        %2331 = vmatprep.subr.mxu0 0.0
        %2332 = vmatpush1.msra.mxu0 0.0
        %2333 = vmatprep.subr.mxu0 0.0
        %2334 = vmatpush1.msra.mxu0 0.0
        %2335 = vmatprep.subr.mxu0 0.0
        %2336 = vmatpush1.msra.mxu0 0.0
        %2337 = vmatprep.subr.mxu0 0.0
        %2338 = vmatpush1.msra.mxu0 0.0
        %2339 = vmatprep.subr.mxu0 0.0
        %2340 = vmatpush1.msra.mxu0 0.0
        %2341 = vmatprep.subr.mxu0 0.0
        %2342 = vmatpush1.msra.mxu0 0.0
        %2343 = vmatprep.subr.mxu0 0.0
        %2344 = vmatpush1.msra.mxu0 0.0
        %2345 = vmatprep.subr.mxu0 0.0
        %2346 = vmatpush1.msra.mxu0 0.0
        %2347 = vmatprep.subr.mxu0 0.0
        %2348 = vmatpush1.msra.mxu0 0.0
        %2349 = vmatprep.subr.mxu0 0.0
        %2350 = vmatpush1.msra.mxu0 0.0
        %2351 = vmatprep.subr.mxu0 0.0
        %2352 = vmatpush1.msra.mxu0 0.0
        %2353 = vmatprep.mubr.f32.mxu0 0.0
        %2354 = vmatmul.mubr.f32.gmra.mrb[0].mxu0 %v2287
        %v2355 = vpop.f32.mrb[0].mxu0
        %v2356 = vadd.f32 0.0, %v2355
        %v2357 = vpop.f32.mrb[0].mxu0
        %v2358 = vadd.f32 0.0, %v2357
        %2359 = vdwg.mxu0
        %v2360 = vadd.f32 %v2234, %v2356
        %v2361 = vadd.f32 %v2235, %v2358
        %s2362 = scalar_lea.vmem %s4, 32
        %v2363 = vld [vmem:[%s2362] sm:$0xff]
        %v2365 = vsel %vm1961, %v2363, 0
        %2367 = vmatprep.subr.mxu0 %v1851
        %2368 = vmatpush1.msra.mxu0 %v1850
        %2369 = vmatprep.subr.mxu0 %v1853
        %2370 = vmatpush1.msra.mxu0 %v1852
        %2371 = vmatprep.subr.mxu0 %v1855
        %2372 = vmatpush1.msra.mxu0 %v1854
        %2373 = vmatprep.subr.mxu0 %v1857
        %2374 = vmatpush1.msra.mxu0 %v1856
        %2375 = vmatprep.subr.mxu0 %v1859
        %2376 = vmatpush1.msra.mxu0 %v1858
        %2377 = vmatprep.subr.mxu0 %v1861
        %2378 = vmatpush1.msra.mxu0 %v1860
        %2379 = vmatprep.subr.mxu0 0.0
        %2380 = vmatpush1.msra.mxu0 0.0
        %2381 = vmatprep.subr.mxu0 0.0
        %2382 = vmatpush1.msra.mxu0 0.0
        %2383 = vmatprep.subr.mxu0 0.0
        %2384 = vmatpush1.msra.mxu0 0.0
        %2385 = vmatprep.subr.mxu0 0.0
        %2386 = vmatpush1.msra.mxu0 0.0
        %2387 = vmatprep.subr.mxu0 0.0
        %2388 = vmatpush1.msra.mxu0 0.0
        %2389 = vmatprep.subr.mxu0 0.0
        %2390 = vmatpush1.msra.mxu0 0.0
        %2391 = vmatprep.subr.mxu0 0.0
        %2392 = vmatpush1.msra.mxu0 0.0
        %2393 = vmatprep.subr.mxu0 0.0
        %2394 = vmatpush1.msra.mxu0 0.0
        %2395 = vmatprep.subr.mxu0 0.0
        %2396 = vmatpush1.msra.mxu0 0.0
        %2397 = vmatprep.subr.mxu0 0.0
        %2398 = vmatpush1.msra.mxu0 0.0
        %2399 = vmatprep.subr.mxu0 0.0
        %2400 = vmatpush1.msra.mxu0 0.0
        %2401 = vmatprep.subr.mxu0 0.0
        %2402 = vmatpush1.msra.mxu0 0.0
        %2403 = vmatprep.subr.mxu0 0.0
        %2404 = vmatpush1.msra.mxu0 0.0
        %2405 = vmatprep.subr.mxu0 0.0
        %2406 = vmatpush1.msra.mxu0 0.0
        %2407 = vmatprep.subr.mxu0 0.0
        %2408 = vmatpush1.msra.mxu0 0.0
        %2409 = vmatprep.subr.mxu0 0.0
        %2410 = vmatpush1.msra.mxu0 0.0
        %2411 = vmatprep.subr.mxu0 0.0
        %2412 = vmatpush1.msra.mxu0 0.0
        %2413 = vmatprep.subr.mxu0 0.0
        %2414 = vmatpush1.msra.mxu0 0.0
        %2415 = vmatprep.subr.mxu0 0.0
        %2416 = vmatpush1.msra.mxu0 0.0
        %2417 = vmatprep.subr.mxu0 0.0
        %2418 = vmatpush1.msra.mxu0 0.0
        %2419 = vmatprep.subr.mxu0 0.0
        %2420 = vmatpush1.msra.mxu0 0.0
        %2421 = vmatprep.subr.mxu0 0.0
        %2422 = vmatpush1.msra.mxu0 0.0
        %2423 = vmatprep.subr.mxu0 0.0
        %2424 = vmatpush1.msra.mxu0 0.0
        %2425 = vmatprep.subr.mxu0 0.0
        %2426 = vmatpush1.msra.mxu0 0.0
        %2427 = vmatprep.subr.mxu0 0.0
        %2428 = vmatpush1.msra.mxu0 0.0
        %2429 = vmatprep.subr.mxu0 0.0
        %2430 = vmatpush1.msra.mxu0 0.0
        %2431 = vmatprep.mubr.f32.mxu0 0.0
        %2432 = vmatmul.mubr.f32.gmra.mrb[0].mxu0 %v2365
        %v2433 = vpop.f32.mrb[0].mxu0
        %v2434 = vadd.f32 0.0, %v2433
        %v2435 = vpop.f32.mrb[0].mxu0
        %v2436 = vadd.f32 0.0, %v2435
        %2437 = vdwg.mxu0
        %v2438 = vadd.f32 %v2360, %v2434
        %v2439 = vadd.f32 %v2361, %v2436
        %2440 = vrot.lane.b32.xlu0 %v1850, 127
        %v2441 = vpop.permute.xlu0 %2440
        %2442 = vrot.lane.b32.xlu0 %v1852, 127
        %v2443 = vpop.permute.xlu0 %2442
        %2444 = vrot.lane.b32.xlu0 %v1854, 127
        %v2445 = vpop.permute.xlu0 %2444
        %2446 = vrot.lane.b32.xlu0 %v1856, 127
        %v2447 = vpop.permute.xlu0 %2446
        %2448 = vrot.lane.b32.xlu0 %v1858, 127
        %v2449 = vpop.permute.xlu0 %2448
        %2450 = vrot.lane.b32.xlu0 %v1860, 127
        %v2451 = vpop.permute.xlu0 %2450
        %2452 = vrot.lane.b32.xlu0 %v1851, 127
        %v2453 = vpop.permute.xlu0 %2452
        %2454 = vrot.lane.b32.xlu0 %v1853, 127
        %v2455 = vpop.permute.xlu0 %2454
        %2456 = vrot.lane.b32.xlu0 %v1855, 127
        %v2457 = vpop.permute.xlu0 %2456
        %2458 = vrot.lane.b32.xlu0 %v1857, 127
        %v2459 = vpop.permute.xlu0 %2458
        %2460 = vrot.lane.b32.xlu0 %v1859, 127
        %v2461 = vpop.permute.xlu0 %2460
        %2462 = vrot.lane.b32.xlu0 %v1861, 127
        %v2463 = vpop.permute.xlu0 %2462
        %v2464 = vsel %vm1106, %v2441, %v2453
        %v2465 = vsel %vm1106, %v2443, %v2455
        %v2466 = vsel %vm1106, %v2445, %v2457
        %v2467 = vsel %vm1106, %v2447, %v2459
        %v2468 = vsel %vm1106, %v2449, %v2461
        %v2469 = vsel %vm1106, %v2451, %v2463
        %v2470 = vsel %vm1106, %v2453, %v2441
        %v2471 = vsel %vm1106, %v2455, %v2443
        %v2472 = vsel %vm1106, %v2457, %v2445
        %v2473 = vsel %vm1106, %v2459, %v2447
        %v2474 = vsel %vm1106, %v2461, %v2449
        %v2475 = vsel %vm1106, %v2463, %v2451
        %v2476 = vmul.f32 %v2464, %v1116
        %v2477 = vmul.f32 %v2470, %v1120
        %v2478 = vmul.f32 %v2465, %v1116
        %v2479 = vmul.f32 %v2471, %v1120
        %v2480 = vmul.f32 %v2466, %v1116
        %v2481 = vmul.f32 %v2472, %v1120
        %v2482 = vmul.f32 %v2467, %v1116
        %v2483 = vmul.f32 %v2473, %v1120
        %v2484 = vmul.f32 %v2468, %v1116
        %v2485 = vmul.f32 %v2474, %v1120
        %v2486 = vmul.f32 %v2469, %v1116
        %v2487 = vmul.f32 %v2475, %v1120
        %s2488 = scalar_lea.vmem %s4, 40
        %v2489 = vld [vmem:[%s2488] sm:$0xff]
        %v2491 = vsel %vm1961, %v2489, 0
        %2493 = vmatprep.subr.mxu0 %v2477
        %2494 = vmatpush1.msra.mxu0 %v2476
        %2495 = vmatprep.subr.mxu0 %v2479
        %2496 = vmatpush1.msra.mxu0 %v2478
        %2497 = vmatprep.subr.mxu0 %v2481
        %2498 = vmatpush1.msra.mxu0 %v2480
        %2499 = vmatprep.subr.mxu0 %v2483
        %2500 = vmatpush1.msra.mxu0 %v2482
        %2501 = vmatprep.subr.mxu0 %v2485
        %2502 = vmatpush1.msra.mxu0 %v2484
        %2503 = vmatprep.subr.mxu0 %v2487
        %2504 = vmatpush1.msra.mxu0 %v2486
        %2505 = vmatprep.subr.mxu0 0.0
        %2506 = vmatpush1.msra.mxu0 0.0
        %2507 = vmatprep.subr.mxu0 0.0
        %2508 = vmatpush1.msra.mxu0 0.0
        %2509 = vmatprep.subr.mxu0 0.0
        %2510 = vmatpush1.msra.mxu0 0.0
        %2511 = vmatprep.subr.mxu0 0.0
        %2512 = vmatpush1.msra.mxu0 0.0
        %2513 = vmatprep.subr.mxu0 0.0
        %2514 = vmatpush1.msra.mxu0 0.0
        %2515 = vmatprep.subr.mxu0 0.0
        %2516 = vmatpush1.msra.mxu0 0.0
        %2517 = vmatprep.subr.mxu0 0.0
        %2518 = vmatpush1.msra.mxu0 0.0
        %2519 = vmatprep.subr.mxu0 0.0
        %2520 = vmatpush1.msra.mxu0 0.0
        %2521 = vmatprep.subr.mxu0 0.0
        %2522 = vmatpush1.msra.mxu0 0.0
        %2523 = vmatprep.subr.mxu0 0.0
        %2524 = vmatpush1.msra.mxu0 0.0
        %2525 = vmatprep.subr.mxu0 0.0
        %2526 = vmatpush1.msra.mxu0 0.0
        %2527 = vmatprep.subr.mxu0 0.0
        %2528 = vmatpush1.msra.mxu0 0.0
        %2529 = vmatprep.subr.mxu0 0.0
        %2530 = vmatpush1.msra.mxu0 0.0
        %2531 = vmatprep.subr.mxu0 0.0
        %2532 = vmatpush1.msra.mxu0 0.0
        %2533 = vmatprep.subr.mxu0 0.0
        %2534 = vmatpush1.msra.mxu0 0.0
        %2535 = vmatprep.subr.mxu0 0.0
        %2536 = vmatpush1.msra.mxu0 0.0
        %2537 = vmatprep.subr.mxu0 0.0
        %2538 = vmatpush1.msra.mxu0 0.0
        %2539 = vmatprep.subr.mxu0 0.0
        %2540 = vmatpush1.msra.mxu0 0.0
        %2541 = vmatprep.subr.mxu0 0.0
        %2542 = vmatpush1.msra.mxu0 0.0
        %2543 = vmatprep.subr.mxu0 0.0
        %2544 = vmatpush1.msra.mxu0 0.0
        %2545 = vmatprep.subr.mxu0 0.0
        %2546 = vmatpush1.msra.mxu0 0.0
        %2547 = vmatprep.subr.mxu0 0.0
        %2548 = vmatpush1.msra.mxu0 0.0
        %2549 = vmatprep.subr.mxu0 0.0
        %2550 = vmatpush1.msra.mxu0 0.0
        %2551 = vmatprep.subr.mxu0 0.0
        %2552 = vmatpush1.msra.mxu0 0.0
        %2553 = vmatprep.subr.mxu0 0.0
        %2554 = vmatpush1.msra.mxu0 0.0
        %2555 = vmatprep.subr.mxu0 0.0
        %2556 = vmatpush1.msra.mxu0 0.0
        %2557 = vmatprep.mubr.f32.mxu0 0.0
        %2558 = vmatmul.mubr.f32.gmra.mrb[0].mxu0 %v2491
        %v2559 = vpop.f32.mrb[0].mxu0
        %v2560 = vadd.f32 0.0, %v2559
        %v2561 = vpop.f32.mrb[0].mxu0
        %v2562 = vadd.f32 0.0, %v2561
        %2563 = vdwg.mxu0
        %v2564 = vadd.f32 %v2438, %v2560
        %v2565 = vadd.f32 %v2439, %v2562
        %2566 = vrot.lane.b32.xlu0 %v1850, 113
        %v2567 = vpop.permute.xlu0 %2566
        %2568 = vrot.lane.b32.xlu0 %v1852, 113
        %v2569 = vpop.permute.xlu0 %2568
        %2570 = vrot.lane.b32.xlu0 %v1854, 113
        %v2571 = vpop.permute.xlu0 %2570
        %2572 = vrot.lane.b32.xlu0 %v1856, 113
        %v2573 = vpop.permute.xlu0 %2572
        %2574 = vrot.lane.b32.xlu0 %v1858, 113
        %v2575 = vpop.permute.xlu0 %2574
        %2576 = vrot.lane.b32.xlu0 %v1860, 113
        %v2577 = vpop.permute.xlu0 %2576
        %2578 = vrot.lane.b32.xlu0 %v1851, 113
        %v2579 = vpop.permute.xlu0 %2578
        %2580 = vrot.lane.b32.xlu0 %v1853, 113
        %v2581 = vpop.permute.xlu0 %2580
        %2582 = vrot.lane.b32.xlu0 %v1855, 113
        %v2583 = vpop.permute.xlu0 %2582
        %2584 = vrot.lane.b32.xlu0 %v1857, 113
        %v2585 = vpop.permute.xlu0 %2584
        %2586 = vrot.lane.b32.xlu0 %v1859, 113
        %v2587 = vpop.permute.xlu0 %2586
        %2588 = vrot.lane.b32.xlu0 %v1861, 113
        %v2589 = vpop.permute.xlu0 %2588
        %v2590 = vsel %vm1277, %v2567, %v2579
        %v2591 = vsel %vm1277, %v2569, %v2581
        %v2592 = vsel %vm1277, %v2571, %v2583
        %v2593 = vsel %vm1277, %v2573, %v2585
        %v2594 = vsel %vm1277, %v2575, %v2587
        %v2595 = vsel %vm1277, %v2577, %v2589
        %v2596 = vsel %vm1277, %v2579, %v2567
        %v2597 = vsel %vm1277, %v2581, %v2569
        %v2598 = vsel %vm1277, %v2583, %v2571
        %v2599 = vsel %vm1277, %v2585, %v2573
        %v2600 = vsel %vm1277, %v2587, %v2575
        %v2601 = vsel %vm1277, %v2589, %v2577
        %v2602 = vmul.f32 %v2590, %v1287
        %v2603 = vmul.f32 %v2596, %v1291
        %v2604 = vmul.f32 %v2591, %v1287
        %v2605 = vmul.f32 %v2597, %v1291
        %v2606 = vmul.f32 %v2592, %v1287
        %v2607 = vmul.f32 %v2598, %v1291
        %v2608 = vmul.f32 %v2593, %v1287
        %v2609 = vmul.f32 %v2599, %v1291
        %v2610 = vmul.f32 %v2594, %v1287
        %v2611 = vmul.f32 %v2600, %v1291
        %v2612 = vmul.f32 %v2595, %v1287
        %v2613 = vmul.f32 %v2601, %v1291
        %s2614 = scalar_lea.vmem %s4, 48
        %v2615 = vld [vmem:[%s2614] sm:$0xff]
        %v2617 = vsel %vm1961, %v2615, 0
        %2619 = vmatprep.subr.mxu0 %v2603
        %2620 = vmatpush1.msra.mxu0 %v2602
        %2621 = vmatprep.subr.mxu0 %v2605
        %2622 = vmatpush1.msra.mxu0 %v2604
        %2623 = vmatprep.subr.mxu0 %v2607
        %2624 = vmatpush1.msra.mxu0 %v2606
        %2625 = vmatprep.subr.mxu0 %v2609
        %2626 = vmatpush1.msra.mxu0 %v2608
        %2627 = vmatprep.subr.mxu0 %v2611
        %2628 = vmatpush1.msra.mxu0 %v2610
        %2629 = vmatprep.subr.mxu0 %v2613
        %2630 = vmatpush1.msra.mxu0 %v2612
        %2631 = vmatprep.subr.mxu0 0.0
        %2632 = vmatpush1.msra.mxu0 0.0
        %2633 = vmatprep.subr.mxu0 0.0
        %2634 = vmatpush1.msra.mxu0 0.0
        %2635 = vmatprep.subr.mxu0 0.0
        %2636 = vmatpush1.msra.mxu0 0.0
        %2637 = vmatprep.subr.mxu0 0.0
        %2638 = vmatpush1.msra.mxu0 0.0
        %2639 = vmatprep.subr.mxu0 0.0
        %2640 = vmatpush1.msra.mxu0 0.0
        %2641 = vmatprep.subr.mxu0 0.0
        %2642 = vmatpush1.msra.mxu0 0.0
        %2643 = vmatprep.subr.mxu0 0.0
        %2644 = vmatpush1.msra.mxu0 0.0
        %2645 = vmatprep.subr.mxu0 0.0
        %2646 = vmatpush1.msra.mxu0 0.0
        %2647 = vmatprep.subr.mxu0 0.0
        %2648 = vmatpush1.msra.mxu0 0.0
        %2649 = vmatprep.subr.mxu0 0.0
        %2650 = vmatpush1.msra.mxu0 0.0
        %2651 = vmatprep.subr.mxu0 0.0
        %2652 = vmatpush1.msra.mxu0 0.0
        %2653 = vmatprep.subr.mxu0 0.0
        %2654 = vmatpush1.msra.mxu0 0.0
        %2655 = vmatprep.subr.mxu0 0.0
        %2656 = vmatpush1.msra.mxu0 0.0
        %2657 = vmatprep.subr.mxu0 0.0
        %2658 = vmatpush1.msra.mxu0 0.0
        %2659 = vmatprep.subr.mxu0 0.0
        %2660 = vmatpush1.msra.mxu0 0.0
        %2661 = vmatprep.subr.mxu0 0.0
        %2662 = vmatpush1.msra.mxu0 0.0
        %2663 = vmatprep.subr.mxu0 0.0
        %2664 = vmatpush1.msra.mxu0 0.0
        %2665 = vmatprep.subr.mxu0 0.0
        %2666 = vmatpush1.msra.mxu0 0.0
        %2667 = vmatprep.subr.mxu0 0.0
        %2668 = vmatpush1.msra.mxu0 0.0
        %2669 = vmatprep.subr.mxu0 0.0
        %2670 = vmatpush1.msra.mxu0 0.0
        %2671 = vmatprep.subr.mxu0 0.0
        %2672 = vmatpush1.msra.mxu0 0.0
        %2673 = vmatprep.subr.mxu0 0.0
        %2674 = vmatpush1.msra.mxu0 0.0
        %2675 = vmatprep.subr.mxu0 0.0
        %2676 = vmatpush1.msra.mxu0 0.0
        %2677 = vmatprep.subr.mxu0 0.0
        %2678 = vmatpush1.msra.mxu0 0.0
        %2679 = vmatprep.subr.mxu0 0.0
        %2680 = vmatpush1.msra.mxu0 0.0
        %2681 = vmatprep.subr.mxu0 0.0
        %2682 = vmatpush1.msra.mxu0 0.0
        %2683 = vmatprep.mubr.f32.mxu0 0.0
        %2684 = vmatmul.mubr.f32.gmra.mrb[0].mxu0 %v2617
        %v2685 = vpop.f32.mrb[0].mxu0
        %v2686 = vadd.f32 0.0, %v2685
        %v2687 = vpop.f32.mrb[0].mxu0
        %v2688 = vadd.f32 0.0, %v2687
        %2689 = vdwg.mxu0
        %v2690 = vadd.f32 %v2564, %v2686
        %v2691 = vadd.f32 %v2565, %v2688
        %2692 = vrot.lane.b32.xlu0 %v1850, 112
        %v2693 = vpop.permute.xlu0 %2692
        %2694 = vrot.lane.b32.xlu0 %v1852, 112
        %v2695 = vpop.permute.xlu0 %2694
        %2696 = vrot.lane.b32.xlu0 %v1854, 112
        %v2697 = vpop.permute.xlu0 %2696
        %2698 = vrot.lane.b32.xlu0 %v1856, 112
        %v2699 = vpop.permute.xlu0 %2698
        %2700 = vrot.lane.b32.xlu0 %v1858, 112
        %v2701 = vpop.permute.xlu0 %2700
        %2702 = vrot.lane.b32.xlu0 %v1860, 112
        %v2703 = vpop.permute.xlu0 %2702
        %2704 = vrot.lane.b32.xlu0 %v1851, 112
        %v2705 = vpop.permute.xlu0 %2704
        %2706 = vrot.lane.b32.xlu0 %v1853, 112
        %v2707 = vpop.permute.xlu0 %2706
        %2708 = vrot.lane.b32.xlu0 %v1855, 112
        %v2709 = vpop.permute.xlu0 %2708
        %2710 = vrot.lane.b32.xlu0 %v1857, 112
        %v2711 = vpop.permute.xlu0 %2710
        %2712 = vrot.lane.b32.xlu0 %v1859, 112
        %v2713 = vpop.permute.xlu0 %2712
        %2714 = vrot.lane.b32.xlu0 %v1861, 112
        %v2715 = vpop.permute.xlu0 %2714
        %v2716 = vsel %vm1448, %v2693, %v2705
        %v2717 = vsel %vm1448, %v2695, %v2707
        %v2718 = vsel %vm1448, %v2697, %v2709
        %v2719 = vsel %vm1448, %v2699, %v2711
        %v2720 = vsel %vm1448, %v2701, %v2713
        %v2721 = vsel %vm1448, %v2703, %v2715
        %v2722 = vsel %vm1448, %v2705, %v2693
        %v2723 = vsel %vm1448, %v2707, %v2695
        %v2724 = vsel %vm1448, %v2709, %v2697
        %v2725 = vsel %vm1448, %v2711, %v2699
        %v2726 = vsel %vm1448, %v2713, %v2701
        %v2727 = vsel %vm1448, %v2715, %v2703
        %v2728 = vmul.f32 %v2716, %v1458
        %v2729 = vmul.f32 %v2722, %v1462
        %v2730 = vmul.f32 %v2717, %v1458
        %v2731 = vmul.f32 %v2723, %v1462
        %v2732 = vmul.f32 %v2718, %v1458
        %v2733 = vmul.f32 %v2724, %v1462
        %v2734 = vmul.f32 %v2719, %v1458
        %v2735 = vmul.f32 %v2725, %v1462
        %v2736 = vmul.f32 %v2720, %v1458
        %v2737 = vmul.f32 %v2726, %v1462
        %v2738 = vmul.f32 %v2721, %v1458
        %v2739 = vmul.f32 %v2727, %v1462
        %s2740 = scalar_lea.vmem %s4, 56
        %v2741 = vld [vmem:[%s2740] sm:$0xff]
        %v2743 = vsel %vm1961, %v2741, 0
        %2745 = vmatprep.subr.mxu0 %v2729
        %2746 = vmatpush1.msra.mxu0 %v2728
        %2747 = vmatprep.subr.mxu0 %v2731
        %2748 = vmatpush1.msra.mxu0 %v2730
        %2749 = vmatprep.subr.mxu0 %v2733
        %2750 = vmatpush1.msra.mxu0 %v2732
        %2751 = vmatprep.subr.mxu0 %v2735
        %2752 = vmatpush1.msra.mxu0 %v2734
        %2753 = vmatprep.subr.mxu0 %v2737
        %2754 = vmatpush1.msra.mxu0 %v2736
        %2755 = vmatprep.subr.mxu0 %v2739
        %2756 = vmatpush1.msra.mxu0 %v2738
        %2757 = vmatprep.subr.mxu0 0.0
        %2758 = vmatpush1.msra.mxu0 0.0
        %2759 = vmatprep.subr.mxu0 0.0
        %2760 = vmatpush1.msra.mxu0 0.0
        %2761 = vmatprep.subr.mxu0 0.0
        %2762 = vmatpush1.msra.mxu0 0.0
        %2763 = vmatprep.subr.mxu0 0.0
        %2764 = vmatpush1.msra.mxu0 0.0
        %2765 = vmatprep.subr.mxu0 0.0
        %2766 = vmatpush1.msra.mxu0 0.0
        %2767 = vmatprep.subr.mxu0 0.0
        %2768 = vmatpush1.msra.mxu0 0.0
        %2769 = vmatprep.subr.mxu0 0.0
        %2770 = vmatpush1.msra.mxu0 0.0
        %2771 = vmatprep.subr.mxu0 0.0
        %2772 = vmatpush1.msra.mxu0 0.0
        %2773 = vmatprep.subr.mxu0 0.0
        %2774 = vmatpush1.msra.mxu0 0.0
        %2775 = vmatprep.subr.mxu0 0.0
        %2776 = vmatpush1.msra.mxu0 0.0
        %2777 = vmatprep.subr.mxu0 0.0
        %2778 = vmatpush1.msra.mxu0 0.0
        %2779 = vmatprep.subr.mxu0 0.0
        %2780 = vmatpush1.msra.mxu0 0.0
        %2781 = vmatprep.subr.mxu0 0.0
        %2782 = vmatpush1.msra.mxu0 0.0
        %2783 = vmatprep.subr.mxu0 0.0
        %2784 = vmatpush1.msra.mxu0 0.0
        %2785 = vmatprep.subr.mxu0 0.0
        %2786 = vmatpush1.msra.mxu0 0.0
        %2787 = vmatprep.subr.mxu0 0.0
        %2788 = vmatpush1.msra.mxu0 0.0
        %2789 = vmatprep.subr.mxu0 0.0
        %2790 = vmatpush1.msra.mxu0 0.0
        %2791 = vmatprep.subr.mxu0 0.0
        %2792 = vmatpush1.msra.mxu0 0.0
        %2793 = vmatprep.subr.mxu0 0.0
        %2794 = vmatpush1.msra.mxu0 0.0
        %2795 = vmatprep.subr.mxu0 0.0
        %2796 = vmatpush1.msra.mxu0 0.0
        %2797 = vmatprep.subr.mxu0 0.0
        %2798 = vmatpush1.msra.mxu0 0.0
        %2799 = vmatprep.subr.mxu0 0.0
        %2800 = vmatpush1.msra.mxu0 0.0
        %2801 = vmatprep.subr.mxu0 0.0
        %2802 = vmatpush1.msra.mxu0 0.0
        %2803 = vmatprep.subr.mxu0 0.0
        %2804 = vmatpush1.msra.mxu0 0.0
        %2805 = vmatprep.subr.mxu0 0.0
        %2806 = vmatpush1.msra.mxu0 0.0
        %2807 = vmatprep.subr.mxu0 0.0
        %2808 = vmatpush1.msra.mxu0 0.0
        %2809 = vmatprep.mubr.f32.mxu0 0.0
        %2810 = vmatmul.mubr.f32.gmra.mrb[0].mxu0 %v2743
        %v2811 = vpop.f32.mrb[0].mxu0
        %v2812 = vadd.f32 0.0, %v2811
        %v2813 = vpop.f32.mrb[0].mxu0
        %v2814 = vadd.f32 0.0, %v2813
        %2815 = vdwg.mxu0
        %v2816 = vadd.f32 %v2690, %v2812
        %v2817 = vadd.f32 %v2691, %v2814
        %2818 = vrot.lane.b32.xlu0 %v1850, 111
        %v2819 = vpop.permute.xlu0 %2818
        %2820 = vrot.lane.b32.xlu0 %v1852, 111
        %v2821 = vpop.permute.xlu0 %2820
        %2822 = vrot.lane.b32.xlu0 %v1854, 111
        %v2823 = vpop.permute.xlu0 %2822
        %2824 = vrot.lane.b32.xlu0 %v1856, 111
        %v2825 = vpop.permute.xlu0 %2824
        %2826 = vrot.lane.b32.xlu0 %v1858, 111
        %v2827 = vpop.permute.xlu0 %2826
        %2828 = vrot.lane.b32.xlu0 %v1860, 111
        %v2829 = vpop.permute.xlu0 %2828
        %2830 = vrot.lane.b32.xlu0 %v1851, 111
        %v2831 = vpop.permute.xlu0 %2830
        %2832 = vrot.lane.b32.xlu0 %v1853, 111
        %v2833 = vpop.permute.xlu0 %2832
        %2834 = vrot.lane.b32.xlu0 %v1855, 111
        %v2835 = vpop.permute.xlu0 %2834
        %2836 = vrot.lane.b32.xlu0 %v1857, 111
        %v2837 = vpop.permute.xlu0 %2836
        %2838 = vrot.lane.b32.xlu0 %v1859, 111
        %v2839 = vpop.permute.xlu0 %2838
        %2840 = vrot.lane.b32.xlu0 %v1861, 111
        %v2841 = vpop.permute.xlu0 %2840
        %v2842 = vsel %vm1619, %v2819, %v2831
        %v2843 = vsel %vm1619, %v2821, %v2833
        %v2844 = vsel %vm1619, %v2823, %v2835
        %v2845 = vsel %vm1619, %v2825, %v2837
        %v2846 = vsel %vm1619, %v2827, %v2839
        %v2847 = vsel %vm1619, %v2829, %v2841
        %v2848 = vsel %vm1619, %v2831, %v2819
        %v2849 = vsel %vm1619, %v2833, %v2821
        %v2850 = vsel %vm1619, %v2835, %v2823
        %v2851 = vsel %vm1619, %v2837, %v2825
        %v2852 = vsel %vm1619, %v2839, %v2827
        %v2853 = vsel %vm1619, %v2841, %v2829
        %v2854 = vmul.f32 %v2842, %v1629
        %v2855 = vmul.f32 %v2848, %v1633
        %v2856 = vmul.f32 %v2843, %v1629
        %v2857 = vmul.f32 %v2849, %v1633
        %v2858 = vmul.f32 %v2844, %v1629
        %v2859 = vmul.f32 %v2850, %v1633
        %v2860 = vmul.f32 %v2845, %v1629
        %v2861 = vmul.f32 %v2851, %v1633
        %v2862 = vmul.f32 %v2846, %v1629
        %v2863 = vmul.f32 %v2852, %v1633
        %v2864 = vmul.f32 %v2847, %v1629
        %v2865 = vmul.f32 %v2853, %v1633
        %s2866 = scalar_lea.vmem %s4, 64
        %v2867 = vld [vmem:[%s2866] sm:$0xff]
        %v2869 = vsel %vm1961, %v2867, 0
        %2871 = vmatprep.subr.mxu0 %v2855
        %2872 = vmatpush1.msra.mxu0 %v2854
        %2873 = vmatprep.subr.mxu0 %v2857
        %2874 = vmatpush1.msra.mxu0 %v2856
        %2875 = vmatprep.subr.mxu0 %v2859
        %2876 = vmatpush1.msra.mxu0 %v2858
        %2877 = vmatprep.subr.mxu0 %v2861
        %2878 = vmatpush1.msra.mxu0 %v2860
        %2879 = vmatprep.subr.mxu0 %v2863
        %2880 = vmatpush1.msra.mxu0 %v2862
        %2881 = vmatprep.subr.mxu0 %v2865
        %2882 = vmatpush1.msra.mxu0 %v2864
        %2883 = vmatprep.subr.mxu0 0.0
        %2884 = vmatpush1.msra.mxu0 0.0
        %2885 = vmatprep.subr.mxu0 0.0
        %2886 = vmatpush1.msra.mxu0 0.0
        %2887 = vmatprep.subr.mxu0 0.0
        %2888 = vmatpush1.msra.mxu0 0.0
        %2889 = vmatprep.subr.mxu0 0.0
        %2890 = vmatpush1.msra.mxu0 0.0
        %2891 = vmatprep.subr.mxu0 0.0
        %2892 = vmatpush1.msra.mxu0 0.0
        %2893 = vmatprep.subr.mxu0 0.0
        %2894 = vmatpush1.msra.mxu0 0.0
        %2895 = vmatprep.subr.mxu0 0.0
        %2896 = vmatpush1.msra.mxu0 0.0
        %2897 = vmatprep.subr.mxu0 0.0
        %2898 = vmatpush1.msra.mxu0 0.0
        %2899 = vmatprep.subr.mxu0 0.0
        %2900 = vmatpush1.msra.mxu0 0.0
        %2901 = vmatprep.subr.mxu0 0.0
        %2902 = vmatpush1.msra.mxu0 0.0
        %2903 = vmatprep.subr.mxu0 0.0
        %2904 = vmatpush1.msra.mxu0 0.0
        %2905 = vmatprep.subr.mxu0 0.0
        %2906 = vmatpush1.msra.mxu0 0.0
        %2907 = vmatprep.subr.mxu0 0.0
        %2908 = vmatpush1.msra.mxu0 0.0
        %2909 = vmatprep.subr.mxu0 0.0
        %2910 = vmatpush1.msra.mxu0 0.0
        %2911 = vmatprep.subr.mxu0 0.0
        %2912 = vmatpush1.msra.mxu0 0.0
        %2913 = vmatprep.subr.mxu0 0.0
        %2914 = vmatpush1.msra.mxu0 0.0
        %2915 = vmatprep.subr.mxu0 0.0
        %2916 = vmatpush1.msra.mxu0 0.0
        %2917 = vmatprep.subr.mxu0 0.0
        %2918 = vmatpush1.msra.mxu0 0.0
        %2919 = vmatprep.subr.mxu0 0.0
        %2920 = vmatpush1.msra.mxu0 0.0
        %2921 = vmatprep.subr.mxu0 0.0
        %2922 = vmatpush1.msra.mxu0 0.0
        %2923 = vmatprep.subr.mxu0 0.0
        %2924 = vmatpush1.msra.mxu0 0.0
        %2925 = vmatprep.subr.mxu0 0.0
        %2926 = vmatpush1.msra.mxu0 0.0
        %2927 = vmatprep.subr.mxu0 0.0
        %2928 = vmatpush1.msra.mxu0 0.0
        %2929 = vmatprep.subr.mxu0 0.0
        %2930 = vmatpush1.msra.mxu0 0.0
        %2931 = vmatprep.subr.mxu0 0.0
        %2932 = vmatpush1.msra.mxu0 0.0
        %2933 = vmatprep.subr.mxu0 0.0
        %2934 = vmatpush1.msra.mxu0 0.0
        %2935 = vmatprep.mubr.f32.mxu0 0.0
        %2936 = vmatmul.mubr.f32.gmra.mrb[0].mxu0 %v2869
        %v2937 = vpop.f32.mrb[0].mxu0
        %v2938 = vadd.f32 0.0, %v2937
        %v2939 = vpop.f32.mrb[0].mxu0
        %v2940 = vadd.f32 0.0, %v2939
        %2941 = vdwg.mxu0
        %v2942 = vadd.f32 %v2816, %v2938
        %v2943 = vadd.f32 %v2817, %v2940
        %v2944 = vld [vmem:[%s5] sm:$0xff]
        %v2945 = vld [vmem:[%s5 + $0x8] sm:$0xff]
        %v2946 = vadd.f32 %v2942, %v2944
        %v2947 = vadd.f32 %v2943, %v2945
        %v2948 = vsub.f32 0.0, %v2946
        %v2949 = vsub.f32 0.0, %v2947
        %v2950 = vmul.f32 %v2948, 1.442695
        %v2951 = vpow.pop %v2950
        %v2952 = vmul.f32 %v2949, 1.442695
        %v2953 = vpow.pop %v2952
        %v2954 = vadd.f32 %v2951, 1.0
        %v2955 = vadd.f32 %v2953, 1.0
        %v2956 = vrcp.pop %v2954
        %v2957 = vrcp.pop %v2955
        %2958 = vst [vmem:[%s282] sm:$0xff] %v2956
        %2959 = vst [vmem:[%s282 + $0x8] sm:$0xff] %v2957
        %s2960 = smul.u32 2, %s17
        %p2961 = scmp.lt.s32.totalorder %s2960, 3
        %s2962 = scalar_select %p2961, %s2960, 3
        %s2963 = smul.addr %s2962, 8
        %s2964 = scalar_lea.vmem %s6, %s2963
        // Predicated region
        $region68: #{model_forward.1} parent=62 // pred_check
          %p2965 = pneg %p166
        $region69: #{model_forward.1} parent=62 // pred_check_branch
          %2967 = sbr.rel (%p2965) target = $region71
        $region70: #{model_forward.1} parent=62 // pred_region
          %s2968 = smul.u32 2, %s17
        $region71: #{model_forward.1} parent=62 // pred_fallthru
          _
      $region63: #{model_forward.1} parent=5 // pred_fallthru
        _
      %p2969 = scmp.le.s32.totalorder 2, %s12
      // Predicated region
      $region72: #{model_forward.1} parent=5 // pred_check
        %p2970 = pneg %p2969
      $region73: #{model_forward.1} parent=5 // pred_check_branch
        %2972 = sbr.rel (%p2970) target = $region75
      $region74: #{model_forward.1} parent=5 // pred_region
        %s2973 = ssub.s32 %s12, 2
        // Predicated region
        $region76: #{model_forward.1} parent=74 // pred_check
          %p2974 = pneg %p172
        $region77: #{model_forward.1} parent=74 // pred_check_branch
          %2976 = sbr.rel (%p2974) target = $region79
        $region78: #{model_forward.1} parent=74 // pred_region
          %s2977 = smul.u32 2, %s18
          %p2978 = scmp.lt.s32.totalorder %s2977, 3
          %s2979 = scalar_select %p2978, %s2977, 3
          %s2980 = smul.addr %s2979, 8
          %s2981 = scalar_lea.vmem %s6, %s2980
        $region79: #{model_forward.1} parent=74 // pred_fallthru
          _
      $region75: #{model_forward.1} parent=5 // pred_fallthru
        _
    $region6: #{model_forward.1} parent=1 // loop_footer
      %s16 = sadd.s32 1, %s12
    $region7: #{model_forward.1} parent=1 // loop_footer_branch
      %11 = sbr.rel target = $region3
    $region8: #{model_forward.1} parent=1 // loop_exit
      _

</llo_original>
